<compile_context>
chip_gen: v7x
topology: tpu7x:2x2x1
jax: 0.10.0
libtpu: 0.0.40
codegen_flags: <defaults>
</compile_context>

<pallas_src>
import jax
import jax.numpy as jnp
from jax import lax
from jax.experimental import pallas as pl
from jax.experimental.pallas import tpu as pltpu


def _round_up(x, m):
    return ((x + m - 1) // m) * m


def _make_sgns_kernel(C):
    inv_c = 1.0 / float(C)

    def kernel(emb_iT_ref, emb_o_ref, iword_ref, ctx_ref, out_ref):
        """One batch tile of the SGNS loss, fully lane-dense (TILE_B on lanes).

        emb_iT_ref : (E, Vp)         input-embedding table, transposed (VMEM-resident)
        emb_o_ref  : (Vp, E)         output-embedding table (VMEM-resident)
        iword_ref  : (1, TILE_B)     centre-word ids
        ctx_ref    : (C+CN, TILE_B)  context-word ids (rows 0..C-1), then negatives
        out_ref    : (1, TILE_B)     per-row (oloss + nloss)
        """
        vp = emb_o_ref.shape[0]
        tile_b = out_ref.shape[1]
        slots = ctx_ref.shape[0]

        iota_v = lax.broadcasted_iota(jnp.int32, (vp, tile_b), 0)

        # --- gather centre-word embeddings via a one-hot matmul (exact on MXU) ---
        oh_i = (iota_v == iword_ref[...]).astype(jnp.float32)          # (Vp, TB)
        iv_T = lax.dot_general(
            emb_iT_ref[...], oh_i,
            (((1,), (0,)), ((), ())),
            preferred_element_type=jnp.float32,
            precision=lax.Precision.HIGHEST)                           # (E, TB)

        # --- scores of every vocab word against every centre word ---
        # u[v, b] = emb_o[v, :] . iv[:, b]
        u = lax.dot_general(
            emb_o_ref[...], iv_T,
            (((1,), (0,)), ((), ())),
            preferred_element_type=jnp.float32,
            precision=lax.Precision.HIGHEST)                           # (Vp, TB)

        ctx = ctx_ref[...]                                             # (slots, TB)

        def logsig(x):  # numerically stable log(sigmoid(x))
            return jnp.minimum(x, 0.0) - jnp.log(1.0 + jnp.exp(-jnp.abs(x)))

        acc = jnp.zeros((1, tile_b), jnp.float32)
        for s in range(slots):                                         # static unroll
            row = ctx[s:s + 1, :]                                      # (1, TB)
            score = jnp.sum(jnp.where(iota_v == row, u, 0.0),
                            axis=0, keepdims=True)                     # (1, TB)
            # positives: logsigmoid(score); negatives (reference negates the
            # embeddings before the bmm): logsigmoid(-score)
            acc = acc + (logsig(score) if s < C else logsig(-score))

        out_ref[...] = acc * inv_c                                     # lane-dense store

    return kernel


def sgns_forward(iword, owords, nwords, emb_i, emb_o, *, max_tile_b=1024):
    """Replicates SGNS.forward (weights=None path; negatives passed in).

    Returns -(oloss + nloss).mean(), exactly as the PyTorch module does.
    """
    B = int(iword.shape[0])
    C = int(owords.shape[1])
    CN = int(nwords.shape[1])               # C * n_negs
    V, E = emb_i.shape
    slots = C + CN

    # --- pad vocab to a lane-friendly multiple of 128 (zero rows, never indexed) ---
    # TODO(synk): for vocabularies too large for VMEM, switch the tables to
    # memory_space=pl.ANY and DMA row-gather instead of the one-hot matmul.
    vp = _round_up(V, 128)
    emb_iT = jnp.zeros((E, vp), jnp.float32).at[:, :V].set(emb_i.astype(jnp.float32).T)
    emb_o_p = jnp.zeros((vp, E), jnp.float32).at[:V, :].set(emb_o.astype(jnp.float32))

    # --- batch tiling: TILE_B is the lane axis (multiple of 128) ---
    b128 = _round_up(B, 128)
    tile_b = min(max_tile_b, b128)
    if b128 // tile_b < 2 and b128 >= 256:
        tile_b = _round_up(b128 // 2, 128)   # >=2 tiles so both v7x TCs get work
    b_pad = _round_up(B, tile_b)
    num_tiles = b_pad // tile_b
    pad = b_pad - B

    iw = jnp.pad(iword.astype(jnp.int32), (0, pad)).reshape(1, b_pad)
    ctx = jnp.concatenate([owords.astype(jnp.int32),
                           nwords.astype(jnp.int32)], axis=1)          # (B, slots)
    ctx = jnp.pad(ctx, ((0, pad), (0, 0))).T                           # (slots, b_pad)

    per_batch = pl.pallas_call(
        _make_sgns_kernel(C),
        out_shape=jax.ShapeDtypeStruct((1, b_pad), jnp.float32),
        grid_spec=pltpu.PrefetchScalarGridSpec(
            num_scalar_prefetch=0,
            grid=(num_tiles,),
            in_specs=[
                pl.BlockSpec((E, vp), lambda t: (0, 0)),         # table, stays resident
                pl.BlockSpec((vp, E), lambda t: (0, 0)),         # table, stays resident
                pl.BlockSpec((1, tile_b), lambda t: (0, t)),     # centre-word ids
                pl.BlockSpec((slots, tile_b), lambda t: (0, t)), # context/negative ids
            ],
            out_specs=pl.BlockSpec((1, tile_b), lambda t: (0, t)),
        ),
        compiler_params=pltpu.CompilerParams(
            dimension_semantics=("parallel",),
            vmem_limit_bytes=32 * 1024 * 1024,
        ),
        cost_estimate=pl.CostEstimate(
            flops=4 * E * vp * b_pad + 2 * vp * b_pad * slots,
            transcendentals=2 * b_pad * slots,
            bytes_accessed=4 * (iw.size + ctx.size + emb_iT.size
                                + emb_o_p.size + b_pad),
        ),
    )(emb_iT, emb_o_p, iw, ctx)

    # -(oloss + nloss).mean(), excluding the padded batch rows.
    return -jnp.mean(per_batch[0, :B])


if __name__ == "__main__":
    key = jax.random.PRNGKey(0)
    vocab_size = 100
    embed_dim = 32
    B, C, NEG = 2, 4, 5

    k1, k2, k3, k4, k5 = jax.random.split(key, 5)

    # Deterministic synthetic Word2Vec embedding tables (padding_idx=0 zeroed).
    emb_i = jax.random.uniform(k1, (vocab_size, embed_dim), jnp.float32,
                               -0.5 / embed_dim, 0.5 / embed_dim)
    emb_o = jax.random.uniform(k2, (vocab_size, embed_dim), jnp.float32,
                               -0.5 / embed_dim, 0.5 / embed_dim)
    emb_i = emb_i.at[0].set(0.0)
    emb_o = emb_o.at[0].set(0.0)

    iword = jax.random.randint(k3, (B,), 0, vocab_size)
    owords = jax.random.randint(k4, (B, C), 0, vocab_size)
    # The PyTorch module draws negatives uniformly at forward time (weights=None
    # path); here they are drawn deterministically in the wrapper.
    nwords = jax.random.randint(k5, (B, C * NEG), 0, vocab_size)

    loss = sgns_forward(iword, owords, nwords, emb_i, emb_o)
    jax.block_until_ready(loss)

    # Pure-JAX reference of the PyTorch forward (same gathered rows, same math).
    iv = emb_i[iword]
    ov = emb_o[owords]
    nv = emb_o[nwords]
    o_dot = jnp.einsum("bce,be->bc", ov, iv)
    n_dot = jnp.einsum("bne,be->bn", nv, iv)
    _ls = lambda x: jnp.minimum(x, 0.0) - jnp.log1p(jnp.exp(-jnp.abs(x)))
    ref = -jnp.mean(jnp.mean(_ls(o_dot), axis=1) + jnp.sum(_ls(-n_dot), axis=1) / C)
    assert abs(float(loss) - float(ref)) < 1e-3, (float(loss), float(ref))

    print("KERNEL_OK")
</pallas_src>

<mosaic_0001>
module attributes {stable_mosaic.version = 11 : i64} {
  func.func @kernel(%arg0: i32, %arg1: memref<32x128xf32, #tpu.memory_space<vmem>>, %arg2: memref<128x32xf32, #tpu.memory_space<vmem>>, %arg3: memref<1x128xi32, #tpu.memory_space<vmem>>, %arg4: memref<24x128xi32, #tpu.memory_space<vmem>>, %arg5: memref<1x128xf32, #tpu.memory_space<vmem>>) attributes {dimension_semantics = [#tpu.dimension_semantics<parallel>], iteration_bounds = array<i64: 1>, scalar_prefetch = 0 : i64, scratch_operands = 0 : i64, tpu.core_type = #tpu.core_type<tc>, window_params = [{pipeline_mode = #tpu.pipeline_mode<synchronous>, transform_indices = @transform_0, window_bounds = array<i64: 32, 128>}, {pipeline_mode = #tpu.pipeline_mode<synchronous>, transform_indices = @transform_1, window_bounds = array<i64: 128, 32>}, {transform_indices = @transform_2, window_bounds = array<i64: 1, 128>}, {transform_indices = @transform_3, window_bounds = array<i64: 24, 128>}, {transform_indices = @transform_4, window_bounds = array<i64: 1, 128>}]} {
    %0 = tpu.iota {dimensions = array<i32: 0>} : vector<128x128xi32>
    %c0 = arith.constant 0 : index
    %c0_0 = arith.constant 0 : index
    %1 = vector.load %arg3[%c0, %c0_0] : memref<1x128xi32, #tpu.memory_space<vmem>>, vector<1x128xi32>
    %2 = vector.broadcast %1 : vector<1x128xi32> to vector<128x128xi32>
    %3 = arith.cmpi eq, %0, %2 : vector<128x128xi32>
    %4 = arith.extui %3 : vector<128x128xi1> to vector<128x128xi32>
    %5 = arith.sitofp %4 : vector<128x128xi32> to vector<128x128xf32>
    %c0_1 = arith.constant 0 : index
    %c0_2 = arith.constant 0 : index
    %6 = vector.load %arg1[%c0_1, %c0_2] : memref<32x128xf32, #tpu.memory_space<vmem>>, vector<32x128xf32>
    %cst = arith.constant dense<0.000000e+00> : vector<32x128xf32>
    %7 = tpu.matmul %6, %5, %cst {dimension_numbers = #tpu.dot_dimension_numbers<[1], [0], [0], [1], [0, 0, 1, 1], [], []>, precision = #tpu.contract_precision<fp32>} : vector<32x128xf32>, vector<128x128xf32>, vector<32x128xf32> -> vector<32x128xf32>
    %c0_3 = arith.constant 0 : index
    %c0_4 = arith.constant 0 : index
    %8 = vector.load %arg2[%c0_3, %c0_4] : memref<128x32xf32, #tpu.memory_space<vmem>>, vector<128x32xf32>
    %cst_5 = arith.constant dense<0.000000e+00> : vector<128x128xf32>
    %9 = tpu.matmul %8, %7, %cst_5 {dimension_numbers = #tpu.dot_dimension_numbers<[1], [0], [0], [1], [0, 0, 1, 1], [], []>, precision = #tpu.contract_precision<fp32>} : vector<128x32xf32>, vector<32x128xf32>, vector<128x128xf32> -> vector<128x128xf32>
    %c0_6 = arith.constant 0 : index
    %c0_7 = arith.constant 0 : index
    %10 = vector.load %arg4[%c0_6, %c0_7] : memref<24x128xi32, #tpu.memory_space<vmem>>, vector<24x128xi32>
    %cst_8 = arith.constant 0.000000e+00 : f32
    %11 = vector.broadcast %cst_8 : f32 to vector<1x128xf32>
    %12 = vector.extract_strided_slice %10 {offsets = [0, 0], sizes = [1, 128], strides = [1, 1]} : vector<24x128xi32> to vector<1x128xi32>
    %13 = vector.broadcast %12 : vector<1x128xi32> to vector<128x128xi32>
    %14 = arith.cmpi eq, %0, %13 : vector<128x128xi32>
    %cst_9 = arith.constant 0.000000e+00 : f32
    %15 = vector.broadcast %cst_9 : f32 to vector<128x128xf32>
    %16 = arith.select %14, %9, %15 : vector<128x128xi1>, vector<128x128xf32>
    %cst_10 = arith.constant dense<0.000000e+00> : vector<128xf32>
    %17 = vector.multi_reduction <add>, %16, %cst_10 [0] : vector<128x128xf32> to vector<128xf32>
    %18 = vector.shape_cast %17 : vector<128xf32> to vector<1x128xf32>
    %cst_11 = arith.constant 0.000000e+00 : f32
    %19 = vector.broadcast %cst_11 : f32 to vector<1x128xf32>
    %20 = arith.minimumf %18, %19 : vector<1x128xf32>
    %21 = math.absf %18 : vector<1x128xf32>
    %cst_12 = arith.constant 0.000000e+00 : f32
    %22 = vector.broadcast %cst_12 : f32 to vector<1x128xf32>
    %23 = arith.subf %22, %21 : vector<1x128xf32>
    %24 = math.exp %23 : vector<1x128xf32>
    %cst_13 = arith.constant 1.000000e+00 : f32
    %25 = vector.broadcast %cst_13 : f32 to vector<1x128xf32>
    %26 = arith.addf %25, %24 : vector<1x128xf32>
    %27 = math.log %26 : vector<1x128xf32>
    %28 = arith.subf %20, %27 : vector<1x128xf32>
    %29 = arith.addf %11, %28 : vector<1x128xf32>
    %30 = vector.extract_strided_slice %10 {offsets = [1, 0], sizes = [1, 128], strides = [1, 1]} : vector<24x128xi32> to vector<1x128xi32>
    %31 = vector.broadcast %30 : vector<1x128xi32> to vector<128x128xi32>
    %32 = arith.cmpi eq, %0, %31 : vector<128x128xi32>
    %cst_14 = arith.constant 0.000000e+00 : f32
    %33 = vector.broadcast %cst_14 : f32 to vector<128x128xf32>
    %34 = arith.select %32, %9, %33 : vector<128x128xi1>, vector<128x128xf32>
    %cst_15 = arith.constant dense<0.000000e+00> : vector<128xf32>
    %35 = vector.multi_reduction <add>, %34, %cst_15 [0] : vector<128x128xf32> to vector<128xf32>
    %36 = vector.shape_cast %35 : vector<128xf32> to vector<1x128xf32>
    %cst_16 = arith.constant 0.000000e+00 : f32
    %37 = vector.broadcast %cst_16 : f32 to vector<1x128xf32>
    %38 = arith.minimumf %36, %37 : vector<1x128xf32>
    %39 = math.absf %36 : vector<1x128xf32>
    %cst_17 = arith.constant 0.000000e+00 : f32
    %40 = vector.broadcast %cst_17 : f32 to vector<1x128xf32>
    %41 = arith.subf %40, %39 : vector<1x128xf32>
    %42 = math.exp %41 : vector<1x128xf32>
    %cst_18 = arith.constant 1.000000e+00 : f32
    %43 = vector.broadcast %cst_18 : f32 to vector<1x128xf32>
    %44 = arith.addf %43, %42 : vector<1x128xf32>
    %45 = math.log %44 : vector<1x128xf32>
    %46 = arith.subf %38, %45 : vector<1x128xf32>
    %47 = arith.addf %29, %46 : vector<1x128xf32>
    %48 = vector.extract_strided_slice %10 {offsets = [2, 0], sizes = [1, 128], strides = [1, 1]} : vector<24x128xi32> to vector<1x128xi32>
    %49 = vector.broadcast %48 : vector<1x128xi32> to vector<128x128xi32>
    %50 = arith.cmpi eq, %0, %49 : vector<128x128xi32>
    %cst_19 = arith.constant 0.000000e+00 : f32
    %51 = vector.broadcast %cst_19 : f32 to vector<128x128xf32>
    %52 = arith.select %50, %9, %51 : vector<128x128xi1>, vector<128x128xf32>
    %cst_20 = arith.constant dense<0.000000e+00> : vector<128xf32>
    %53 = vector.multi_reduction <add>, %52, %cst_20 [0] : vector<128x128xf32> to vector<128xf32>
    %54 = vector.shape_cast %53 : vector<128xf32> to vector<1x128xf32>
    %cst_21 = arith.constant 0.000000e+00 : f32
    %55 = vector.broadcast %cst_21 : f32 to vector<1x128xf32>
    %56 = arith.minimumf %54, %55 : vector<1x128xf32>
    %57 = math.absf %54 : vector<1x128xf32>
    %cst_22 = arith.constant 0.000000e+00 : f32
    %58 = vector.broadcast %cst_22 : f32 to vector<1x128xf32>
    %59 = arith.subf %58, %57 : vector<1x128xf32>
    %60 = math.exp %59 : vector<1x128xf32>
    %cst_23 = arith.constant 1.000000e+00 : f32
    %61 = vector.broadcast %cst_23 : f32 to vector<1x128xf32>
    %62 = arith.addf %61, %60 : vector<1x128xf32>
    %63 = math.log %62 : vector<1x128xf32>
    %64 = arith.subf %56, %63 : vector<1x128xf32>
    %65 = arith.addf %47, %64 : vector<1x128xf32>
    %66 = vector.extract_strided_slice %10 {offsets = [3, 0], sizes = [1, 128], strides = [1, 1]} : vector<24x128xi32> to vector<1x128xi32>
    %67 = vector.broadcast %66 : vector<1x128xi32> to vector<128x128xi32>
    %68 = arith.cmpi eq, %0, %67 : vector<128x128xi32>
    %cst_24 = arith.constant 0.000000e+00 : f32
    %69 = vector.broadcast %cst_24 : f32 to vector<128x128xf32>
    %70 = arith.select %68, %9, %69 : vector<128x128xi1>, vector<128x128xf32>
    %cst_25 = arith.constant dense<0.000000e+00> : vector<128xf32>
    %71 = vector.multi_reduction <add>, %70, %cst_25 [0] : vector<128x128xf32> to vector<128xf32>
    %72 = vector.shape_cast %71 : vector<128xf32> to vector<1x128xf32>
    %cst_26 = arith.constant 0.000000e+00 : f32
    %73 = vector.broadcast %cst_26 : f32 to vector<1x128xf32>
    %74 = arith.minimumf %72, %73 : vector<1x128xf32>
    %75 = math.absf %72 : vector<1x128xf32>
    %cst_27 = arith.constant 0.000000e+00 : f32
    %76 = vector.broadcast %cst_27 : f32 to vector<1x128xf32>
    %77 = arith.subf %76, %75 : vector<1x128xf32>
    %78 = math.exp %77 : vector<1x128xf32>
    %cst_28 = arith.constant 1.000000e+00 : f32
    %79 = vector.broadcast %cst_28 : f32 to vector<1x128xf32>
    %80 = arith.addf %79, %78 : vector<1x128xf32>
    %81 = math.log %80 : vector<1x128xf32>
    %82 = arith.subf %74, %81 : vector<1x128xf32>
    %83 = arith.addf %65, %82 : vector<1x128xf32>
    %84 = vector.extract_strided_slice %10 {offsets = [4, 0], sizes = [1, 128], strides = [1, 1]} : vector<24x128xi32> to vector<1x128xi32>
    %85 = vector.broadcast %84 : vector<1x128xi32> to vector<128x128xi32>
    %86 = arith.cmpi eq, %0, %85 : vector<128x128xi32>
    %cst_29 = arith.constant 0.000000e+00 : f32
    %87 = vector.broadcast %cst_29 : f32 to vector<128x128xf32>
    %88 = arith.select %86, %9, %87 : vector<128x128xi1>, vector<128x128xf32>
    %cst_30 = arith.constant dense<0.000000e+00> : vector<128xf32>
    %89 = vector.multi_reduction <add>, %88, %cst_30 [0] : vector<128x128xf32> to vector<128xf32>
    %90 = vector.shape_cast %89 : vector<128xf32> to vector<1x128xf32>
    %cst_31 = arith.constant 0.000000e+00 : f32
    %91 = vector.broadcast %cst_31 : f32 to vector<1x128xf32>
    %92 = arith.subf %91, %90 : vector<1x128xf32>
    %cst_32 = arith.constant 0.000000e+00 : f32
    %93 = vector.broadcast %cst_32 : f32 to vector<1x128xf32>
    %94 = arith.minimumf %92, %93 : vector<1x128xf32>
    %95 = math.absf %92 : vector<1x128xf32>
    %cst_33 = arith.constant 0.000000e+00 : f32
    %96 = vector.broadcast %cst_33 : f32 to vector<1x128xf32>
    %97 = arith.subf %96, %95 : vector<1x128xf32>
    %98 = math.exp %97 : vector<1x128xf32>
    %cst_34 = arith.constant 1.000000e+00 : f32
    %99 = vector.broadcast %cst_34 : f32 to vector<1x128xf32>
    %100 = arith.addf %99, %98 : vector<1x128xf32>
    %101 = math.log %100 : vector<1x128xf32>
    %102 = arith.subf %94, %101 : vector<1x128xf32>
    %103 = arith.addf %83, %102 : vector<1x128xf32>
    %104 = vector.extract_strided_slice %10 {offsets = [5, 0], sizes = [1, 128], strides = [1, 1]} : vector<24x128xi32> to vector<1x128xi32>
    %105 = vector.broadcast %104 : vector<1x128xi32> to vector<128x128xi32>
    %106 = arith.cmpi eq, %0, %105 : vector<128x128xi32>
    %cst_35 = arith.constant 0.000000e+00 : f32
    %107 = vector.broadcast %cst_35 : f32 to vector<128x128xf32>
    %108 = arith.select %106, %9, %107 : vector<128x128xi1>, vector<128x128xf32>
    %cst_36 = arith.constant dense<0.000000e+00> : vector<128xf32>
    %109 = vector.multi_reduction <add>, %108, %cst_36 [0] : vector<128x128xf32> to vector<128xf32>
    %110 = vector.shape_cast %109 : vector<128xf32> to vector<1x128xf32>
    %cst_37 = arith.constant 0.000000e+00 : f32
    %111 = vector.broadcast %cst_37 : f32 to vector<1x128xf32>
    %112 = arith.subf %111, %110 : vector<1x128xf32>
    %cst_38 = arith.constant 0.000000e+00 : f32
    %113 = vector.broadcast %cst_38 : f32 to vector<1x128xf32>
    %114 = arith.minimumf %112, %113 : vector<1x128xf32>
    %115 = math.absf %112 : vector<1x128xf32>
    %cst_39 = arith.constant 0.000000e+00 : f32
    %116 = vector.broadcast %cst_39 : f32 to vector<1x128xf32>
    %117 = arith.subf %116, %115 : vector<1x128xf32>
    %118 = math.exp %117 : vector<1x128xf32>
    %cst_40 = arith.constant 1.000000e+00 : f32
    %119 = vector.broadcast %cst_40 : f32 to vector<1x128xf32>
    %120 = arith.addf %119, %118 : vector<1x128xf32>
    %121 = math.log %120 : vector<1x128xf32>
    %122 = arith.subf %114, %121 : vector<1x128xf32>
    %123 = arith.addf %103, %122 : vector<1x128xf32>
    %124 = vector.extract_strided_slice %10 {offsets = [6, 0], sizes = [1, 128], strides = [1, 1]} : vector<24x128xi32> to vector<1x128xi32>
    %125 = vector.broadcast %124 : vector<1x128xi32> to vector<128x128xi32>
    %126 = arith.cmpi eq, %0, %125 : vector<128x128xi32>
    %cst_41 = arith.constant 0.000000e+00 : f32
    %127 = vector.broadcast %cst_41 : f32 to vector<128x128xf32>
    %128 = arith.select %126, %9, %127 : vector<128x128xi1>, vector<128x128xf32>
    %cst_42 = arith.constant dense<0.000000e+00> : vector<128xf32>
    %129 = vector.multi_reduction <add>, %128, %cst_42 [0] : vector<128x128xf32> to vector<128xf32>
    %130 = vector.shape_cast %129 : vector<128xf32> to vector<1x128xf32>
    %cst_43 = arith.constant 0.000000e+00 : f32
    %131 = vector.broadcast %cst_43 : f32 to vector<1x128xf32>
    %132 = arith.subf %131, %130 : vector<1x128xf32>
    %cst_44 = arith.constant 0.000000e+00 : f32
    %133 = vector.broadcast %cst_44 : f32 to vector<1x128xf32>
    %134 = arith.minimumf %132, %133 : vector<1x128xf32>
    %135 = math.absf %132 : vector<1x128xf32>
    %cst_45 = arith.constant 0.000000e+00 : f32
    %136 = vector.broadcast %cst_45 : f32 to vector<1x128xf32>
    %137 = arith.subf %136, %135 : vector<1x128xf32>
    %138 = math.exp %137 : vector<1x128xf32>
    %cst_46 = arith.constant 1.000000e+00 : f32
    %139 = vector.broadcast %cst_46 : f32 to vector<1x128xf32>
    %140 = arith.addf %139, %138 : vector<1x128xf32>
    %141 = math.log %140 : vector<1x128xf32>
    %142 = arith.subf %134, %141 : vector<1x128xf32>
    %143 = arith.addf %123, %142 : vector<1x128xf32>
    %144 = vector.extract_strided_slice %10 {offsets = [7, 0], sizes = [1, 128], strides = [1, 1]} : vector<24x128xi32> to vector<1x128xi32>
    %145 = vector.broadcast %144 : vector<1x128xi32> to vector<128x128xi32>
    %146 = arith.cmpi eq, %0, %145 : vector<128x128xi32>
    %cst_47 = arith.constant 0.000000e+00 : f32
    %147 = vector.broadcast %cst_47 : f32 to vector<128x128xf32>
    %148 = arith.select %146, %9, %147 : vector<128x128xi1>, vector<128x128xf32>
    %cst_48 = arith.constant dense<0.000000e+00> : vector<128xf32>
    %149 = vector.multi_reduction <add>, %148, %cst_48 [0] : vector<128x128xf32> to vector<128xf32>
    %150 = vector.shape_cast %149 : vector<128xf32> to vector<1x128xf32>
    %cst_49 = arith.constant 0.000000e+00 : f32
    %151 = vector.broadcast %cst_49 : f32 to vector<1x128xf32>
    %152 = arith.subf %151, %150 : vector<1x128xf32>
    %cst_50 = arith.constant 0.000000e+00 : f32
    %153 = vector.broadcast %cst_50 : f32 to vector<1x128xf32>
    %154 = arith.minimumf %152, %153 : vector<1x128xf32>
    %155 = math.absf %152 : vector<1x128xf32>
    %cst_51 = arith.constant 0.000000e+00 : f32
    %156 = vector.broadcast %cst_51 : f32 to vector<1x128xf32>
    %157 = arith.subf %156, %155 : vector<1x128xf32>
    %158 = math.exp %157 : vector<1x128xf32>
    %cst_52 = arith.constant 1.000000e+00 : f32
    %159 = vector.broadcast %cst_52 : f32 to vector<1x128xf32>
    %160 = arith.addf %159, %158 : vector<1x128xf32>
    %161 = math.log %160 : vector<1x128xf32>
    %162 = arith.subf %154, %161 : vector<1x128xf32>
    %163 = arith.addf %143, %162 : vector<1x128xf32>
    %164 = vector.extract_strided_slice %10 {offsets = [8, 0], sizes = [1, 128], strides = [1, 1]} : vector<24x128xi32> to vector<1x128xi32>
    %165 = vector.broadcast %164 : vector<1x128xi32> to vector<128x128xi32>
    %166 = arith.cmpi eq, %0, %165 : vector<128x128xi32>
    %cst_53 = arith.constant 0.000000e+00 : f32
    %167 = vector.broadcast %cst_53 : f32 to vector<128x128xf32>
    %168 = arith.select %166, %9, %167 : vector<128x128xi1>, vector<128x128xf32>
    %cst_54 = arith.constant dense<0.000000e+00> : vector<128xf32>
    %169 = vector.multi_reduction <add>, %168, %cst_54 [0] : vector<128x128xf32> to vector<128xf32>
    %170 = vector.shape_cast %169 : vector<128xf32> to vector<1x128xf32>
    %cst_55 = arith.constant 0.000000e+00 : f32
    %171 = vector.broadcast %cst_55 : f32 to vector<1x128xf32>
    %172 = arith.subf %171, %170 : vector<1x128xf32>
    %cst_56 = arith.constant 0.000000e+00 : f32
    %173 = vector.broadcast %cst_56 : f32 to vector<1x128xf32>
    %174 = arith.minimumf %172, %173 : vector<1x128xf32>
    %175 = math.absf %172 : vector<1x128xf32>
    %cst_57 = arith.constant 0.000000e+00 : f32
    %176 = vector.broadcast %cst_57 : f32 to vector<1x128xf32>
    %177 = arith.subf %176, %175 : vector<1x128xf32>
    %178 = math.exp %177 : vector<1x128xf32>
    %cst_58 = arith.constant 1.000000e+00 : f32
    %179 = vector.broadcast %cst_58 : f32 to vector<1x128xf32>
    %180 = arith.addf %179, %178 : vector<1x128xf32>
    %181 = math.log %180 : vector<1x128xf32>
    %182 = arith.subf %174, %181 : vector<1x128xf32>
    %183 = arith.addf %163, %182 : vector<1x128xf32>
    %184 = vector.extract_strided_slice %10 {offsets = [9, 0], sizes = [1, 128], strides = [1, 1]} : vector<24x128xi32> to vector<1x128xi32>
    %185 = vector.broadcast %184 : vector<1x128xi32> to vector<128x128xi32>
    %186 = arith.cmpi eq, %0, %185 : vector<128x128xi32>
    %cst_59 = arith.constant 0.000000e+00 : f32
    %187 = vector.broadcast %cst_59 : f32 to vector<128x128xf32>
    %188 = arith.select %186, %9, %187 : vector<128x128xi1>, vector<128x128xf32>
    %cst_60 = arith.constant dense<0.000000e+00> : vector<128xf32>
    %189 = vector.multi_reduction <add>, %188, %cst_60 [0] : vector<128x128xf32> to vector<128xf32>
    %190 = vector.shape_cast %189 : vector<128xf32> to vector<1x128xf32>
    %cst_61 = arith.constant 0.000000e+00 : f32
    %191 = vector.broadcast %cst_61 : f32 to vector<1x128xf32>
    %192 = arith.subf %191, %190 : vector<1x128xf32>
    %cst_62 = arith.constant 0.000000e+00 : f32
    %193 = vector.broadcast %cst_62 : f32 to vector<1x128xf32>
    %194 = arith.minimumf %192, %193 : vector<1x128xf32>
    %195 = math.absf %192 : vector<1x128xf32>
    %cst_63 = arith.constant 0.000000e+00 : f32
    %196 = vector.broadcast %cst_63 : f32 to vector<1x128xf32>
    %197 = arith.subf %196, %195 : vector<1x128xf32>
    %198 = math.exp %197 : vector<1x128xf32>
    %cst_64 = arith.constant 1.000000e+00 : f32
    %199 = vector.broadcast %cst_64 : f32 to vector<1x128xf32>
    %200 = arith.addf %199, %198 : vector<1x128xf32>
    %201 = math.log %200 : vector<1x128xf32>
    %202 = arith.subf %194, %201 : vector<1x128xf32>
    %203 = arith.addf %183, %202 : vector<1x128xf32>
    %204 = vector.extract_strided_slice %10 {offsets = [10, 0], sizes = [1, 128], strides = [1, 1]} : vector<24x128xi32> to vector<1x128xi32>
    %205 = vector.broadcast %204 : vector<1x128xi32> to vector<128x128xi32>
    %206 = arith.cmpi eq, %0, %205 : vector<128x128xi32>
    %cst_65 = arith.constant 0.000000e+00 : f32
    %207 = vector.broadcast %cst_65 : f32 to vector<128x128xf32>
    %208 = arith.select %206, %9, %207 : vector<128x128xi1>, vector<128x128xf32>
    %cst_66 = arith.constant dense<0.000000e+00> : vector<128xf32>
    %209 = vector.multi_reduction <add>, %208, %cst_66 [0] : vector<128x128xf32> to vector<128xf32>
    %210 = vector.shape_cast %209 : vector<128xf32> to vector<1x128xf32>
    %cst_67 = arith.constant 0.000000e+00 : f32
    %211 = vector.broadcast %cst_67 : f32 to vector<1x128xf32>
    %212 = arith.subf %211, %210 : vector<1x128xf32>
    %cst_68 = arith.constant 0.000000e+00 : f32
    %213 = vector.broadcast %cst_68 : f32 to vector<1x128xf32>
    %214 = arith.minimumf %212, %213 : vector<1x128xf32>
    %215 = math.absf %212 : vector<1x128xf32>
    %cst_69 = arith.constant 0.000000e+00 : f32
    %216 = vector.broadcast %cst_69 : f32 to vector<1x128xf32>
    %217 = arith.subf %216, %215 : vector<1x128xf32>
    %218 = math.exp %217 : vector<1x128xf32>
    %cst_70 = arith.constant 1.000000e+00 : f32
    %219 = vector.broadcast %cst_70 : f32 to vector<1x128xf32>
    %220 = arith.addf %219, %218 : vector<1x128xf32>
    %221 = math.log %220 : vector<1x128xf32>
    %222 = arith.subf %214, %221 : vector<1x128xf32>
    %223 = arith.addf %203, %222 : vector<1x128xf32>
    %224 = vector.extract_strided_slice %10 {offsets = [11, 0], sizes = [1, 128], strides = [1, 1]} : vector<24x128xi32> to vector<1x128xi32>
    %225 = vector.broadcast %224 : vector<1x128xi32> to vector<128x128xi32>
    %226 = arith.cmpi eq, %0, %225 : vector<128x128xi32>
    %cst_71 = arith.constant 0.000000e+00 : f32
    %227 = vector.broadcast %cst_71 : f32 to vector<128x128xf32>
    %228 = arith.select %226, %9, %227 : vector<128x128xi1>, vector<128x128xf32>
    %cst_72 = arith.constant dense<0.000000e+00> : vector<128xf32>
    %229 = vector.multi_reduction <add>, %228, %cst_72 [0] : vector<128x128xf32> to vector<128xf32>
    %230 = vector.shape_cast %229 : vector<128xf32> to vector<1x128xf32>
    %cst_73 = arith.constant 0.000000e+00 : f32
    %231 = vector.broadcast %cst_73 : f32 to vector<1x128xf32>
    %232 = arith.subf %231, %230 : vector<1x128xf32>
    %cst_74 = arith.constant 0.000000e+00 : f32
    %233 = vector.broadcast %cst_74 : f32 to vector<1x128xf32>
    %234 = arith.minimumf %232, %233 : vector<1x128xf32>
    %235 = math.absf %232 : vector<1x128xf32>
    %cst_75 = arith.constant 0.000000e+00 : f32
    %236 = vector.broadcast %cst_75 : f32 to vector<1x128xf32>
    %237 = arith.subf %236, %235 : vector<1x128xf32>
    %238 = math.exp %237 : vector<1x128xf32>
    %cst_76 = arith.constant 1.000000e+00 : f32
    %239 = vector.broadcast %cst_76 : f32 to vector<1x128xf32>
    %240 = arith.addf %239, %238 : vector<1x128xf32>
    %241 = math.log %240 : vector<1x128xf32>
    %242 = arith.subf %234, %241 : vector<1x128xf32>
    %243 = arith.addf %223, %242 : vector<1x128xf32>
    %244 = vector.extract_strided_slice %10 {offsets = [12, 0], sizes = [1, 128], strides = [1, 1]} : vector<24x128xi32> to vector<1x128xi32>
    %245 = vector.broadcast %244 : vector<1x128xi32> to vector<128x128xi32>
    %246 = arith.cmpi eq, %0, %245 : vector<128x128xi32>
    %cst_77 = arith.constant 0.000000e+00 : f32
    %247 = vector.broadcast %cst_77 : f32 to vector<128x128xf32>
    %248 = arith.select %246, %9, %247 : vector<128x128xi1>, vector<128x128xf32>
    %cst_78 = arith.constant dense<0.000000e+00> : vector<128xf32>
    %249 = vector.multi_reduction <add>, %248, %cst_78 [0] : vector<128x128xf32> to vector<128xf32>
    %250 = vector.shape_cast %249 : vector<128xf32> to vector<1x128xf32>
    %cst_79 = arith.constant 0.000000e+00 : f32
    %251 = vector.broadcast %cst_79 : f32 to vector<1x128xf32>
    %252 = arith.subf %251, %250 : vector<1x128xf32>
    %cst_80 = arith.constant 0.000000e+00 : f32
    %253 = vector.broadcast %cst_80 : f32 to vector<1x128xf32>
    %254 = arith.minimumf %252, %253 : vector<1x128xf32>
    %255 = math.absf %252 : vector<1x128xf32>
    %cst_81 = arith.constant 0.000000e+00 : f32
    %256 = vector.broadcast %cst_81 : f32 to vector<1x128xf32>
    %257 = arith.subf %256, %255 : vector<1x128xf32>
    %258 = math.exp %257 : vector<1x128xf32>
    %cst_82 = arith.constant 1.000000e+00 : f32
    %259 = vector.broadcast %cst_82 : f32 to vector<1x128xf32>
    %260 = arith.addf %259, %258 : vector<1x128xf32>
    %261 = math.log %260 : vector<1x128xf32>
    %262 = arith.subf %254, %261 : vector<1x128xf32>
    %263 = arith.addf %243, %262 : vector<1x128xf32>
    %264 = vector.extract_strided_slice %10 {offsets = [13, 0], sizes = [1, 128], strides = [1, 1]} : vector<24x128xi32> to vector<1x128xi32>
    %265 = vector.broadcast %264 : vector<1x128xi32> to vector<128x128xi32>
    %266 = arith.cmpi eq, %0, %265 : vector<128x128xi32>
    %cst_83 = arith.constant 0.000000e+00 : f32
    %267 = vector.broadcast %cst_83 : f32 to vector<128x128xf32>
    %268 = arith.select %266, %9, %267 : vector<128x128xi1>, vector<128x128xf32>
    %cst_84 = arith.constant dense<0.000000e+00> : vector<128xf32>
    %269 = vector.multi_reduction <add>, %268, %cst_84 [0] : vector<128x128xf32> to vector<128xf32>
    %270 = vector.shape_cast %269 : vector<128xf32> to vector<1x128xf32>
    %cst_85 = arith.constant 0.000000e+00 : f32
    %271 = vector.broadcast %cst_85 : f32 to vector<1x128xf32>
    %272 = arith.subf %271, %270 : vector<1x128xf32>
    %cst_86 = arith.constant 0.000000e+00 : f32
    %273 = vector.broadcast %cst_86 : f32 to vector<1x128xf32>
    %274 = arith.minimumf %272, %273 : vector<1x128xf32>
    %275 = math.absf %272 : vector<1x128xf32>
    %cst_87 = arith.constant 0.000000e+00 : f32
    %276 = vector.broadcast %cst_87 : f32 to vector<1x128xf32>
    %277 = arith.subf %276, %275 : vector<1x128xf32>
    %278 = math.exp %277 : vector<1x128xf32>
    %cst_88 = arith.constant 1.000000e+00 : f32
    %279 = vector.broadcast %cst_88 : f32 to vector<1x128xf32>
    %280 = arith.addf %279, %278 : vector<1x128xf32>
    %281 = math.log %280 : vector<1x128xf32>
    %282 = arith.subf %274, %281 : vector<1x128xf32>
    %283 = arith.addf %263, %282 : vector<1x128xf32>
    %284 = vector.extract_strided_slice %10 {offsets = [14, 0], sizes = [1, 128], strides = [1, 1]} : vector<24x128xi32> to vector<1x128xi32>
    %285 = vector.broadcast %284 : vector<1x128xi32> to vector<128x128xi32>
    %286 = arith.cmpi eq, %0, %285 : vector<128x128xi32>
    %cst_89 = arith.constant 0.000000e+00 : f32
    %287 = vector.broadcast %cst_89 : f32 to vector<128x128xf32>
    %288 = arith.select %286, %9, %287 : vector<128x128xi1>, vector<128x128xf32>
    %cst_90 = arith.constant dense<0.000000e+00> : vector<128xf32>
    %289 = vector.multi_reduction <add>, %288, %cst_90 [0] : vector<128x128xf32> to vector<128xf32>
    %290 = vector.shape_cast %289 : vector<128xf32> to vector<1x128xf32>
    %cst_91 = arith.constant 0.000000e+00 : f32
    %291 = vector.broadcast %cst_91 : f32 to vector<1x128xf32>
    %292 = arith.subf %291, %290 : vector<1x128xf32>
    %cst_92 = arith.constant 0.000000e+00 : f32
    %293 = vector.broadcast %cst_92 : f32 to vector<1x128xf32>
    %294 = arith.minimumf %292, %293 : vector<1x128xf32>
    %295 = math.absf %292 : vector<1x128xf32>
    %cst_93 = arith.constant 0.000000e+00 : f32
    %296 = vector.broadcast %cst_93 : f32 to vector<1x128xf32>
    %297 = arith.subf %296, %295 : vector<1x128xf32>
    %298 = math.exp %297 : vector<1x128xf32>
    %cst_94 = arith.constant 1.000000e+00 : f32
    %299 = vector.broadcast %cst_94 : f32 to vector<1x128xf32>
    %300 = arith.addf %299, %298 : vector<1x128xf32>
    %301 = math.log %300 : vector<1x128xf32>
    %302 = arith.subf %294, %301 : vector<1x128xf32>
    %303 = arith.addf %283, %302 : vector<1x128xf32>
    %304 = vector.extract_strided_slice %10 {offsets = [15, 0], sizes = [1, 128], strides = [1, 1]} : vector<24x128xi32> to vector<1x128xi32>
    %305 = vector.broadcast %304 : vector<1x128xi32> to vector<128x128xi32>
    %306 = arith.cmpi eq, %0, %305 : vector<128x128xi32>
    %cst_95 = arith.constant 0.000000e+00 : f32
    %307 = vector.broadcast %cst_95 : f32 to vector<128x128xf32>
    %308 = arith.select %306, %9, %307 : vector<128x128xi1>, vector<128x128xf32>
    %cst_96 = arith.constant dense<0.000000e+00> : vector<128xf32>
    %309 = vector.multi_reduction <add>, %308, %cst_96 [0] : vector<128x128xf32> to vector<128xf32>
    %310 = vector.shape_cast %309 : vector<128xf32> to vector<1x128xf32>
    %cst_97 = arith.constant 0.000000e+00 : f32
    %311 = vector.broadcast %cst_97 : f32 to vector<1x128xf32>
    %312 = arith.subf %311, %310 : vector<1x128xf32>
    %cst_98 = arith.constant 0.000000e+00 : f32
    %313 = vector.broadcast %cst_98 : f32 to vector<1x128xf32>
    %314 = arith.minimumf %312, %313 : vector<1x128xf32>
    %315 = math.absf %312 : vector<1x128xf32>
    %cst_99 = arith.constant 0.000000e+00 : f32
    %316 = vector.broadcast %cst_99 : f32 to vector<1x128xf32>
    %317 = arith.subf %316, %315 : vector<1x128xf32>
    %318 = math.exp %317 : vector<1x128xf32>
    %cst_100 = arith.constant 1.000000e+00 : f32
    %319 = vector.broadcast %cst_100 : f32 to vector<1x128xf32>
    %320 = arith.addf %319, %318 : vector<1x128xf32>
    %321 = math.log %320 : vector<1x128xf32>
    %322 = arith.subf %314, %321 : vector<1x128xf32>
    %323 = arith.addf %303, %322 : vector<1x128xf32>
    %324 = vector.extract_strided_slice %10 {offsets = [16, 0], sizes = [1, 128], strides = [1, 1]} : vector<24x128xi32> to vector<1x128xi32>
    %325 = vector.broadcast %324 : vector<1x128xi32> to vector<128x128xi32>
    %326 = arith.cmpi eq, %0, %325 : vector<128x128xi32>
    %cst_101 = arith.constant 0.000000e+00 : f32
    %327 = vector.broadcast %cst_101 : f32 to vector<128x128xf32>
    %328 = arith.select %326, %9, %327 : vector<128x128xi1>, vector<128x128xf32>
    %cst_102 = arith.constant dense<0.000000e+00> : vector<128xf32>
    %329 = vector.multi_reduction <add>, %328, %cst_102 [0] : vector<128x128xf32> to vector<128xf32>
    %330 = vector.shape_cast %329 : vector<128xf32> to vector<1x128xf32>
    %cst_103 = arith.constant 0.000000e+00 : f32
    %331 = vector.broadcast %cst_103 : f32 to vector<1x128xf32>
    %332 = arith.subf %331, %330 : vector<1x128xf32>
    %cst_104 = arith.constant 0.000000e+00 : f32
    %333 = vector.broadcast %cst_104 : f32 to vector<1x128xf32>
    %334 = arith.minimumf %332, %333 : vector<1x128xf32>
    %335 = math.absf %332 : vector<1x128xf32>
    %cst_105 = arith.constant 0.000000e+00 : f32
    %336 = vector.broadcast %cst_105 : f32 to vector<1x128xf32>
    %337 = arith.subf %336, %335 : vector<1x128xf32>
    %338 = math.exp %337 : vector<1x128xf32>
    %cst_106 = arith.constant 1.000000e+00 : f32
    %339 = vector.broadcast %cst_106 : f32 to vector<1x128xf32>
    %340 = arith.addf %339, %338 : vector<1x128xf32>
    %341 = math.log %340 : vector<1x128xf32>
    %342 = arith.subf %334, %341 : vector<1x128xf32>
    %343 = arith.addf %323, %342 : vector<1x128xf32>
    %344 = vector.extract_strided_slice %10 {offsets = [17, 0], sizes = [1, 128], strides = [1, 1]} : vector<24x128xi32> to vector<1x128xi32>
    %345 = vector.broadcast %344 : vector<1x128xi32> to vector<128x128xi32>
    %346 = arith.cmpi eq, %0, %345 : vector<128x128xi32>
    %cst_107 = arith.constant 0.000000e+00 : f32
    %347 = vector.broadcast %cst_107 : f32 to vector<128x128xf32>
    %348 = arith.select %346, %9, %347 : vector<128x128xi1>, vector<128x128xf32>
    %cst_108 = arith.constant dense<0.000000e+00> : vector<128xf32>
    %349 = vector.multi_reduction <add>, %348, %cst_108 [0] : vector<128x128xf32> to vector<128xf32>
    %350 = vector.shape_cast %349 : vector<128xf32> to vector<1x128xf32>
    %cst_109 = arith.constant 0.000000e+00 : f32
    %351 = vector.broadcast %cst_109 : f32 to vector<1x128xf32>
    %352 = arith.subf %351, %350 : vector<1x128xf32>
    %cst_110 = arith.constant 0.000000e+00 : f32
    %353 = vector.broadcast %cst_110 : f32 to vector<1x128xf32>
    %354 = arith.minimumf %352, %353 : vector<1x128xf32>
    %355 = math.absf %352 : vector<1x128xf32>
    %cst_111 = arith.constant 0.000000e+00 : f32
    %356 = vector.broadcast %cst_111 : f32 to vector<1x128xf32>
    %357 = arith.subf %356, %355 : vector<1x128xf32>
    %358 = math.exp %357 : vector<1x128xf32>
    %cst_112 = arith.constant 1.000000e+00 : f32
    %359 = vector.broadcast %cst_112 : f32 to vector<1x128xf32>
    %360 = arith.addf %359, %358 : vector<1x128xf32>
    %361 = math.log %360 : vector<1x128xf32>
    %362 = arith.subf %354, %361 : vector<1x128xf32>
    %363 = arith.addf %343, %362 : vector<1x128xf32>
    %364 = vector.extract_strided_slice %10 {offsets = [18, 0], sizes = [1, 128], strides = [1, 1]} : vector<24x128xi32> to vector<1x128xi32>
    %365 = vector.broadcast %364 : vector<1x128xi32> to vector<128x128xi32>
    %366 = arith.cmpi eq, %0, %365 : vector<128x128xi32>
    %cst_113 = arith.constant 0.000000e+00 : f32
    %367 = vector.broadcast %cst_113 : f32 to vector<128x128xf32>
    %368 = arith.select %366, %9, %367 : vector<128x128xi1>, vector<128x128xf32>
    %cst_114 = arith.constant dense<0.000000e+00> : vector<128xf32>
    %369 = vector.multi_reduction <add>, %368, %cst_114 [0] : vector<128x128xf32> to vector<128xf32>
    %370 = vector.shape_cast %369 : vector<128xf32> to vector<1x128xf32>
    %cst_115 = arith.constant 0.000000e+00 : f32
    %371 = vector.broadcast %cst_115 : f32 to vector<1x128xf32>
    %372 = arith.subf %371, %370 : vector<1x128xf32>
    %cst_116 = arith.constant 0.000000e+00 : f32
    %373 = vector.broadcast %cst_116 : f32 to vector<1x128xf32>
    %374 = arith.minimumf %372, %373 : vector<1x128xf32>
    %375 = math.absf %372 : vector<1x128xf32>
    %cst_117 = arith.constant 0.000000e+00 : f32
    %376 = vector.broadcast %cst_117 : f32 to vector<1x128xf32>
    %377 = arith.subf %376, %375 : vector<1x128xf32>
    %378 = math.exp %377 : vector<1x128xf32>
    %cst_118 = arith.constant 1.000000e+00 : f32
    %379 = vector.broadcast %cst_118 : f32 to vector<1x128xf32>
    %380 = arith.addf %379, %378 : vector<1x128xf32>
    %381 = math.log %380 : vector<1x128xf32>
    %382 = arith.subf %374, %381 : vector<1x128xf32>
    %383 = arith.addf %363, %382 : vector<1x128xf32>
    %384 = vector.extract_strided_slice %10 {offsets = [19, 0], sizes = [1, 128], strides = [1, 1]} : vector<24x128xi32> to vector<1x128xi32>
    %385 = vector.broadcast %384 : vector<1x128xi32> to vector<128x128xi32>
    %386 = arith.cmpi eq, %0, %385 : vector<128x128xi32>
    %cst_119 = arith.constant 0.000000e+00 : f32
    %387 = vector.broadcast %cst_119 : f32 to vector<128x128xf32>
    %388 = arith.select %386, %9, %387 : vector<128x128xi1>, vector<128x128xf32>
    %cst_120 = arith.constant dense<0.000000e+00> : vector<128xf32>
    %389 = vector.multi_reduction <add>, %388, %cst_120 [0] : vector<128x128xf32> to vector<128xf32>
    %390 = vector.shape_cast %389 : vector<128xf32> to vector<1x128xf32>
    %cst_121 = arith.constant 0.000000e+00 : f32
    %391 = vector.broadcast %cst_121 : f32 to vector<1x128xf32>
    %392 = arith.subf %391, %390 : vector<1x128xf32>
    %cst_122 = arith.constant 0.000000e+00 : f32
    %393 = vector.broadcast %cst_122 : f32 to vector<1x128xf32>
    %394 = arith.minimumf %392, %393 : vector<1x128xf32>
    %395 = math.absf %392 : vector<1x128xf32>
    %cst_123 = arith.constant 0.000000e+00 : f32
    %396 = vector.broadcast %cst_123 : f32 to vector<1x128xf32>
    %397 = arith.subf %396, %395 : vector<1x128xf32>
    %398 = math.exp %397 : vector<1x128xf32>
    %cst_124 = arith.constant 1.000000e+00 : f32
    %399 = vector.broadcast %cst_124 : f32 to vector<1x128xf32>
    %400 = arith.addf %399, %398 : vector<1x128xf32>
    %401 = math.log %400 : vector<1x128xf32>
    %402 = arith.subf %394, %401 : vector<1x128xf32>
    %403 = arith.addf %383, %402 : vector<1x128xf32>
    %404 = vector.extract_strided_slice %10 {offsets = [20, 0], sizes = [1, 128], strides = [1, 1]} : vector<24x128xi32> to vector<1x128xi32>
    %405 = vector.broadcast %404 : vector<1x128xi32> to vector<128x128xi32>
    %406 = arith.cmpi eq, %0, %405 : vector<128x128xi32>
    %cst_125 = arith.constant 0.000000e+00 : f32
    %407 = vector.broadcast %cst_125 : f32 to vector<128x128xf32>
    %408 = arith.select %406, %9, %407 : vector<128x128xi1>, vector<128x128xf32>
    %cst_126 = arith.constant dense<0.000000e+00> : vector<128xf32>
    %409 = vector.multi_reduction <add>, %408, %cst_126 [0] : vector<128x128xf32> to vector<128xf32>
    %410 = vector.shape_cast %409 : vector<128xf32> to vector<1x128xf32>
    %cst_127 = arith.constant 0.000000e+00 : f32
    %411 = vector.broadcast %cst_127 : f32 to vector<1x128xf32>
    %412 = arith.subf %411, %410 : vector<1x128xf32>
    %cst_128 = arith.constant 0.000000e+00 : f32
    %413 = vector.broadcast %cst_128 : f32 to vector<1x128xf32>
    %414 = arith.minimumf %412, %413 : vector<1x128xf32>
    %415 = math.absf %412 : vector<1x128xf32>
    %cst_129 = arith.constant 0.000000e+00 : f32
    %416 = vector.broadcast %cst_129 : f32 to vector<1x128xf32>
    %417 = arith.subf %416, %415 : vector<1x128xf32>
    %418 = math.exp %417 : vector<1x128xf32>
    %cst_130 = arith.constant 1.000000e+00 : f32
    %419 = vector.broadcast %cst_130 : f32 to vector<1x128xf32>
    %420 = arith.addf %419, %418 : vector<1x128xf32>
    %421 = math.log %420 : vector<1x128xf32>
    %422 = arith.subf %414, %421 : vector<1x128xf32>
    %423 = arith.addf %403, %422 : vector<1x128xf32>
    %424 = vector.extract_strided_slice %10 {offsets = [21, 0], sizes = [1, 128], strides = [1, 1]} : vector<24x128xi32> to vector<1x128xi32>
    %425 = vector.broadcast %424 : vector<1x128xi32> to vector<128x128xi32>
    %426 = arith.cmpi eq, %0, %425 : vector<128x128xi32>
    %cst_131 = arith.constant 0.000000e+00 : f32
    %427 = vector.broadcast %cst_131 : f32 to vector<128x128xf32>
    %428 = arith.select %426, %9, %427 : vector<128x128xi1>, vector<128x128xf32>
    %cst_132 = arith.constant dense<0.000000e+00> : vector<128xf32>
    %429 = vector.multi_reduction <add>, %428, %cst_132 [0] : vector<128x128xf32> to vector<128xf32>
    %430 = vector.shape_cast %429 : vector<128xf32> to vector<1x128xf32>
    %cst_133 = arith.constant 0.000000e+00 : f32
    %431 = vector.broadcast %cst_133 : f32 to vector<1x128xf32>
    %432 = arith.subf %431, %430 : vector<1x128xf32>
    %cst_134 = arith.constant 0.000000e+00 : f32
    %433 = vector.broadcast %cst_134 : f32 to vector<1x128xf32>
    %434 = arith.minimumf %432, %433 : vector<1x128xf32>
    %435 = math.absf %432 : vector<1x128xf32>
    %cst_135 = arith.constant 0.000000e+00 : f32
    %436 = vector.broadcast %cst_135 : f32 to vector<1x128xf32>
    %437 = arith.subf %436, %435 : vector<1x128xf32>
    %438 = math.exp %437 : vector<1x128xf32>
    %cst_136 = arith.constant 1.000000e+00 : f32
    %439 = vector.broadcast %cst_136 : f32 to vector<1x128xf32>
    %440 = arith.addf %439, %438 : vector<1x128xf32>
    %441 = math.log %440 : vector<1x128xf32>
    %442 = arith.subf %434, %441 : vector<1x128xf32>
    %443 = arith.addf %423, %442 : vector<1x128xf32>
    %444 = vector.extract_strided_slice %10 {offsets = [22, 0], sizes = [1, 128], strides = [1, 1]} : vector<24x128xi32> to vector<1x128xi32>
    %445 = vector.broadcast %444 : vector<1x128xi32> to vector<128x128xi32>
    %446 = arith.cmpi eq, %0, %445 : vector<128x128xi32>
    %cst_137 = arith.constant 0.000000e+00 : f32
    %447 = vector.broadcast %cst_137 : f32 to vector<128x128xf32>
    %448 = arith.select %446, %9, %447 : vector<128x128xi1>, vector<128x128xf32>
    %cst_138 = arith.constant dense<0.000000e+00> : vector<128xf32>
    %449 = vector.multi_reduction <add>, %448, %cst_138 [0] : vector<128x128xf32> to vector<128xf32>
    %450 = vector.shape_cast %449 : vector<128xf32> to vector<1x128xf32>
    %cst_139 = arith.constant 0.000000e+00 : f32
    %451 = vector.broadcast %cst_139 : f32 to vector<1x128xf32>
    %452 = arith.subf %451, %450 : vector<1x128xf32>
    %cst_140 = arith.constant 0.000000e+00 : f32
    %453 = vector.broadcast %cst_140 : f32 to vector<1x128xf32>
    %454 = arith.minimumf %452, %453 : vector<1x128xf32>
    %455 = math.absf %452 : vector<1x128xf32>
    %cst_141 = arith.constant 0.000000e+00 : f32
    %456 = vector.broadcast %cst_141 : f32 to vector<1x128xf32>
    %457 = arith.subf %456, %455 : vector<1x128xf32>
    %458 = math.exp %457 : vector<1x128xf32>
    %cst_142 = arith.constant 1.000000e+00 : f32
    %459 = vector.broadcast %cst_142 : f32 to vector<1x128xf32>
    %460 = arith.addf %459, %458 : vector<1x128xf32>
    %461 = math.log %460 : vector<1x128xf32>
    %462 = arith.subf %454, %461 : vector<1x128xf32>
    %463 = arith.addf %443, %462 : vector<1x128xf32>
    %464 = vector.extract_strided_slice %10 {offsets = [23, 0], sizes = [1, 128], strides = [1, 1]} : vector<24x128xi32> to vector<1x128xi32>
    %465 = vector.broadcast %464 : vector<1x128xi32> to vector<128x128xi32>
    %466 = arith.cmpi eq, %0, %465 : vector<128x128xi32>
    %cst_143 = arith.constant 0.000000e+00 : f32
    %467 = vector.broadcast %cst_143 : f32 to vector<128x128xf32>
    %468 = arith.select %466, %9, %467 : vector<128x128xi1>, vector<128x128xf32>
    %cst_144 = arith.constant dense<0.000000e+00> : vector<128xf32>
    %469 = vector.multi_reduction <add>, %468, %cst_144 [0] : vector<128x128xf32> to vector<128xf32>
    %470 = vector.shape_cast %469 : vector<128xf32> to vector<1x128xf32>
    %cst_145 = arith.constant 0.000000e+00 : f32
    %471 = vector.broadcast %cst_145 : f32 to vector<1x128xf32>
    %472 = arith.subf %471, %470 : vector<1x128xf32>
    %cst_146 = arith.constant 0.000000e+00 : f32
    %473 = vector.broadcast %cst_146 : f32 to vector<1x128xf32>
    %474 = arith.minimumf %472, %473 : vector<1x128xf32>
    %475 = math.absf %472 : vector<1x128xf32>
    %cst_147 = arith.constant 0.000000e+00 : f32
    %476 = vector.broadcast %cst_147 : f32 to vector<1x128xf32>
    %477 = arith.subf %476, %475 : vector<1x128xf32>
    %478 = math.exp %477 : vector<1x128xf32>
    %cst_148 = arith.constant 1.000000e+00 : f32
    %479 = vector.broadcast %cst_148 : f32 to vector<1x128xf32>
    %480 = arith.addf %479, %478 : vector<1x128xf32>
    %481 = math.log %480 : vector<1x128xf32>
    %482 = arith.subf %474, %481 : vector<1x128xf32>
    %483 = arith.addf %463, %482 : vector<1x128xf32>
    %cst_149 = arith.constant 2.500000e-01 : f32
    %484 = vector.broadcast %cst_149 : f32 to vector<1x128xf32>
    %485 = arith.mulf %483, %484 : vector<1x128xf32>
    %c0_150 = arith.constant 0 : index
    %c0_151 = arith.constant 0 : index
    %486 = vector.load %arg5[%c0_150, %c0_151] : memref<1x128xf32, #tpu.memory_space<vmem>>, vector<1x128xf32>
    tpu.vector_store %arg5[%c0_150, %c0_151], %485 {strides = array<i32>} : memref<1x128xf32, #tpu.memory_space<vmem>>, vector<1x128xf32>,
    return
  }
  func.func @transform_0(%arg0: i32) -> (i32, i32) {
    %c0_i32 = arith.constant 0 : i32
    %c0_i32_0 = arith.constant 0 : i32
    %c0_i32_1 = arith.constant 0 : i32
    return %c0_i32, %c0_i32_0 : i32, i32
  }
  func.func @transform_1(%arg0: i32) -> (i32, i32) {
    %c0_i32 = arith.constant 0 : i32
    %c0_i32_0 = arith.constant 0 : i32
    %c0_i32_1 = arith.constant 0 : i32
    return %c0_i32, %c0_i32_0 : i32, i32
  }
  func.func @transform_2(%arg0: i32) -> (i32, i32) {
    %c0_i32 = arith.constant 0 : i32
    %c0_i32_0 = arith.constant 0 : i32
    return %c0_i32, %arg0 : i32, i32
  }
  func.func @transform_3(%arg0: i32) -> (i32, i32) {
    %c0_i32 = arith.constant 0 : i32
    %c0_i32_0 = arith.constant 0 : i32
    return %c0_i32, %arg0 : i32, i32
  }
  func.func @transform_4(%arg0: i32) -> (i32, i32) {
    %c0_i32 = arith.constant 0 : i32
    %c0_i32_0 = arith.constant 0 : i32
    return %c0_i32, %arg0 : i32, i32
  }
}

</mosaic_0001>

<llo_original>
// kernel: tpu_custom_call.1
$region0: #{tpu_custom_call.1}
  #allocation0 [shape = 'u32[]', space=smem, size = 0x4, offset = 0x4, fixed_abs, tag = 'smem constant byte address 0x4 - core index']
  #allocation1 [shape = 'u32[144,128]{1,0:T(1,128)}', space=vmem, size = 0x12000, scoped, tag = 'internal scratch']
  %s0 = inlined_call_operand.vmem [shape: f32[32,128], index: 0, kind: input, shape index: {}]
  %s1 = inlined_call_operand.vmem [shape: f32[128,32], index: 1, kind: input, shape index: {}]
  %s2 = inlined_call_operand.vmem [shape: s32[1,128], index: 2, kind: input, shape index: {}]
  %s3 = inlined_call_operand.vmem [shape: s32[24,128], index: 3, kind: input, shape index: {}]
  %s4 = inlined_call_operand.hbm [shape: f32[1,128], index: 4, kind: output, shape index: {}]
  %s5 = sld [smem:[#allocation0]]
  $region26: #{tpu_custom_call.1} parent=0
    _
  %s7 = ssub.s32 1, %s5
  %s8 = scalar_select 0, %s7, %s5
  $region1: #{tpu_custom_call.1} parent=0
    #allocation2 [shape = 'u8[512]{0}', space=vmem, size = 0x400, scoped, tag = 'output window, operand 0, single buffered']
    #allocation3 [shape = 's32[1]{0}', space=sflag, size = 0x4, scoped, tag = 'scoped memory for tpu_custom_call.1']
    %9 = vsyncpa [#allocation3], 0
    // Predicated region
    $region2: #{tpu_custom_call.1} parent=1 // pred_check
      _
    $region3: #{tpu_custom_call.1} parent=1 // pred_check_branch
      %11 = sbr.rel (0) target = $region5
    $region4: #{tpu_custom_call.1} parent=1 // pred_region
      _
    $region5: #{tpu_custom_call.1} parent=1 // pred_fallthru
      _
    // Predicated region
    $region6: #{tpu_custom_call.1} parent=1 // pred_check
      _
    $region7: #{tpu_custom_call.1} parent=1 // pred_check_branch
      %13 = sbr.rel (0) target = $region9
    $region8: #{tpu_custom_call.1} parent=1 // pred_region
      _
    $region9: #{tpu_custom_call.1} parent=1 // pred_fallthru
      _
    // Predicated region
    $region10: #{tpu_custom_call.1} parent=1 // pred_check
      _
    $region11: #{tpu_custom_call.1} parent=1 // pred_check_branch
      %15 = sbr.rel (0) target = $region13
    $region12: #{tpu_custom_call.1} parent=1 // pred_region
      _
    $region13: #{tpu_custom_call.1} parent=1 // pred_fallthru
      _
    // Predicated region
    $region14: #{tpu_custom_call.1} parent=1 // pred_check
      _
    $region15: #{tpu_custom_call.1} parent=1 // pred_check_branch
      %17 = sbr.rel (0) target = $region17
    $region16: #{tpu_custom_call.1} parent=1 // pred_region
      _
    $region17: #{tpu_custom_call.1} parent=1 // pred_fallthru
      _
    %v18 = vlaneseq
    %v19 = vshrl.u32 %v18, 7
    %v20 = vadd.s32 %v19, 8
    %v21 = vadd.s32 %v19, 16
    %v22 = vadd.s32 %v19, 24
    %v23 = vadd.s32 %v19, 32
    %v24 = vadd.s32 %v19, 40
    %v25 = vadd.s32 %v19, 48
    %v26 = vadd.s32 %v19, 56
    %v27 = vadd.s32 %v19, 64
    %v28 = vadd.s32 %v19, 72
    %v29 = vadd.s32 %v19, 80
    %v30 = vadd.s32 %v19, 88
    %v31 = vadd.s32 %v19, 96
    %v32 = vadd.s32 %v19, 104
    %v33 = vadd.s32 %v19, 112
    %v34 = vadd.s32 %v19, 120
    %v35 = vld [vmem:[%s2] sm:$0x1]
    %v36 = vlaneseq
    %v37 = vshrl.u32 %v36, 7
    %v38 = vsub.s32 0, %v37
    %v39 = vrot.slane %v35, %v38
    %vm40 = vcmp.eq.s32.totalorder %v19, %v39
    %vm41 = vcmp.eq.s32.totalorder %v20, %v39
    %vm42 = vcmp.eq.s32.totalorder %v21, %v39
    %vm43 = vcmp.eq.s32.totalorder %v22, %v39
    %vm44 = vcmp.eq.s32.totalorder %v23, %v39
    %vm45 = vcmp.eq.s32.totalorder %v24, %v39
    %vm46 = vcmp.eq.s32.totalorder %v25, %v39
    %vm47 = vcmp.eq.s32.totalorder %v26, %v39
    %vm48 = vcmp.eq.s32.totalorder %v27, %v39
    %vm49 = vcmp.eq.s32.totalorder %v28, %v39
    %vm50 = vcmp.eq.s32.totalorder %v29, %v39
    %vm51 = vcmp.eq.s32.totalorder %v30, %v39
    %vm52 = vcmp.eq.s32.totalorder %v31, %v39
    %vm53 = vcmp.eq.s32.totalorder %v32, %v39
    %vm54 = vcmp.eq.s32.totalorder %v33, %v39
    %vm55 = vcmp.eq.s32.totalorder %v34, %v39
    %v56 = vsel %vm40, 1, 0
    %v57 = vsel %vm41, 1, 0
    %v58 = vsel %vm42, 1, 0
    %v59 = vsel %vm43, 1, 0
    %v60 = vsel %vm44, 1, 0
    %v61 = vsel %vm45, 1, 0
    %v62 = vsel %vm46, 1, 0
    %v63 = vsel %vm47, 1, 0
    %v64 = vsel %vm48, 1, 0
    %v65 = vsel %vm49, 1, 0
    %v66 = vsel %vm50, 1, 0
    %v67 = vsel %vm51, 1, 0
    %v68 = vsel %vm52, 1, 0
    %v69 = vsel %vm53, 1, 0
    %v70 = vsel %vm54, 1, 0
    %v71 = vsel %vm55, 1, 0
    %v72 = vcvt.s32.f32 %v56
    %v73 = vcvt.s32.f32 %v57
    %v74 = vcvt.s32.f32 %v58
    %v75 = vcvt.s32.f32 %v59
    %v76 = vcvt.s32.f32 %v60
    %v77 = vcvt.s32.f32 %v61
    %v78 = vcvt.s32.f32 %v62
    %v79 = vcvt.s32.f32 %v63
    %v80 = vcvt.s32.f32 %v64
    %v81 = vcvt.s32.f32 %v65
    %v82 = vcvt.s32.f32 %v66
    %v83 = vcvt.s32.f32 %v67
    %v84 = vcvt.s32.f32 %v68
    %v85 = vcvt.s32.f32 %v69
    %v86 = vcvt.s32.f32 %v70
    %v87 = vcvt.s32.f32 %v71
    %v88 = vld [vmem:[%s0] sm:$0xff]
    %v89 = vld [vmem:[%s0 + $0x8] sm:$0xff]
    %v90 = vld [vmem:[%s0 + $0x10] sm:$0xff]
    %v91 = vld [vmem:[%s0 + $0x18] sm:$0xff]
    %92 = vmatprep.subr.mxu0 0.0
    %v93 = vand.u32 %v72, 4294901760
    %94 = vmatpush1.msra.mxu0 %v93
    %95 = vmatprep.subr.mxu0 0.0
    %v96 = vand.u32 %v73, 4294901760
    %97 = vmatpush1.msra.mxu0 %v96
    %98 = vmatprep.subr.mxu0 0.0
    %v99 = vand.u32 %v74, 4294901760
    %100 = vmatpush1.msra.mxu0 %v99
    %101 = vmatprep.subr.mxu0 0.0
    %v102 = vand.u32 %v75, 4294901760
    %103 = vmatpush1.msra.mxu0 %v102
    %104 = vmatprep.subr.mxu0 0.0
    %v105 = vand.u32 %v76, 4294901760
    %106 = vmatpush1.msra.mxu0 %v105
    %107 = vmatprep.subr.mxu0 0.0
    %v108 = vand.u32 %v77, 4294901760
    %109 = vmatpush1.msra.mxu0 %v108
    %110 = vmatprep.subr.mxu0 0.0
    %v111 = vand.u32 %v78, 4294901760
    %112 = vmatpush1.msra.mxu0 %v111
    %113 = vmatprep.subr.mxu0 0.0
    %v114 = vand.u32 %v79, 4294901760
    %115 = vmatpush1.msra.mxu0 %v114
    %116 = vmatprep.subr.mxu0 0.0
    %v117 = vand.u32 %v80, 4294901760
    %118 = vmatpush1.msra.mxu0 %v117
    %119 = vmatprep.subr.mxu0 0.0
    %v120 = vand.u32 %v81, 4294901760
    %121 = vmatpush1.msra.mxu0 %v120
    %122 = vmatprep.subr.mxu0 0.0
    %v123 = vand.u32 %v82, 4294901760
    %124 = vmatpush1.msra.mxu0 %v123
    %125 = vmatprep.subr.mxu0 0.0
    %v126 = vand.u32 %v83, 4294901760
    %127 = vmatpush1.msra.mxu0 %v126
    %128 = vmatprep.subr.mxu0 0.0
    %v129 = vand.u32 %v84, 4294901760
    %130 = vmatpush1.msra.mxu0 %v129
    %131 = vmatprep.subr.mxu0 0.0
    %v132 = vand.u32 %v85, 4294901760
    %133 = vmatpush1.msra.mxu0 %v132
    %134 = vmatprep.subr.mxu0 0.0
    %v135 = vand.u32 %v86, 4294901760
    %136 = vmatpush1.msra.mxu0 %v135
    %137 = vmatprep.subr.mxu0 0.0
    %v138 = vand.u32 %v87, 4294901760
    %139 = vmatpush1.msra.mxu0 %v138
    %140 = vmatprep.subr.mxu0 0.0
    %141 = vmatpush1.msra.mxu0 0.0
    %142 = vmatprep.subr.mxu0 0.0
    %143 = vmatpush1.msra.mxu0 0.0
    %144 = vmatprep.subr.mxu0 0.0
    %145 = vmatpush1.msra.mxu0 0.0
    %146 = vmatprep.subr.mxu0 0.0
    %147 = vmatpush1.msra.mxu0 0.0
    %148 = vmatprep.subr.mxu0 0.0
    %149 = vmatpush1.msra.mxu0 0.0
    %150 = vmatprep.subr.mxu0 0.0
    %151 = vmatpush1.msra.mxu0 0.0
    %152 = vmatprep.subr.mxu0 0.0
    %153 = vmatpush1.msra.mxu0 0.0
    %154 = vmatprep.subr.mxu0 0.0
    %155 = vmatpush1.msra.mxu0 0.0
    %156 = vmatprep.subr.mxu0 0.0
    %157 = vmatpush1.msra.mxu0 0.0
    %158 = vmatprep.subr.mxu0 0.0
    %159 = vmatpush1.msra.mxu0 0.0
    %160 = vmatprep.subr.mxu0 0.0
    %161 = vmatpush1.msra.mxu0 0.0
    %162 = vmatprep.subr.mxu0 0.0
    %163 = vmatpush1.msra.mxu0 0.0
    %164 = vmatprep.subr.mxu0 0.0
    %165 = vmatpush1.msra.mxu0 0.0
    %166 = vmatprep.subr.mxu0 0.0
    %167 = vmatpush1.msra.mxu0 0.0
    %168 = vmatprep.subr.mxu0 0.0
    %169 = vmatpush1.msra.mxu0 0.0
    %170 = vmatprep.subr.mxu0 0.0
    %171 = vmatpush1.msra.mxu0 0.0
    %172 = vmatprep.mubr.f32.mxu0 0.0
    %v173 = vand.u32 %v88, 4294901760
    %v174 = vsub.f32 %v88, %v173
    %v175 = vand.u32 %v174, 4294901760
    %v176 = vsub.f32 %v174, %v175
    %v177 = vand.u32 %v176, 4294901760
    %178 = vmatmul.mubr.f32.gmra.mrb[0].mxu0 %v177
    %v179 = vpop.f32.mrb[0].mxu0
    %v180 = vadd.f32 0.0, %v179
    %v181 = vpop.f32.mrb[0].mxu0
    %182 = vmatprep.mubr.f32.mxu0 0.0
    %v183 = vand.u32 %v89, 4294901760
    %v184 = vsub.f32 %v89, %v183
    %v185 = vand.u32 %v184, 4294901760
    %v186 = vsub.f32 %v184, %v185
    %v187 = vand.u32 %v186, 4294901760
    %188 = vmatmul.mubr.f32.gmra.mrb[0].mxu0 %v187
    %v189 = vpop.f32.mrb[0].mxu0
    %v190 = vadd.f32 0.0, %v189
    %v191 = vpop.f32.mrb[0].mxu0
    %192 = vmatprep.mubr.f32.mxu0 0.0
    %v193 = vand.u32 %v90, 4294901760
    %v194 = vsub.f32 %v90, %v193
    %v195 = vand.u32 %v194, 4294901760
    %v196 = vsub.f32 %v194, %v195
    %v197 = vand.u32 %v196, 4294901760
    %198 = vmatmul.mubr.f32.gmra.mrb[0].mxu0 %v197
    %v199 = vpop.f32.mrb[0].mxu0
    %v200 = vadd.f32 0.0, %v199
    %v201 = vpop.f32.mrb[0].mxu0
    %202 = vmatprep.mubr.f32.mxu0 0.0
    %v203 = vand.u32 %v91, 4294901760
    %v204 = vsub.f32 %v91, %v203
    %v205 = vand.u32 %v204, 4294901760
    %v206 = vsub.f32 %v204, %v205
    %v207 = vand.u32 %v206, 4294901760
    %208 = vmatmul.mubr.f32.gmra.mrb[0].mxu0 %v207
    %v209 = vpop.f32.mrb[0].mxu0
    %v210 = vadd.f32 0.0, %v209
    %v211 = vpop.f32.mrb[0].mxu0
    %212 = vdwg.mxu0
    %213 = vmatprep.subr.mxu0 0.0
    %v214 = vand.u32 %v72, 4294901760
    %v215 = vsub.f32 %v72, %v214
    %v216 = vand.u32 %v215, 4294901760
    %v217 = vsub.f32 %v215, %v216
    %v218 = vand.u32 %v217, 4294901760
    %219 = vmatpush1.msra.mxu0 %v218
    %220 = vmatprep.subr.mxu0 0.0
    %v221 = vand.u32 %v73, 4294901760
    %v222 = vsub.f32 %v73, %v221
    %v223 = vand.u32 %v222, 4294901760
    %v224 = vsub.f32 %v222, %v223
    %v225 = vand.u32 %v224, 4294901760
    %226 = vmatpush1.msra.mxu0 %v225
    %227 = vmatprep.subr.mxu0 0.0
    %v228 = vand.u32 %v74, 4294901760
    %v229 = vsub.f32 %v74, %v228
    %v230 = vand.u32 %v229, 4294901760
    %v231 = vsub.f32 %v229, %v230
    %v232 = vand.u32 %v231, 4294901760
    %233 = vmatpush1.msra.mxu0 %v232
    %234 = vmatprep.subr.mxu0 0.0
    %v235 = vand.u32 %v75, 4294901760
    %v236 = vsub.f32 %v75, %v235
    %v237 = vand.u32 %v236, 4294901760
    %v238 = vsub.f32 %v236, %v237
    %v239 = vand.u32 %v238, 4294901760
    %240 = vmatpush1.msra.mxu0 %v239
    %241 = vmatprep.subr.mxu0 0.0
    %v242 = vand.u32 %v76, 4294901760
    %v243 = vsub.f32 %v76, %v242
    %v244 = vand.u32 %v243, 4294901760
    %v245 = vsub.f32 %v243, %v244
    %v246 = vand.u32 %v245, 4294901760
    %247 = vmatpush1.msra.mxu0 %v246
    %248 = vmatprep.subr.mxu0 0.0
    %v249 = vand.u32 %v77, 4294901760
    %v250 = vsub.f32 %v77, %v249
    %v251 = vand.u32 %v250, 4294901760
    %v252 = vsub.f32 %v250, %v251
    %v253 = vand.u32 %v252, 4294901760
    %254 = vmatpush1.msra.mxu0 %v253
    %255 = vmatprep.subr.mxu0 0.0
    %v256 = vand.u32 %v78, 4294901760
    %v257 = vsub.f32 %v78, %v256
    %v258 = vand.u32 %v257, 4294901760
    %v259 = vsub.f32 %v257, %v258
    %v260 = vand.u32 %v259, 4294901760
    %261 = vmatpush1.msra.mxu0 %v260
    %262 = vmatprep.subr.mxu0 0.0
    %v263 = vand.u32 %v79, 4294901760
    %v264 = vsub.f32 %v79, %v263
    %v265 = vand.u32 %v264, 4294901760
    %v266 = vsub.f32 %v264, %v265
    %v267 = vand.u32 %v266, 4294901760
    %268 = vmatpush1.msra.mxu0 %v267
    %269 = vmatprep.subr.mxu0 0.0
    %v270 = vand.u32 %v80, 4294901760
    %v271 = vsub.f32 %v80, %v270
    %v272 = vand.u32 %v271, 4294901760
    %v273 = vsub.f32 %v271, %v272
    %v274 = vand.u32 %v273, 4294901760
    %275 = vmatpush1.msra.mxu0 %v274
    %276 = vmatprep.subr.mxu0 0.0
    %v277 = vand.u32 %v81, 4294901760
    %v278 = vsub.f32 %v81, %v277
    %v279 = vand.u32 %v278, 4294901760
    %v280 = vsub.f32 %v278, %v279
    %v281 = vand.u32 %v280, 4294901760
    %282 = vmatpush1.msra.mxu0 %v281
    %283 = vmatprep.subr.mxu0 0.0
    %v284 = vand.u32 %v82, 4294901760
    %v285 = vsub.f32 %v82, %v284
    %v286 = vand.u32 %v285, 4294901760
    %v287 = vsub.f32 %v285, %v286
    %v288 = vand.u32 %v287, 4294901760
    %289 = vmatpush1.msra.mxu0 %v288
    %290 = vmatprep.subr.mxu0 0.0
    %v291 = vand.u32 %v83, 4294901760
    %v292 = vsub.f32 %v83, %v291
    %v293 = vand.u32 %v292, 4294901760
    %v294 = vsub.f32 %v292, %v293
    %v295 = vand.u32 %v294, 4294901760
    %296 = vmatpush1.msra.mxu0 %v295
    %297 = vmatprep.subr.mxu0 0.0
    %v298 = vand.u32 %v84, 4294901760
    %v299 = vsub.f32 %v84, %v298
    %v300 = vand.u32 %v299, 4294901760
    %v301 = vsub.f32 %v299, %v300
    %v302 = vand.u32 %v301, 4294901760
    %303 = vmatpush1.msra.mxu0 %v302
    %304 = vmatprep.subr.mxu0 0.0
    %v305 = vand.u32 %v85, 4294901760
    %v306 = vsub.f32 %v85, %v305
    %v307 = vand.u32 %v306, 4294901760
    %v308 = vsub.f32 %v306, %v307
    %v309 = vand.u32 %v308, 4294901760
    %310 = vmatpush1.msra.mxu0 %v309
    %311 = vmatprep.subr.mxu0 0.0
    %v312 = vand.u32 %v86, 4294901760
    %v313 = vsub.f32 %v86, %v312
    %v314 = vand.u32 %v313, 4294901760
    %v315 = vsub.f32 %v313, %v314
    %v316 = vand.u32 %v315, 4294901760
    %317 = vmatpush1.msra.mxu0 %v316
    %318 = vmatprep.subr.mxu0 0.0
    %v319 = vand.u32 %v87, 4294901760
    %v320 = vsub.f32 %v87, %v319
    %v321 = vand.u32 %v320, 4294901760
    %v322 = vsub.f32 %v320, %v321
    %v323 = vand.u32 %v322, 4294901760
    %324 = vmatpush1.msra.mxu0 %v323
    %325 = vmatprep.subr.mxu0 0.0
    %326 = vmatpush1.msra.mxu0 0.0
    %327 = vmatprep.subr.mxu0 0.0
    %328 = vmatpush1.msra.mxu0 0.0
    %329 = vmatprep.subr.mxu0 0.0
    %330 = vmatpush1.msra.mxu0 0.0
    %331 = vmatprep.subr.mxu0 0.0
    %332 = vmatpush1.msra.mxu0 0.0
    %333 = vmatprep.subr.mxu0 0.0
    %334 = vmatpush1.msra.mxu0 0.0
    %335 = vmatprep.subr.mxu0 0.0
    %336 = vmatpush1.msra.mxu0 0.0
    %337 = vmatprep.subr.mxu0 0.0
    %338 = vmatpush1.msra.mxu0 0.0
    %339 = vmatprep.subr.mxu0 0.0
    %340 = vmatpush1.msra.mxu0 0.0
    %341 = vmatprep.subr.mxu0 0.0
    %342 = vmatpush1.msra.mxu0 0.0
    %343 = vmatprep.subr.mxu0 0.0
    %344 = vmatpush1.msra.mxu0 0.0
    %345 = vmatprep.subr.mxu0 0.0
    %346 = vmatpush1.msra.mxu0 0.0
    %347 = vmatprep.subr.mxu0 0.0
    %348 = vmatpush1.msra.mxu0 0.0
    %349 = vmatprep.subr.mxu0 0.0
    %350 = vmatpush1.msra.mxu0 0.0
    %351 = vmatprep.subr.mxu0 0.0
    %352 = vmatpush1.msra.mxu0 0.0
    %353 = vmatprep.subr.mxu0 0.0
    %354 = vmatpush1.msra.mxu0 0.0
    %355 = vmatprep.subr.mxu0 0.0
    %356 = vmatpush1.msra.mxu0 0.0
    %357 = vmatprep.mubr.f32.mxu0 0.0
    %v358 = vand.u32 %v88, 4294901760
    %359 = vmatmul.mubr.f32.gmra.mrb[0].mxu0 %v358
    %v360 = vpop.f32.mrb[0].mxu0
    %v361 = vadd.f32 %v180, %v360
    %v362 = vpop.f32.mrb[0].mxu0
    %363 = vmatprep.mubr.f32.mxu0 0.0
    %v364 = vand.u32 %v89, 4294901760
    %365 = vmatmul.mubr.f32.gmra.mrb[0].mxu0 %v364
    %v366 = vpop.f32.mrb[0].mxu0
    %v367 = vadd.f32 %v190, %v366
    %v368 = vpop.f32.mrb[0].mxu0
    %369 = vmatprep.mubr.f32.mxu0 0.0
    %v370 = vand.u32 %v90, 4294901760
    %371 = vmatmul.mubr.f32.gmra.mrb[0].mxu0 %v370
    %v372 = vpop.f32.mrb[0].mxu0
    %v373 = vadd.f32 %v200, %v372
    %v374 = vpop.f32.mrb[0].mxu0
    %375 = vmatprep.mubr.f32.mxu0 0.0
    %v376 = vand.u32 %v91, 4294901760
    %377 = vmatmul.mubr.f32.gmra.mrb[0].mxu0 %v376
    %v378 = vpop.f32.mrb[0].mxu0
    %v379 = vadd.f32 %v210, %v378
    %v380 = vpop.f32.mrb[0].mxu0
    %381 = vdwg.mxu0
    %382 = vmatprep.subr.mxu0 0.0
    %v383 = vand.u32 %v72, 4294901760
    %v384 = vsub.f32 %v72, %v383
    %385 = vmatpush1.msra.mxu0 %v384
    %386 = vmatprep.subr.mxu0 0.0
    %v387 = vand.u32 %v73, 4294901760
    %v388 = vsub.f32 %v73, %v387
    %389 = vmatpush1.msra.mxu0 %v388
    %390 = vmatprep.subr.mxu0 0.0
    %v391 = vand.u32 %v74, 4294901760
    %v392 = vsub.f32 %v74, %v391
    %393 = vmatpush1.msra.mxu0 %v392
    %394 = vmatprep.subr.mxu0 0.0
    %v395 = vand.u32 %v75, 4294901760
    %v396 = vsub.f32 %v75, %v395
    %397 = vmatpush1.msra.mxu0 %v396
    %398 = vmatprep.subr.mxu0 0.0
    %v399 = vand.u32 %v76, 4294901760
    %v400 = vsub.f32 %v76, %v399
    %401 = vmatpush1.msra.mxu0 %v400
    %402 = vmatprep.subr.mxu0 0.0
    %v403 = vand.u32 %v77, 4294901760
    %v404 = vsub.f32 %v77, %v403
    %405 = vmatpush1.msra.mxu0 %v404
    %406 = vmatprep.subr.mxu0 0.0
    %v407 = vand.u32 %v78, 4294901760
    %v408 = vsub.f32 %v78, %v407
    %409 = vmatpush1.msra.mxu0 %v408
    %410 = vmatprep.subr.mxu0 0.0
    %v411 = vand.u32 %v79, 4294901760
    %v412 = vsub.f32 %v79, %v411
    %413 = vmatpush1.msra.mxu0 %v412
    %414 = vmatprep.subr.mxu0 0.0
    %v415 = vand.u32 %v80, 4294901760
    %v416 = vsub.f32 %v80, %v415
    %417 = vmatpush1.msra.mxu0 %v416
    %418 = vmatprep.subr.mxu0 0.0
    %v419 = vand.u32 %v81, 4294901760
    %v420 = vsub.f32 %v81, %v419
    %421 = vmatpush1.msra.mxu0 %v420
    %422 = vmatprep.subr.mxu0 0.0
    %v423 = vand.u32 %v82, 4294901760
    %v424 = vsub.f32 %v82, %v423
    %425 = vmatpush1.msra.mxu0 %v424
    %426 = vmatprep.subr.mxu0 0.0
    %v427 = vand.u32 %v83, 4294901760
    %v428 = vsub.f32 %v83, %v427
    %429 = vmatpush1.msra.mxu0 %v428
    %430 = vmatprep.subr.mxu0 0.0
    %v431 = vand.u32 %v84, 4294901760
    %v432 = vsub.f32 %v84, %v431
    %433 = vmatpush1.msra.mxu0 %v432
    %434 = vmatprep.subr.mxu0 0.0
    %v435 = vand.u32 %v85, 4294901760
    %v436 = vsub.f32 %v85, %v435
    %437 = vmatpush1.msra.mxu0 %v436
    %438 = vmatprep.subr.mxu0 0.0
    %v439 = vand.u32 %v86, 4294901760
    %v440 = vsub.f32 %v86, %v439
    %441 = vmatpush1.msra.mxu0 %v440
    %442 = vmatprep.subr.mxu0 0.0
    %v443 = vand.u32 %v87, 4294901760
    %v444 = vsub.f32 %v87, %v443
    %445 = vmatpush1.msra.mxu0 %v444
    %446 = vmatprep.subr.mxu0 0.0
    %447 = vmatpush1.msra.mxu0 0.0
    %448 = vmatprep.subr.mxu0 0.0
    %449 = vmatpush1.msra.mxu0 0.0
    %450 = vmatprep.subr.mxu0 0.0
    %451 = vmatpush1.msra.mxu0 0.0
    %452 = vmatprep.subr.mxu0 0.0
    %453 = vmatpush1.msra.mxu0 0.0
    %454 = vmatprep.subr.mxu0 0.0
    %455 = vmatpush1.msra.mxu0 0.0
    %456 = vmatprep.subr.mxu0 0.0
    %457 = vmatpush1.msra.mxu0 0.0
    %458 = vmatprep.subr.mxu0 0.0
    %459 = vmatpush1.msra.mxu0 0.0
    %460 = vmatprep.subr.mxu0 0.0
    %461 = vmatpush1.msra.mxu0 0.0
    %462 = vmatprep.subr.mxu0 0.0
    %463 = vmatpush1.msra.mxu0 0.0
    %464 = vmatprep.subr.mxu0 0.0
    %465 = vmatpush1.msra.mxu0 0.0
    %466 = vmatprep.subr.mxu0 0.0
    %467 = vmatpush1.msra.mxu0 0.0
    %468 = vmatprep.subr.mxu0 0.0
    %469 = vmatpush1.msra.mxu0 0.0
    %470 = vmatprep.subr.mxu0 0.0
    %471 = vmatpush1.msra.mxu0 0.0
    %472 = vmatprep.subr.mxu0 0.0
    %473 = vmatpush1.msra.mxu0 0.0
    %474 = vmatprep.subr.mxu0 0.0
    %475 = vmatpush1.msra.mxu0 0.0
    %476 = vmatprep.subr.mxu0 0.0
    %477 = vmatpush1.msra.mxu0 0.0
    %478 = vmatprep.mubr.f32.mxu0 0.0
    %v479 = vand.u32 %v88, 4294901760
    %v480 = vsub.f32 %v88, %v479
    %481 = vmatmul.mubr.f32.gmra.mrb[0].mxu0 %v480
    %v482 = vpop.f32.mrb[0].mxu0
    %v483 = vadd.f32 %v361, %v482
    %v484 = vpop.f32.mrb[0].mxu0
    %485 = vmatprep.mubr.f32.mxu0 0.0
    %v486 = vand.u32 %v89, 4294901760
    %v487 = vsub.f32 %v89, %v486
    %488 = vmatmul.mubr.f32.gmra.mrb[0].mxu0 %v487
    %v489 = vpop.f32.mrb[0].mxu0
    %v490 = vadd.f32 %v367, %v489
    %v491 = vpop.f32.mrb[0].mxu0
    %492 = vmatprep.mubr.f32.mxu0 0.0
    %v493 = vand.u32 %v90, 4294901760
    %v494 = vsub.f32 %v90, %v493
    %495 = vmatmul.mubr.f32.gmra.mrb[0].mxu0 %v494
    %v496 = vpop.f32.mrb[0].mxu0
    %v497 = vadd.f32 %v373, %v496
    %v498 = vpop.f32.mrb[0].mxu0
    %499 = vmatprep.mubr.f32.mxu0 0.0
    %v500 = vand.u32 %v91, 4294901760
    %v501 = vsub.f32 %v91, %v500
    %502 = vmatmul.mubr.f32.gmra.mrb[0].mxu0 %v501
    %v503 = vpop.f32.mrb[0].mxu0
    %v504 = vadd.f32 %v379, %v503
    %v505 = vpop.f32.mrb[0].mxu0
    %506 = vdwg.mxu0
    %507 = vmatprep.subr.mxu0 0.0
    %v508 = vand.u32 %v72, 4294901760
    %509 = vmatpush1.msra.mxu0 %v508
    %510 = vmatprep.subr.mxu0 0.0
    %v511 = vand.u32 %v73, 4294901760
    %512 = vmatpush1.msra.mxu0 %v511
    %513 = vmatprep.subr.mxu0 0.0
    %v514 = vand.u32 %v74, 4294901760
    %515 = vmatpush1.msra.mxu0 %v514
    %516 = vmatprep.subr.mxu0 0.0
    %v517 = vand.u32 %v75, 4294901760
    %518 = vmatpush1.msra.mxu0 %v517
    %519 = vmatprep.subr.mxu0 0.0
    %v520 = vand.u32 %v76, 4294901760
    %521 = vmatpush1.msra.mxu0 %v520
    %522 = vmatprep.subr.mxu0 0.0
    %v523 = vand.u32 %v77, 4294901760
    %524 = vmatpush1.msra.mxu0 %v523
    %525 = vmatprep.subr.mxu0 0.0
    %v526 = vand.u32 %v78, 4294901760
    %527 = vmatpush1.msra.mxu0 %v526
    %528 = vmatprep.subr.mxu0 0.0
    %v529 = vand.u32 %v79, 4294901760
    %530 = vmatpush1.msra.mxu0 %v529
    %531 = vmatprep.subr.mxu0 0.0
    %v532 = vand.u32 %v80, 4294901760
    %533 = vmatpush1.msra.mxu0 %v532
    %534 = vmatprep.subr.mxu0 0.0
    %v535 = vand.u32 %v81, 4294901760
    %536 = vmatpush1.msra.mxu0 %v535
    %537 = vmatprep.subr.mxu0 0.0
    %v538 = vand.u32 %v82, 4294901760
    %539 = vmatpush1.msra.mxu0 %v538
    %540 = vmatprep.subr.mxu0 0.0
    %v541 = vand.u32 %v83, 4294901760
    %542 = vmatpush1.msra.mxu0 %v541
    %543 = vmatprep.subr.mxu0 0.0
    %v544 = vand.u32 %v84, 4294901760
    %545 = vmatpush1.msra.mxu0 %v544
    %546 = vmatprep.subr.mxu0 0.0
    %v547 = vand.u32 %v85, 4294901760
    %548 = vmatpush1.msra.mxu0 %v547
    %549 = vmatprep.subr.mxu0 0.0
    %v550 = vand.u32 %v86, 4294901760
    %551 = vmatpush1.msra.mxu0 %v550
    %552 = vmatprep.subr.mxu0 0.0
    %v553 = vand.u32 %v87, 4294901760
    %554 = vmatpush1.msra.mxu0 %v553
    %555 = vmatprep.subr.mxu0 0.0
    %556 = vmatpush1.msra.mxu0 0.0
    %557 = vmatprep.subr.mxu0 0.0
    %558 = vmatpush1.msra.mxu0 0.0
    %559 = vmatprep.subr.mxu0 0.0
    %560 = vmatpush1.msra.mxu0 0.0
    %561 = vmatprep.subr.mxu0 0.0
    %562 = vmatpush1.msra.mxu0 0.0
    %563 = vmatprep.subr.mxu0 0.0
    %564 = vmatpush1.msra.mxu0 0.0
    %565 = vmatprep.subr.mxu0 0.0
    %566 = vmatpush1.msra.mxu0 0.0
    %567 = vmatprep.subr.mxu0 0.0
    %568 = vmatpush1.msra.mxu0 0.0
    %569 = vmatprep.subr.mxu0 0.0
    %570 = vmatpush1.msra.mxu0 0.0
    %571 = vmatprep.subr.mxu0 0.0
    %572 = vmatpush1.msra.mxu0 0.0
    %573 = vmatprep.subr.mxu0 0.0
    %574 = vmatpush1.msra.mxu0 0.0
    %575 = vmatprep.subr.mxu0 0.0
    %576 = vmatpush1.msra.mxu0 0.0
    %577 = vmatprep.subr.mxu0 0.0
    %578 = vmatpush1.msra.mxu0 0.0
    %579 = vmatprep.subr.mxu0 0.0
    %580 = vmatpush1.msra.mxu0 0.0
    %581 = vmatprep.subr.mxu0 0.0
    %582 = vmatpush1.msra.mxu0 0.0
    %583 = vmatprep.subr.mxu0 0.0
    %584 = vmatpush1.msra.mxu0 0.0
    %585 = vmatprep.subr.mxu0 0.0
    %586 = vmatpush1.msra.mxu0 0.0
    %587 = vmatprep.mubr.f32.mxu0 0.0
    %v588 = vand.u32 %v88, 4294901760
    %v589 = vsub.f32 %v88, %v588
    %v590 = vand.u32 %v589, 4294901760
    %591 = vmatmul.mubr.f32.gmra.mrb[0].mxu0 %v590
    %v592 = vpop.f32.mrb[0].mxu0
    %v593 = vadd.f32 %v483, %v592
    %v594 = vpop.f32.mrb[0].mxu0
    %595 = vmatprep.mubr.f32.mxu0 0.0
    %v596 = vand.u32 %v89, 4294901760
    %v597 = vsub.f32 %v89, %v596
    %v598 = vand.u32 %v597, 4294901760
    %599 = vmatmul.mubr.f32.gmra.mrb[0].mxu0 %v598
    %v600 = vpop.f32.mrb[0].mxu0
    %v601 = vadd.f32 %v490, %v600
    %v602 = vpop.f32.mrb[0].mxu0
    %603 = vmatprep.mubr.f32.mxu0 0.0
    %v604 = vand.u32 %v90, 4294901760
    %v605 = vsub.f32 %v90, %v604
    %v606 = vand.u32 %v605, 4294901760
    %607 = vmatmul.mubr.f32.gmra.mrb[0].mxu0 %v606
    %v608 = vpop.f32.mrb[0].mxu0
    %v609 = vadd.f32 %v497, %v608
    %v610 = vpop.f32.mrb[0].mxu0
    %611 = vmatprep.mubr.f32.mxu0 0.0
    %v612 = vand.u32 %v91, 4294901760
    %v613 = vsub.f32 %v91, %v612
    %v614 = vand.u32 %v613, 4294901760
    %615 = vmatmul.mubr.f32.gmra.mrb[0].mxu0 %v614
    %v616 = vpop.f32.mrb[0].mxu0
    %v617 = vadd.f32 %v504, %v616
    %v618 = vpop.f32.mrb[0].mxu0
    %619 = vdwg.mxu0
    %620 = vmatprep.subr.mxu0 0.0
    %v621 = vand.u32 %v72, 4294901760
    %v622 = vsub.f32 %v72, %v621
    %v623 = vand.u32 %v622, 4294901760
    %624 = vmatpush1.msra.mxu0 %v623
    %625 = vmatprep.subr.mxu0 0.0
    %v626 = vand.u32 %v73, 4294901760
    %v627 = vsub.f32 %v73, %v626
    %v628 = vand.u32 %v627, 4294901760
    %629 = vmatpush1.msra.mxu0 %v628
    %630 = vmatprep.subr.mxu0 0.0
    %v631 = vand.u32 %v74, 4294901760
    %v632 = vsub.f32 %v74, %v631
    %v633 = vand.u32 %v632, 4294901760
    %634 = vmatpush1.msra.mxu0 %v633
    %635 = vmatprep.subr.mxu0 0.0
    %v636 = vand.u32 %v75, 4294901760
    %v637 = vsub.f32 %v75, %v636
    %v638 = vand.u32 %v637, 4294901760
    %639 = vmatpush1.msra.mxu0 %v638
    %640 = vmatprep.subr.mxu0 0.0
    %v641 = vand.u32 %v76, 4294901760
    %v642 = vsub.f32 %v76, %v641
    %v643 = vand.u32 %v642, 4294901760
    %644 = vmatpush1.msra.mxu0 %v643
    %645 = vmatprep.subr.mxu0 0.0
    %v646 = vand.u32 %v77, 4294901760
    %v647 = vsub.f32 %v77, %v646
    %v648 = vand.u32 %v647, 4294901760
    %649 = vmatpush1.msra.mxu0 %v648
    %650 = vmatprep.subr.mxu0 0.0
    %v651 = vand.u32 %v78, 4294901760
    %v652 = vsub.f32 %v78, %v651
    %v653 = vand.u32 %v652, 4294901760
    %654 = vmatpush1.msra.mxu0 %v653
    %655 = vmatprep.subr.mxu0 0.0
    %v656 = vand.u32 %v79, 4294901760
    %v657 = vsub.f32 %v79, %v656
    %v658 = vand.u32 %v657, 4294901760
    %659 = vmatpush1.msra.mxu0 %v658
    %660 = vmatprep.subr.mxu0 0.0
    %v661 = vand.u32 %v80, 4294901760
    %v662 = vsub.f32 %v80, %v661
    %v663 = vand.u32 %v662, 4294901760
    %664 = vmatpush1.msra.mxu0 %v663
    %665 = vmatprep.subr.mxu0 0.0
    %v666 = vand.u32 %v81, 4294901760
    %v667 = vsub.f32 %v81, %v666
    %v668 = vand.u32 %v667, 4294901760
    %669 = vmatpush1.msra.mxu0 %v668
    %670 = vmatprep.subr.mxu0 0.0
    %v671 = vand.u32 %v82, 4294901760
    %v672 = vsub.f32 %v82, %v671
    %v673 = vand.u32 %v672, 4294901760
    %674 = vmatpush1.msra.mxu0 %v673
    %675 = vmatprep.subr.mxu0 0.0
    %v676 = vand.u32 %v83, 4294901760
    %v677 = vsub.f32 %v83, %v676
    %v678 = vand.u32 %v677, 4294901760
    %679 = vmatpush1.msra.mxu0 %v678
    %680 = vmatprep.subr.mxu0 0.0
    %v681 = vand.u32 %v84, 4294901760
    %v682 = vsub.f32 %v84, %v681
    %v683 = vand.u32 %v682, 4294901760
    %684 = vmatpush1.msra.mxu0 %v683
    %685 = vmatprep.subr.mxu0 0.0
    %v686 = vand.u32 %v85, 4294901760
    %v687 = vsub.f32 %v85, %v686
    %v688 = vand.u32 %v687, 4294901760
    %689 = vmatpush1.msra.mxu0 %v688
    %690 = vmatprep.subr.mxu0 0.0
    %v691 = vand.u32 %v86, 4294901760
    %v692 = vsub.f32 %v86, %v691
    %v693 = vand.u32 %v692, 4294901760
    %694 = vmatpush1.msra.mxu0 %v693
    %695 = vmatprep.subr.mxu0 0.0
    %v696 = vand.u32 %v87, 4294901760
    %v697 = vsub.f32 %v87, %v696
    %v698 = vand.u32 %v697, 4294901760
    %699 = vmatpush1.msra.mxu0 %v698
    %700 = vmatprep.subr.mxu0 0.0
    %701 = vmatpush1.msra.mxu0 0.0
    %702 = vmatprep.subr.mxu0 0.0
    %703 = vmatpush1.msra.mxu0 0.0
    %704 = vmatprep.subr.mxu0 0.0
    %705 = vmatpush1.msra.mxu0 0.0
    %706 = vmatprep.subr.mxu0 0.0
    %707 = vmatpush1.msra.mxu0 0.0
    %708 = vmatprep.subr.mxu0 0.0
    %709 = vmatpush1.msra.mxu0 0.0
    %710 = vmatprep.subr.mxu0 0.0
    %711 = vmatpush1.msra.mxu0 0.0
    %712 = vmatprep.subr.mxu0 0.0
    %713 = vmatpush1.msra.mxu0 0.0
    %714 = vmatprep.subr.mxu0 0.0
    %715 = vmatpush1.msra.mxu0 0.0
    %716 = vmatprep.subr.mxu0 0.0
    %717 = vmatpush1.msra.mxu0 0.0
    %718 = vmatprep.subr.mxu0 0.0
    %719 = vmatpush1.msra.mxu0 0.0
    %720 = vmatprep.subr.mxu0 0.0
    %721 = vmatpush1.msra.mxu0 0.0
    %722 = vmatprep.subr.mxu0 0.0
    %723 = vmatpush1.msra.mxu0 0.0
    %724 = vmatprep.subr.mxu0 0.0
    %725 = vmatpush1.msra.mxu0 0.0
    %726 = vmatprep.subr.mxu0 0.0
    %727 = vmatpush1.msra.mxu0 0.0
    %728 = vmatprep.subr.mxu0 0.0
    %729 = vmatpush1.msra.mxu0 0.0
    %730 = vmatprep.subr.mxu0 0.0
    %731 = vmatpush1.msra.mxu0 0.0
    %732 = vmatprep.mubr.f32.mxu0 0.0
    %v733 = vand.u32 %v88, 4294901760
    %734 = vmatmul.mubr.f32.gmra.mrb[0].mxu0 %v733
    %v735 = vpop.f32.mrb[0].mxu0
    %v736 = vadd.f32 %v593, %v735
    %v737 = vpop.f32.mrb[0].mxu0
    %738 = vmatprep.mubr.f32.mxu0 0.0
    %v739 = vand.u32 %v89, 4294901760
    %740 = vmatmul.mubr.f32.gmra.mrb[0].mxu0 %v739
    %v741 = vpop.f32.mrb[0].mxu0
    %v742 = vadd.f32 %v601, %v741
    %v743 = vpop.f32.mrb[0].mxu0
    %744 = vmatprep.mubr.f32.mxu0 0.0
    %v745 = vand.u32 %v90, 4294901760
    %746 = vmatmul.mubr.f32.gmra.mrb[0].mxu0 %v745
    %v747 = vpop.f32.mrb[0].mxu0
    %v748 = vadd.f32 %v609, %v747
    %v749 = vpop.f32.mrb[0].mxu0
    %750 = vmatprep.mubr.f32.mxu0 0.0
    %v751 = vand.u32 %v91, 4294901760
    %752 = vmatmul.mubr.f32.gmra.mrb[0].mxu0 %v751
    %v753 = vpop.f32.mrb[0].mxu0
    %v754 = vadd.f32 %v617, %v753
    %v755 = vpop.f32.mrb[0].mxu0
    %756 = vdwg.mxu0
    %757 = vmatprep.subr.mxu0 0.0
    %v758 = vand.u32 %v72, 4294901760
    %759 = vmatpush1.msra.mxu0 %v758
    %760 = vmatprep.subr.mxu0 0.0
    %v761 = vand.u32 %v73, 4294901760
    %762 = vmatpush1.msra.mxu0 %v761
    %763 = vmatprep.subr.mxu0 0.0
    %v764 = vand.u32 %v74, 4294901760
    %765 = vmatpush1.msra.mxu0 %v764
    %766 = vmatprep.subr.mxu0 0.0
    %v767 = vand.u32 %v75, 4294901760
    %768 = vmatpush1.msra.mxu0 %v767
    %769 = vmatprep.subr.mxu0 0.0
    %v770 = vand.u32 %v76, 4294901760
    %771 = vmatpush1.msra.mxu0 %v770
    %772 = vmatprep.subr.mxu0 0.0
    %v773 = vand.u32 %v77, 4294901760
    %774 = vmatpush1.msra.mxu0 %v773
    %775 = vmatprep.subr.mxu0 0.0
    %v776 = vand.u32 %v78, 4294901760
    %777 = vmatpush1.msra.mxu0 %v776
    %778 = vmatprep.subr.mxu0 0.0
    %v779 = vand.u32 %v79, 4294901760
    %780 = vmatpush1.msra.mxu0 %v779
    %781 = vmatprep.subr.mxu0 0.0
    %v782 = vand.u32 %v80, 4294901760
    %783 = vmatpush1.msra.mxu0 %v782
    %784 = vmatprep.subr.mxu0 0.0
    %v785 = vand.u32 %v81, 4294901760
    %786 = vmatpush1.msra.mxu0 %v785
    %787 = vmatprep.subr.mxu0 0.0
    %v788 = vand.u32 %v82, 4294901760
    %789 = vmatpush1.msra.mxu0 %v788
    %790 = vmatprep.subr.mxu0 0.0
    %v791 = vand.u32 %v83, 4294901760
    %792 = vmatpush1.msra.mxu0 %v791
    %793 = vmatprep.subr.mxu0 0.0
    %v794 = vand.u32 %v84, 4294901760
    %795 = vmatpush1.msra.mxu0 %v794
    %796 = vmatprep.subr.mxu0 0.0
    %v797 = vand.u32 %v85, 4294901760
    %798 = vmatpush1.msra.mxu0 %v797
    %799 = vmatprep.subr.mxu0 0.0
    %v800 = vand.u32 %v86, 4294901760
    %801 = vmatpush1.msra.mxu0 %v800
    %802 = vmatprep.subr.mxu0 0.0
    %v803 = vand.u32 %v87, 4294901760
    %804 = vmatpush1.msra.mxu0 %v803
    %805 = vmatprep.subr.mxu0 0.0
    %806 = vmatpush1.msra.mxu0 0.0
    %807 = vmatprep.subr.mxu0 0.0
    %808 = vmatpush1.msra.mxu0 0.0
    %809 = vmatprep.subr.mxu0 0.0
    %810 = vmatpush1.msra.mxu0 0.0
    %811 = vmatprep.subr.mxu0 0.0
    %812 = vmatpush1.msra.mxu0 0.0
    %813 = vmatprep.subr.mxu0 0.0
    %814 = vmatpush1.msra.mxu0 0.0
    %815 = vmatprep.subr.mxu0 0.0
    %816 = vmatpush1.msra.mxu0 0.0
    %817 = vmatprep.subr.mxu0 0.0
    %818 = vmatpush1.msra.mxu0 0.0
    %819 = vmatprep.subr.mxu0 0.0
    %820 = vmatpush1.msra.mxu0 0.0
    %821 = vmatprep.subr.mxu0 0.0
    %822 = vmatpush1.msra.mxu0 0.0
    %823 = vmatprep.subr.mxu0 0.0
    %824 = vmatpush1.msra.mxu0 0.0
    %825 = vmatprep.subr.mxu0 0.0
    %826 = vmatpush1.msra.mxu0 0.0
    %827 = vmatprep.subr.mxu0 0.0
    %828 = vmatpush1.msra.mxu0 0.0
    %829 = vmatprep.subr.mxu0 0.0
    %830 = vmatpush1.msra.mxu0 0.0
    %831 = vmatprep.subr.mxu0 0.0
    %832 = vmatpush1.msra.mxu0 0.0
    %833 = vmatprep.subr.mxu0 0.0
    %834 = vmatpush1.msra.mxu0 0.0
    %835 = vmatprep.subr.mxu0 0.0
    %836 = vmatpush1.msra.mxu0 0.0
    %837 = vmatprep.mubr.f32.mxu0 0.0
    %v838 = vand.u32 %v88, 4294901760
    %839 = vmatmul.mubr.f32.gmra.mrb[0].mxu0 %v838
    %v840 = vpop.f32.mrb[0].mxu0
    %v841 = vadd.f32 %v736, %v840
    %v842 = vpop.f32.mrb[0].mxu0
    %843 = vmatprep.mubr.f32.mxu0 0.0
    %v844 = vand.u32 %v89, 4294901760
    %845 = vmatmul.mubr.f32.gmra.mrb[0].mxu0 %v844
    %v846 = vpop.f32.mrb[0].mxu0
    %v847 = vadd.f32 %v742, %v846
    %v848 = vpop.f32.mrb[0].mxu0
    %849 = vmatprep.mubr.f32.mxu0 0.0
    %v850 = vand.u32 %v90, 4294901760
    %851 = vmatmul.mubr.f32.gmra.mrb[0].mxu0 %v850
    %v852 = vpop.f32.mrb[0].mxu0
    %v853 = vadd.f32 %v748, %v852
    %v854 = vpop.f32.mrb[0].mxu0
    %855 = vmatprep.mubr.f32.mxu0 0.0
    %v856 = vand.u32 %v91, 4294901760
    %857 = vmatmul.mubr.f32.gmra.mrb[0].mxu0 %v856
    %v858 = vpop.f32.mrb[0].mxu0
    %v859 = vadd.f32 %v754, %v858
    %v860 = vpop.f32.mrb[0].mxu0
    %861 = vdwg.mxu0
    %v862 = vld [vmem:[%s1] sm:$0xff]
    %v863 = vld [vmem:[%s1 + $0x8] sm:$0xff]
    %v864 = vld [vmem:[%s1 + $0x10] sm:$0xff]
    %v865 = vld [vmem:[%s1 + $0x18] sm:$0xff]
    %v866 = vld [vmem:[%s1 + $0x20] sm:$0xff]
    %v867 = vld [vmem:[%s1 + $0x28] sm:$0xff]
    %v868 = vld [vmem:[%s1 + $0x30] sm:$0xff]
    %v869 = vld [vmem:[%s1 + $0x38] sm:$0xff]
    %v870 = vld [vmem:[%s1 + $0x40] sm:$0xff]
    %v871 = vld [vmem:[%s1 + $0x48] sm:$0xff]
    %v872 = vld [vmem:[%s1 + $0x50] sm:$0xff]
    %v873 = vld [vmem:[%s1 + $0x58] sm:$0xff]
    %v874 = vld [vmem:[%s1 + $0x60] sm:$0xff]
    %v875 = vld [vmem:[%s1 + $0x68] sm:$0xff]
    %v876 = vld [vmem:[%s1 + $0x70] sm:$0xff]
    %v877 = vld [vmem:[%s1 + $0x78] sm:$0xff]
    %vm878 = vcmask 261120
    %v880 = vsel %vm878, %v862, 0
    %v883 = vsel %vm878, %v863, 0
    %v886 = vsel %vm878, %v864, 0
    %v889 = vsel %vm878, %v865, 0
    %v892 = vsel %vm878, %v866, 0
    %v895 = vsel %vm878, %v867, 0
    %v898 = vsel %vm878, %v868, 0
    %v901 = vsel %vm878, %v869, 0
    %v904 = vsel %vm878, %v870, 0
    %v907 = vsel %vm878, %v871, 0
    %v910 = vsel %vm878, %v872, 0
    %v913 = vsel %vm878, %v873, 0
    %v916 = vsel %vm878, %v874, 0
    %v919 = vsel %vm878, %v875, 0
    %v922 = vsel %vm878, %v876, 0
    %v925 = vsel %vm878, %v877, 0
    %927 = vmatprep.subr.mxu0 0.0
    %v928 = vand.u32 %v841, 4294901760
    %929 = vmatpush1.msra.mxu0 %v928
    %930 = vmatprep.subr.mxu0 0.0
    %v931 = vand.u32 %v847, 4294901760
    %932 = vmatpush1.msra.mxu0 %v931
    %933 = vmatprep.subr.mxu0 0.0
    %v934 = vand.u32 %v853, 4294901760
    %935 = vmatpush1.msra.mxu0 %v934
    %936 = vmatprep.subr.mxu0 0.0
    %v937 = vand.u32 %v859, 4294901760
    %938 = vmatpush1.msra.mxu0 %v937
    %939 = vmatprep.subr.mxu0 0.0
    %940 = vmatpush1.msra.mxu0 0.0
    %941 = vmatprep.subr.mxu0 0.0
    %942 = vmatpush1.msra.mxu0 0.0
    %943 = vmatprep.subr.mxu0 0.0
    %944 = vmatpush1.msra.mxu0 0.0
    %945 = vmatprep.subr.mxu0 0.0
    %946 = vmatpush1.msra.mxu0 0.0
    %947 = vmatprep.subr.mxu0 0.0
    %948 = vmatpush1.msra.mxu0 0.0
    %949 = vmatprep.subr.mxu0 0.0
    %950 = vmatpush1.msra.mxu0 0.0
    %951 = vmatprep.subr.mxu0 0.0
    %952 = vmatpush1.msra.mxu0 0.0
    %953 = vmatprep.subr.mxu0 0.0
    %954 = vmatpush1.msra.mxu0 0.0
    %955 = vmatprep.subr.mxu0 0.0
    %956 = vmatpush1.msra.mxu0 0.0
    %957 = vmatprep.subr.mxu0 0.0
    %958 = vmatpush1.msra.mxu0 0.0
    %959 = vmatprep.subr.mxu0 0.0
    %960 = vmatpush1.msra.mxu0 0.0
    %961 = vmatprep.subr.mxu0 0.0
    %962 = vmatpush1.msra.mxu0 0.0
    %963 = vmatprep.subr.mxu0 0.0
    %964 = vmatpush1.msra.mxu0 0.0
    %965 = vmatprep.subr.mxu0 0.0
    %966 = vmatpush1.msra.mxu0 0.0
    %967 = vmatprep.subr.mxu0 0.0
    %968 = vmatpush1.msra.mxu0 0.0
    %969 = vmatprep.subr.mxu0 0.0
    %970 = vmatpush1.msra.mxu0 0.0
    %971 = vmatprep.subr.mxu0 0.0
    %972 = vmatpush1.msra.mxu0 0.0
    %973 = vmatprep.subr.mxu0 0.0
    %974 = vmatpush1.msra.mxu0 0.0
    %975 = vmatprep.subr.mxu0 0.0
    %976 = vmatpush1.msra.mxu0 0.0
    %977 = vmatprep.subr.mxu0 0.0
    %978 = vmatpush1.msra.mxu0 0.0
    %979 = vmatprep.subr.mxu0 0.0
    %980 = vmatpush1.msra.mxu0 0.0
    %981 = vmatprep.subr.mxu0 0.0
    %982 = vmatpush1.msra.mxu0 0.0
    %983 = vmatprep.subr.mxu0 0.0
    %984 = vmatpush1.msra.mxu0 0.0
    %985 = vmatprep.subr.mxu0 0.0
    %986 = vmatpush1.msra.mxu0 0.0
    %987 = vmatprep.subr.mxu0 0.0
    %988 = vmatpush1.msra.mxu0 0.0
    %989 = vmatprep.subr.mxu0 0.0
    %990 = vmatpush1.msra.mxu0 0.0
    %991 = vmatprep.subr.mxu0 0.0
    %992 = vmatpush1.msra.mxu0 0.0
    %993 = vmatprep.subr.mxu0 0.0
    %994 = vmatpush1.msra.mxu0 0.0
    %995 = vmatprep.mubr.f32.mxu0 0.0
    %v996 = vand.u32 %v880, 4294901760
    %v997 = vsub.f32 %v880, %v996
    %v998 = vand.u32 %v997, 4294901760
    %v999 = vsub.f32 %v997, %v998
    %v1000 = vand.u32 %v999, 4294901760
    %1001 = vmatmul.mubr.f32.gmra.mrb[0].mxu0 %v1000
    %v1002 = vpop.f32.mrb[0].mxu0
    %v1003 = vadd.f32 0.0, %v1002
    %v1004 = vpop.f32.mrb[0].mxu0
    %1005 = vmatprep.mubr.f32.mxu0 0.0
    %v1006 = vand.u32 %v883, 4294901760
    %v1007 = vsub.f32 %v883, %v1006
    %v1008 = vand.u32 %v1007, 4294901760
    %v1009 = vsub.f32 %v1007, %v1008
    %v1010 = vand.u32 %v1009, 4294901760
    %1011 = vmatmul.mubr.f32.gmra.mrb[0].mxu0 %v1010
    %v1012 = vpop.f32.mrb[0].mxu0
    %v1013 = vadd.f32 0.0, %v1012
    %v1014 = vpop.f32.mrb[0].mxu0
    %1015 = vmatprep.mubr.f32.mxu0 0.0
    %v1016 = vand.u32 %v886, 4294901760
    %v1017 = vsub.f32 %v886, %v1016
    %v1018 = vand.u32 %v1017, 4294901760
    %v1019 = vsub.f32 %v1017, %v1018
    %v1020 = vand.u32 %v1019, 4294901760
    %1021 = vmatmul.mubr.f32.gmra.mrb[0].mxu0 %v1020
    %v1022 = vpop.f32.mrb[0].mxu0
    %v1023 = vadd.f32 0.0, %v1022
    %v1024 = vpop.f32.mrb[0].mxu0
    %1025 = vmatprep.mubr.f32.mxu0 0.0
    %v1026 = vand.u32 %v889, 4294901760
    %v1027 = vsub.f32 %v889, %v1026
    %v1028 = vand.u32 %v1027, 4294901760
    %v1029 = vsub.f32 %v1027, %v1028
    %v1030 = vand.u32 %v1029, 4294901760
    %1031 = vmatmul.mubr.f32.gmra.mrb[0].mxu0 %v1030
    %v1032 = vpop.f32.mrb[0].mxu0
    %v1033 = vadd.f32 0.0, %v1032
    %v1034 = vpop.f32.mrb[0].mxu0
    %1035 = vmatprep.mubr.f32.mxu0 0.0
    %v1036 = vand.u32 %v892, 4294901760
    %v1037 = vsub.f32 %v892, %v1036
    %v1038 = vand.u32 %v1037, 4294901760
    %v1039 = vsub.f32 %v1037, %v1038
    %v1040 = vand.u32 %v1039, 4294901760
    %1041 = vmatmul.mubr.f32.gmra.mrb[0].mxu0 %v1040
    %v1042 = vpop.f32.mrb[0].mxu0
    %v1043 = vadd.f32 0.0, %v1042
    %v1044 = vpop.f32.mrb[0].mxu0
    %1045 = vmatprep.mubr.f32.mxu0 0.0
    %v1046 = vand.u32 %v895, 4294901760
    %v1047 = vsub.f32 %v895, %v1046
    %v1048 = vand.u32 %v1047, 4294901760
    %v1049 = vsub.f32 %v1047, %v1048
    %v1050 = vand.u32 %v1049, 4294901760
    %1051 = vmatmul.mubr.f32.gmra.mrb[0].mxu0 %v1050
    %v1052 = vpop.f32.mrb[0].mxu0
    %v1053 = vadd.f32 0.0, %v1052
    %v1054 = vpop.f32.mrb[0].mxu0
    %1055 = vmatprep.mubr.f32.mxu0 0.0
    %v1056 = vand.u32 %v898, 4294901760
    %v1057 = vsub.f32 %v898, %v1056
    %v1058 = vand.u32 %v1057, 4294901760
    %v1059 = vsub.f32 %v1057, %v1058
    %v1060 = vand.u32 %v1059, 4294901760
    %1061 = vmatmul.mubr.f32.gmra.mrb[0].mxu0 %v1060
    %v1062 = vpop.f32.mrb[0].mxu0
    %v1063 = vadd.f32 0.0, %v1062
    %v1064 = vpop.f32.mrb[0].mxu0
    %1065 = vmatprep.mubr.f32.mxu0 0.0
    %v1066 = vand.u32 %v901, 4294901760
    %v1067 = vsub.f32 %v901, %v1066
    %v1068 = vand.u32 %v1067, 4294901760
    %v1069 = vsub.f32 %v1067, %v1068
    %v1070 = vand.u32 %v1069, 4294901760
    %1071 = vmatmul.mubr.f32.gmra.mrb[0].mxu0 %v1070
    %v1072 = vpop.f32.mrb[0].mxu0
    %v1073 = vadd.f32 0.0, %v1072
    %v1074 = vpop.f32.mrb[0].mxu0
    %1075 = vmatprep.mubr.f32.mxu0 0.0
    %v1076 = vand.u32 %v904, 4294901760
    %v1077 = vsub.f32 %v904, %v1076
    %v1078 = vand.u32 %v1077, 4294901760
    %v1079 = vsub.f32 %v1077, %v1078
    %v1080 = vand.u32 %v1079, 4294901760
    %1081 = vmatmul.mubr.f32.gmra.mrb[0].mxu0 %v1080
    %v1082 = vpop.f32.mrb[0].mxu0
    %v1083 = vadd.f32 0.0, %v1082
    %v1084 = vpop.f32.mrb[0].mxu0
    %1085 = vmatprep.mubr.f32.mxu0 0.0
    %v1086 = vand.u32 %v907, 4294901760
    %v1087 = vsub.f32 %v907, %v1086
    %v1088 = vand.u32 %v1087, 4294901760
    %v1089 = vsub.f32 %v1087, %v1088
    %v1090 = vand.u32 %v1089, 4294901760
    %1091 = vmatmul.mubr.f32.gmra.mrb[0].mxu0 %v1090
    %v1092 = vpop.f32.mrb[0].mxu0
    %v1093 = vadd.f32 0.0, %v1092
    %v1094 = vpop.f32.mrb[0].mxu0
    %1095 = vmatprep.mubr.f32.mxu0 0.0
    %v1096 = vand.u32 %v910, 4294901760
    %v1097 = vsub.f32 %v910, %v1096
    %v1098 = vand.u32 %v1097, 4294901760
    %v1099 = vsub.f32 %v1097, %v1098
    %v1100 = vand.u32 %v1099, 4294901760
    %1101 = vmatmul.mubr.f32.gmra.mrb[0].mxu0 %v1100
    %v1102 = vpop.f32.mrb[0].mxu0
    %v1103 = vadd.f32 0.0, %v1102
    %v1104 = vpop.f32.mrb[0].mxu0
    %1105 = vmatprep.mubr.f32.mxu0 0.0
    %v1106 = vand.u32 %v913, 4294901760
    %v1107 = vsub.f32 %v913, %v1106
    %v1108 = vand.u32 %v1107, 4294901760
    %v1109 = vsub.f32 %v1107, %v1108
    %v1110 = vand.u32 %v1109, 4294901760
    %1111 = vmatmul.mubr.f32.gmra.mrb[0].mxu0 %v1110
    %v1112 = vpop.f32.mrb[0].mxu0
    %v1113 = vadd.f32 0.0, %v1112
    %v1114 = vpop.f32.mrb[0].mxu0
    %1115 = vmatprep.mubr.f32.mxu0 0.0
    %v1116 = vand.u32 %v916, 4294901760
    %v1117 = vsub.f32 %v916, %v1116
    %v1118 = vand.u32 %v1117, 4294901760
    %v1119 = vsub.f32 %v1117, %v1118
    %v1120 = vand.u32 %v1119, 4294901760
    %1121 = vmatmul.mubr.f32.gmra.mrb[0].mxu0 %v1120
    %v1122 = vpop.f32.mrb[0].mxu0
    %v1123 = vadd.f32 0.0, %v1122
    %v1124 = vpop.f32.mrb[0].mxu0
    %1125 = vmatprep.mubr.f32.mxu0 0.0
    %v1126 = vand.u32 %v919, 4294901760
    %v1127 = vsub.f32 %v919, %v1126
    %v1128 = vand.u32 %v1127, 4294901760
    %v1129 = vsub.f32 %v1127, %v1128
    %v1130 = vand.u32 %v1129, 4294901760
    %1131 = vmatmul.mubr.f32.gmra.mrb[0].mxu0 %v1130
    %v1132 = vpop.f32.mrb[0].mxu0
    %v1133 = vadd.f32 0.0, %v1132
    %v1134 = vpop.f32.mrb[0].mxu0
    %1135 = vmatprep.mubr.f32.mxu0 0.0
    %v1136 = vand.u32 %v922, 4294901760
    %v1137 = vsub.f32 %v922, %v1136
    %v1138 = vand.u32 %v1137, 4294901760
    %v1139 = vsub.f32 %v1137, %v1138
    %v1140 = vand.u32 %v1139, 4294901760
    %1141 = vmatmul.mubr.f32.gmra.mrb[0].mxu0 %v1140
    %v1142 = vpop.f32.mrb[0].mxu0
    %v1143 = vadd.f32 0.0, %v1142
    %v1144 = vpop.f32.mrb[0].mxu0
    %1145 = vmatprep.mubr.f32.mxu0 0.0
    %v1146 = vand.u32 %v925, 4294901760
    %v1147 = vsub.f32 %v925, %v1146
    %v1148 = vand.u32 %v1147, 4294901760
    %v1149 = vsub.f32 %v1147, %v1148
    %v1150 = vand.u32 %v1149, 4294901760
    %1151 = vmatmul.mubr.f32.gmra.mrb[0].mxu0 %v1150
    %v1152 = vpop.f32.mrb[0].mxu0
    %v1153 = vadd.f32 0.0, %v1152
    %v1154 = vpop.f32.mrb[0].mxu0
    %1155 = vdwg.mxu0
    %1156 = vmatprep.subr.mxu0 0.0
    %v1157 = vand.u32 %v841, 4294901760
    %v1158 = vsub.f32 %v841, %v1157
    %v1159 = vand.u32 %v1158, 4294901760
    %v1160 = vsub.f32 %v1158, %v1159
    %v1161 = vand.u32 %v1160, 4294901760
    %1162 = vmatpush1.msra.mxu0 %v1161
    %1163 = vmatprep.subr.mxu0 0.0
    %v1164 = vand.u32 %v847, 4294901760
    %v1165 = vsub.f32 %v847, %v1164
    %v1166 = vand.u32 %v1165, 4294901760
    %v1167 = vsub.f32 %v1165, %v1166
    %v1168 = vand.u32 %v1167, 4294901760
    %1169 = vmatpush1.msra.mxu0 %v1168
    %1170 = vmatprep.subr.mxu0 0.0
    %v1171 = vand.u32 %v853, 4294901760
    %v1172 = vsub.f32 %v853, %v1171
    %v1173 = vand.u32 %v1172, 4294901760
    %v1174 = vsub.f32 %v1172, %v1173
    %v1175 = vand.u32 %v1174, 4294901760
    %1176 = vmatpush1.msra.mxu0 %v1175
    %1177 = vmatprep.subr.mxu0 0.0
    %v1178 = vand.u32 %v859, 4294901760
    %v1179 = vsub.f32 %v859, %v1178
    %v1180 = vand.u32 %v1179, 4294901760
    %v1181 = vsub.f32 %v1179, %v1180
    %v1182 = vand.u32 %v1181, 4294901760
    %1183 = vmatpush1.msra.mxu0 %v1182
    %1184 = vmatprep.subr.mxu0 0.0
    %1185 = vmatpush1.msra.mxu0 0.0
    %1186 = vmatprep.subr.mxu0 0.0
    %1187 = vmatpush1.msra.mxu0 0.0
    %1188 = vmatprep.subr.mxu0 0.0
    %1189 = vmatpush1.msra.mxu0 0.0
    %1190 = vmatprep.subr.mxu0 0.0
    %1191 = vmatpush1.msra.mxu0 0.0
    %1192 = vmatprep.subr.mxu0 0.0
    %1193 = vmatpush1.msra.mxu0 0.0
    %1194 = vmatprep.subr.mxu0 0.0
    %1195 = vmatpush1.msra.mxu0 0.0
    %1196 = vmatprep.subr.mxu0 0.0
    %1197 = vmatpush1.msra.mxu0 0.0
    %1198 = vmatprep.subr.mxu0 0.0
    %1199 = vmatpush1.msra.mxu0 0.0
    %1200 = vmatprep.subr.mxu0 0.0
    %1201 = vmatpush1.msra.mxu0 0.0
    %1202 = vmatprep.subr.mxu0 0.0
    %1203 = vmatpush1.msra.mxu0 0.0
    %1204 = vmatprep.subr.mxu0 0.0
    %1205 = vmatpush1.msra.mxu0 0.0
    %1206 = vmatprep.subr.mxu0 0.0
    %1207 = vmatpush1.msra.mxu0 0.0
    %1208 = vmatprep.subr.mxu0 0.0
    %1209 = vmatpush1.msra.mxu0 0.0
    %1210 = vmatprep.subr.mxu0 0.0
    %1211 = vmatpush1.msra.mxu0 0.0
    %1212 = vmatprep.subr.mxu0 0.0
    %1213 = vmatpush1.msra.mxu0 0.0
    %1214 = vmatprep.subr.mxu0 0.0
    %1215 = vmatpush1.msra.mxu0 0.0
    %1216 = vmatprep.subr.mxu0 0.0
    %1217 = vmatpush1.msra.mxu0 0.0
    %1218 = vmatprep.subr.mxu0 0.0
    %1219 = vmatpush1.msra.mxu0 0.0
    %1220 = vmatprep.subr.mxu0 0.0
    %1221 = vmatpush1.msra.mxu0 0.0
    %1222 = vmatprep.subr.mxu0 0.0
    %1223 = vmatpush1.msra.mxu0 0.0
    %1224 = vmatprep.subr.mxu0 0.0
    %1225 = vmatpush1.msra.mxu0 0.0
    %1226 = vmatprep.subr.mxu0 0.0
    %1227 = vmatpush1.msra.mxu0 0.0
    %1228 = vmatprep.subr.mxu0 0.0
    %1229 = vmatpush1.msra.mxu0 0.0
    %1230 = vmatprep.subr.mxu0 0.0
    %1231 = vmatpush1.msra.mxu0 0.0
    %1232 = vmatprep.subr.mxu0 0.0
    %1233 = vmatpush1.msra.mxu0 0.0
    %1234 = vmatprep.subr.mxu0 0.0
    %1235 = vmatpush1.msra.mxu0 0.0
    %1236 = vmatprep.subr.mxu0 0.0
    %1237 = vmatpush1.msra.mxu0 0.0
    %1238 = vmatprep.subr.mxu0 0.0
    %1239 = vmatpush1.msra.mxu0 0.0
    %1240 = vmatprep.mubr.f32.mxu0 0.0
    %v1241 = vand.u32 %v880, 4294901760
    %1242 = vmatmul.mubr.f32.gmra.mrb[0].mxu0 %v1241
    %v1243 = vpop.f32.mrb[0].mxu0
    %v1244 = vadd.f32 %v1003, %v1243
    %v1245 = vpop.f32.mrb[0].mxu0
    %1246 = vmatprep.mubr.f32.mxu0 0.0
    %v1247 = vand.u32 %v883, 4294901760
    %1248 = vmatmul.mubr.f32.gmra.mrb[0].mxu0 %v1247
    %v1249 = vpop.f32.mrb[0].mxu0
    %v1250 = vadd.f32 %v1013, %v1249
    %v1251 = vpop.f32.mrb[0].mxu0
    %1252 = vmatprep.mubr.f32.mxu0 0.0
    %v1253 = vand.u32 %v886, 4294901760
    %1254 = vmatmul.mubr.f32.gmra.mrb[0].mxu0 %v1253
    %v1255 = vpop.f32.mrb[0].mxu0
    %v1256 = vadd.f32 %v1023, %v1255
    %v1257 = vpop.f32.mrb[0].mxu0
    %1258 = vmatprep.mubr.f32.mxu0 0.0
    %v1259 = vand.u32 %v889, 4294901760
    %1260 = vmatmul.mubr.f32.gmra.mrb[0].mxu0 %v1259
    %v1261 = vpop.f32.mrb[0].mxu0
    %v1262 = vadd.f32 %v1033, %v1261
    %v1263 = vpop.f32.mrb[0].mxu0
    %1264 = vmatprep.mubr.f32.mxu0 0.0
    %v1265 = vand.u32 %v892, 4294901760
    %1266 = vmatmul.mubr.f32.gmra.mrb[0].mxu0 %v1265
    %v1267 = vpop.f32.mrb[0].mxu0
    %v1268 = vadd.f32 %v1043, %v1267
    %v1269 = vpop.f32.mrb[0].mxu0
    %1270 = vmatprep.mubr.f32.mxu0 0.0
    %v1271 = vand.u32 %v895, 4294901760
    %1272 = vmatmul.mubr.f32.gmra.mrb[0].mxu0 %v1271
    %v1273 = vpop.f32.mrb[0].mxu0
    %v1274 = vadd.f32 %v1053, %v1273
    %v1275 = vpop.f32.mrb[0].mxu0
    %1276 = vmatprep.mubr.f32.mxu0 0.0
    %v1277 = vand.u32 %v898, 4294901760
    %1278 = vmatmul.mubr.f32.gmra.mrb[0].mxu0 %v1277
    %v1279 = vpop.f32.mrb[0].mxu0
    %v1280 = vadd.f32 %v1063, %v1279
    %v1281 = vpop.f32.mrb[0].mxu0
    %1282 = vmatprep.mubr.f32.mxu0 0.0
    %v1283 = vand.u32 %v901, 4294901760
    %1284 = vmatmul.mubr.f32.gmra.mrb[0].mxu0 %v1283
    %v1285 = vpop.f32.mrb[0].mxu0
    %v1286 = vadd.f32 %v1073, %v1285
    %v1287 = vpop.f32.mrb[0].mxu0
    %1288 = vmatprep.mubr.f32.mxu0 0.0
    %v1289 = vand.u32 %v904, 4294901760
    %1290 = vmatmul.mubr.f32.gmra.mrb[0].mxu0 %v1289
    %v1291 = vpop.f32.mrb[0].mxu0
    %v1292 = vadd.f32 %v1083, %v1291
    %v1293 = vpop.f32.mrb[0].mxu0
    %1294 = vmatprep.mubr.f32.mxu0 0.0
    %v1295 = vand.u32 %v907, 4294901760
    %1296 = vmatmul.mubr.f32.gmra.mrb[0].mxu0 %v1295
    %v1297 = vpop.f32.mrb[0].mxu0
    %v1298 = vadd.f32 %v1093, %v1297
    %v1299 = vpop.f32.mrb[0].mxu0
    %1300 = vmatprep.mubr.f32.mxu0 0.0
    %v1301 = vand.u32 %v910, 4294901760
    %1302 = vmatmul.mubr.f32.gmra.mrb[0].mxu0 %v1301
    %v1303 = vpop.f32.mrb[0].mxu0
    %v1304 = vadd.f32 %v1103, %v1303
    %v1305 = vpop.f32.mrb[0].mxu0
    %1306 = vmatprep.mubr.f32.mxu0 0.0
    %v1307 = vand.u32 %v913, 4294901760
    %1308 = vmatmul.mubr.f32.gmra.mrb[0].mxu0 %v1307
    %v1309 = vpop.f32.mrb[0].mxu0
    %v1310 = vadd.f32 %v1113, %v1309
    %v1311 = vpop.f32.mrb[0].mxu0
    %1312 = vmatprep.mubr.f32.mxu0 0.0
    %v1313 = vand.u32 %v916, 4294901760
    %1314 = vmatmul.mubr.f32.gmra.mrb[0].mxu0 %v1313
    %v1315 = vpop.f32.mrb[0].mxu0
    %v1316 = vadd.f32 %v1123, %v1315
    %v1317 = vpop.f32.mrb[0].mxu0
    %1318 = vmatprep.mubr.f32.mxu0 0.0
    %v1319 = vand.u32 %v919, 4294901760
    %1320 = vmatmul.mubr.f32.gmra.mrb[0].mxu0 %v1319
    %v1321 = vpop.f32.mrb[0].mxu0
    %v1322 = vadd.f32 %v1133, %v1321
    %v1323 = vpop.f32.mrb[0].mxu0
    %1324 = vmatprep.mubr.f32.mxu0 0.0
    %v1325 = vand.u32 %v922, 4294901760
    %1326 = vmatmul.mubr.f32.gmra.mrb[0].mxu0 %v1325
    %v1327 = vpop.f32.mrb[0].mxu0
    %v1328 = vadd.f32 %v1143, %v1327
    %v1329 = vpop.f32.mrb[0].mxu0
    %1330 = vmatprep.mubr.f32.mxu0 0.0
    %v1331 = vand.u32 %v925, 4294901760
    %1332 = vmatmul.mubr.f32.gmra.mrb[0].mxu0 %v1331
    %v1333 = vpop.f32.mrb[0].mxu0
    %v1334 = vadd.f32 %v1153, %v1333
    %v1335 = vpop.f32.mrb[0].mxu0
    %1336 = vdwg.mxu0
    %1337 = vmatprep.subr.mxu0 0.0
    %v1338 = vand.u32 %v841, 4294901760
    %v1339 = vsub.f32 %v841, %v1338
    %1340 = vmatpush1.msra.mxu0 %v1339
    %1341 = vmatprep.subr.mxu0 0.0
    %v1342 = vand.u32 %v847, 4294901760
    %v1343 = vsub.f32 %v847, %v1342
    %1344 = vmatpush1.msra.mxu0 %v1343
    %1345 = vmatprep.subr.mxu0 0.0
    %v1346 = vand.u32 %v853, 4294901760
    %v1347 = vsub.f32 %v853, %v1346
    %1348 = vmatpush1.msra.mxu0 %v1347
    %1349 = vmatprep.subr.mxu0 0.0
    %v1350 = vand.u32 %v859, 4294901760
    %v1351 = vsub.f32 %v859, %v1350
    %1352 = vmatpush1.msra.mxu0 %v1351
    %1353 = vmatprep.subr.mxu0 0.0
    %1354 = vmatpush1.msra.mxu0 0.0
    %1355 = vmatprep.subr.mxu0 0.0
    %1356 = vmatpush1.msra.mxu0 0.0
    %1357 = vmatprep.subr.mxu0 0.0
    %1358 = vmatpush1.msra.mxu0 0.0
    %1359 = vmatprep.subr.mxu0 0.0
    %1360 = vmatpush1.msra.mxu0 0.0
    %1361 = vmatprep.subr.mxu0 0.0
    %1362 = vmatpush1.msra.mxu0 0.0
    %1363 = vmatprep.subr.mxu0 0.0
    %1364 = vmatpush1.msra.mxu0 0.0
    %1365 = vmatprep.subr.mxu0 0.0
    %1366 = vmatpush1.msra.mxu0 0.0
    %1367 = vmatprep.subr.mxu0 0.0
    %1368 = vmatpush1.msra.mxu0 0.0
    %1369 = vmatprep.subr.mxu0 0.0
    %1370 = vmatpush1.msra.mxu0 0.0
    %1371 = vmatprep.subr.mxu0 0.0
    %1372 = vmatpush1.msra.mxu0 0.0
    %1373 = vmatprep.subr.mxu0 0.0
    %1374 = vmatpush1.msra.mxu0 0.0
    %1375 = vmatprep.subr.mxu0 0.0
    %1376 = vmatpush1.msra.mxu0 0.0
    %1377 = vmatprep.subr.mxu0 0.0
    %1378 = vmatpush1.msra.mxu0 0.0
    %1379 = vmatprep.subr.mxu0 0.0
    %1380 = vmatpush1.msra.mxu0 0.0
    %1381 = vmatprep.subr.mxu0 0.0
    %1382 = vmatpush1.msra.mxu0 0.0
    %1383 = vmatprep.subr.mxu0 0.0
    %1384 = vmatpush1.msra.mxu0 0.0
    %1385 = vmatprep.subr.mxu0 0.0
    %1386 = vmatpush1.msra.mxu0 0.0
    %1387 = vmatprep.subr.mxu0 0.0
    %1388 = vmatpush1.msra.mxu0 0.0
    %1389 = vmatprep.subr.mxu0 0.0
    %1390 = vmatpush1.msra.mxu0 0.0
    %1391 = vmatprep.subr.mxu0 0.0
    %1392 = vmatpush1.msra.mxu0 0.0
    %1393 = vmatprep.subr.mxu0 0.0
    %1394 = vmatpush1.msra.mxu0 0.0
    %1395 = vmatprep.subr.mxu0 0.0
    %1396 = vmatpush1.msra.mxu0 0.0
    %1397 = vmatprep.subr.mxu0 0.0
    %1398 = vmatpush1.msra.mxu0 0.0
    %1399 = vmatprep.subr.mxu0 0.0
    %1400 = vmatpush1.msra.mxu0 0.0
    %1401 = vmatprep.subr.mxu0 0.0
    %1402 = vmatpush1.msra.mxu0 0.0
    %1403 = vmatprep.subr.mxu0 0.0
    %1404 = vmatpush1.msra.mxu0 0.0
    %1405 = vmatprep.subr.mxu0 0.0
    %1406 = vmatpush1.msra.mxu0 0.0
    %1407 = vmatprep.subr.mxu0 0.0
    %1408 = vmatpush1.msra.mxu0 0.0
    %1409 = vmatprep.mubr.f32.mxu0 0.0
    %v1410 = vand.u32 %v880, 4294901760
    %v1411 = vsub.f32 %v880, %v1410
    %1412 = vmatmul.mubr.f32.gmra.mrb[0].mxu0 %v1411
    %v1413 = vpop.f32.mrb[0].mxu0
    %v1414 = vadd.f32 %v1244, %v1413
    %v1415 = vpop.f32.mrb[0].mxu0
    %1416 = vmatprep.mubr.f32.mxu0 0.0
    %v1417 = vand.u32 %v883, 4294901760
    %v1418 = vsub.f32 %v883, %v1417
    %1419 = vmatmul.mubr.f32.gmra.mrb[0].mxu0 %v1418
    %v1420 = vpop.f32.mrb[0].mxu0
    %v1421 = vadd.f32 %v1250, %v1420
    %v1422 = vpop.f32.mrb[0].mxu0
    %1423 = vmatprep.mubr.f32.mxu0 0.0
    %v1424 = vand.u32 %v886, 4294901760
    %v1425 = vsub.f32 %v886, %v1424
    %1426 = vmatmul.mubr.f32.gmra.mrb[0].mxu0 %v1425
    %v1427 = vpop.f32.mrb[0].mxu0
    %v1428 = vadd.f32 %v1256, %v1427
    %v1429 = vpop.f32.mrb[0].mxu0
    %1430 = vmatprep.mubr.f32.mxu0 0.0
    %v1431 = vand.u32 %v889, 4294901760
    %v1432 = vsub.f32 %v889, %v1431
    %1433 = vmatmul.mubr.f32.gmra.mrb[0].mxu0 %v1432
    %v1434 = vpop.f32.mrb[0].mxu0
    %v1435 = vadd.f32 %v1262, %v1434
    %v1436 = vpop.f32.mrb[0].mxu0
    %1437 = vmatprep.mubr.f32.mxu0 0.0
    %v1438 = vand.u32 %v892, 4294901760
    %v1439 = vsub.f32 %v892, %v1438
    %1440 = vmatmul.mubr.f32.gmra.mrb[0].mxu0 %v1439
    %v1441 = vpop.f32.mrb[0].mxu0
    %v1442 = vadd.f32 %v1268, %v1441
    %v1443 = vpop.f32.mrb[0].mxu0
    %1444 = vmatprep.mubr.f32.mxu0 0.0
    %v1445 = vand.u32 %v895, 4294901760
    %v1446 = vsub.f32 %v895, %v1445
    %1447 = vmatmul.mubr.f32.gmra.mrb[0].mxu0 %v1446
    %v1448 = vpop.f32.mrb[0].mxu0
    %v1449 = vadd.f32 %v1274, %v1448
    %v1450 = vpop.f32.mrb[0].mxu0
    %1451 = vmatprep.mubr.f32.mxu0 0.0
    %v1452 = vand.u32 %v898, 4294901760
    %v1453 = vsub.f32 %v898, %v1452
    %1454 = vmatmul.mubr.f32.gmra.mrb[0].mxu0 %v1453
    %v1455 = vpop.f32.mrb[0].mxu0
    %v1456 = vadd.f32 %v1280, %v1455
    %v1457 = vpop.f32.mrb[0].mxu0
    %1458 = vmatprep.mubr.f32.mxu0 0.0
    %v1459 = vand.u32 %v901, 4294901760
    %v1460 = vsub.f32 %v901, %v1459
    %1461 = vmatmul.mubr.f32.gmra.mrb[0].mxu0 %v1460
    %v1462 = vpop.f32.mrb[0].mxu0
    %v1463 = vadd.f32 %v1286, %v1462
    %v1464 = vpop.f32.mrb[0].mxu0
    %1465 = vmatprep.mubr.f32.mxu0 0.0
    %v1466 = vand.u32 %v904, 4294901760
    %v1467 = vsub.f32 %v904, %v1466
    %1468 = vmatmul.mubr.f32.gmra.mrb[0].mxu0 %v1467
    %v1469 = vpop.f32.mrb[0].mxu0
    %v1470 = vadd.f32 %v1292, %v1469
    %v1471 = vpop.f32.mrb[0].mxu0
    %1472 = vmatprep.mubr.f32.mxu0 0.0
    %v1473 = vand.u32 %v907, 4294901760
    %v1474 = vsub.f32 %v907, %v1473
    %1475 = vmatmul.mubr.f32.gmra.mrb[0].mxu0 %v1474
    %v1476 = vpop.f32.mrb[0].mxu0
    %v1477 = vadd.f32 %v1298, %v1476
    %v1478 = vpop.f32.mrb[0].mxu0
    %1479 = vmatprep.mubr.f32.mxu0 0.0
    %v1480 = vand.u32 %v910, 4294901760
    %v1481 = vsub.f32 %v910, %v1480
    %1482 = vmatmul.mubr.f32.gmra.mrb[0].mxu0 %v1481
    %v1483 = vpop.f32.mrb[0].mxu0
    %v1484 = vadd.f32 %v1304, %v1483
    %v1485 = vpop.f32.mrb[0].mxu0
    %1486 = vmatprep.mubr.f32.mxu0 0.0
    %v1487 = vand.u32 %v913, 4294901760
    %v1488 = vsub.f32 %v913, %v1487
    %1489 = vmatmul.mubr.f32.gmra.mrb[0].mxu0 %v1488
    %v1490 = vpop.f32.mrb[0].mxu0
    %v1491 = vadd.f32 %v1310, %v1490
    %v1492 = vpop.f32.mrb[0].mxu0
    %1493 = vmatprep.mubr.f32.mxu0 0.0
    %v1494 = vand.u32 %v916, 4294901760
    %v1495 = vsub.f32 %v916, %v1494
    %1496 = vmatmul.mubr.f32.gmra.mrb[0].mxu0 %v1495
    %v1497 = vpop.f32.mrb[0].mxu0
    %v1498 = vadd.f32 %v1316, %v1497
    %v1499 = vpop.f32.mrb[0].mxu0
    %1500 = vmatprep.mubr.f32.mxu0 0.0
    %v1501 = vand.u32 %v919, 4294901760
    %v1502 = vsub.f32 %v919, %v1501
    %1503 = vmatmul.mubr.f32.gmra.mrb[0].mxu0 %v1502
    %v1504 = vpop.f32.mrb[0].mxu0
    %v1505 = vadd.f32 %v1322, %v1504
    %v1506 = vpop.f32.mrb[0].mxu0
    %1507 = vmatprep.mubr.f32.mxu0 0.0
    %v1508 = vand.u32 %v922, 4294901760
    %v1509 = vsub.f32 %v922, %v1508
    %1510 = vmatmul.mubr.f32.gmra.mrb[0].mxu0 %v1509
    %v1511 = vpop.f32.mrb[0].mxu0
    %v1512 = vadd.f32 %v1328, %v1511
    %v1513 = vpop.f32.mrb[0].mxu0
    %1514 = vmatprep.mubr.f32.mxu0 0.0
    %v1515 = vand.u32 %v925, 4294901760
    %v1516 = vsub.f32 %v925, %v1515
    %1517 = vmatmul.mubr.f32.gmra.mrb[0].mxu0 %v1516
    %v1518 = vpop.f32.mrb[0].mxu0
    %v1519 = vadd.f32 %v1334, %v1518
    %v1520 = vpop.f32.mrb[0].mxu0
    %1521 = vdwg.mxu0
    %1522 = vmatprep.subr.mxu0 0.0
    %v1523 = vand.u32 %v841, 4294901760
    %1524 = vmatpush1.msra.mxu0 %v1523
    %1525 = vmatprep.subr.mxu0 0.0
    %v1526 = vand.u32 %v847, 4294901760
    %1527 = vmatpush1.msra.mxu0 %v1526
    %1528 = vmatprep.subr.mxu0 0.0
    %v1529 = vand.u32 %v853, 4294901760
    %1530 = vmatpush1.msra.mxu0 %v1529
    %1531 = vmatprep.subr.mxu0 0.0
    %v1532 = vand.u32 %v859, 4294901760
    %1533 = vmatpush1.msra.mxu0 %v1532
    %1534 = vmatprep.subr.mxu0 0.0
    %1535 = vmatpush1.msra.mxu0 0.0
    %1536 = vmatprep.subr.mxu0 0.0
    %1537 = vmatpush1.msra.mxu0 0.0
    %1538 = vmatprep.subr.mxu0 0.0
    %1539 = vmatpush1.msra.mxu0 0.0
    %1540 = vmatprep.subr.mxu0 0.0
    %1541 = vmatpush1.msra.mxu0 0.0
    %1542 = vmatprep.subr.mxu0 0.0
    %1543 = vmatpush1.msra.mxu0 0.0
    %1544 = vmatprep.subr.mxu0 0.0
    %1545 = vmatpush1.msra.mxu0 0.0
    %1546 = vmatprep.subr.mxu0 0.0
    %1547 = vmatpush1.msra.mxu0 0.0
    %1548 = vmatprep.subr.mxu0 0.0
    %1549 = vmatpush1.msra.mxu0 0.0
    %1550 = vmatprep.subr.mxu0 0.0
    %1551 = vmatpush1.msra.mxu0 0.0
    %1552 = vmatprep.subr.mxu0 0.0
    %1553 = vmatpush1.msra.mxu0 0.0
    %1554 = vmatprep.subr.mxu0 0.0
    %1555 = vmatpush1.msra.mxu0 0.0
    %1556 = vmatprep.subr.mxu0 0.0
    %1557 = vmatpush1.msra.mxu0 0.0
    %1558 = vmatprep.subr.mxu0 0.0
    %1559 = vmatpush1.msra.mxu0 0.0
    %1560 = vmatprep.subr.mxu0 0.0
    %1561 = vmatpush1.msra.mxu0 0.0
    %1562 = vmatprep.subr.mxu0 0.0
    %1563 = vmatpush1.msra.mxu0 0.0
    %1564 = vmatprep.subr.mxu0 0.0
    %1565 = vmatpush1.msra.mxu0 0.0
    %1566 = vmatprep.subr.mxu0 0.0
    %1567 = vmatpush1.msra.mxu0 0.0
    %1568 = vmatprep.subr.mxu0 0.0
    %1569 = vmatpush1.msra.mxu0 0.0
    %1570 = vmatprep.subr.mxu0 0.0
    %1571 = vmatpush1.msra.mxu0 0.0
    %1572 = vmatprep.subr.mxu0 0.0
    %1573 = vmatpush1.msra.mxu0 0.0
    %1574 = vmatprep.subr.mxu0 0.0
    %1575 = vmatpush1.msra.mxu0 0.0
    %1576 = vmatprep.subr.mxu0 0.0
    %1577 = vmatpush1.msra.mxu0 0.0
    %1578 = vmatprep.subr.mxu0 0.0
    %1579 = vmatpush1.msra.mxu0 0.0
    %1580 = vmatprep.subr.mxu0 0.0
    %1581 = vmatpush1.msra.mxu0 0.0
    %1582 = vmatprep.subr.mxu0 0.0
    %1583 = vmatpush1.msra.mxu0 0.0
    %1584 = vmatprep.subr.mxu0 0.0
    %1585 = vmatpush1.msra.mxu0 0.0
    %1586 = vmatprep.subr.mxu0 0.0
    %1587 = vmatpush1.msra.mxu0 0.0
    %1588 = vmatprep.subr.mxu0 0.0
    %1589 = vmatpush1.msra.mxu0 0.0
    %1590 = vmatprep.mubr.f32.mxu0 0.0
    %v1591 = vand.u32 %v880, 4294901760
    %v1592 = vsub.f32 %v880, %v1591
    %v1593 = vand.u32 %v1592, 4294901760
    %1594 = vmatmul.mubr.f32.gmra.mrb[0].mxu0 %v1593
    %v1595 = vpop.f32.mrb[0].mxu0
    %v1596 = vadd.f32 %v1414, %v1595
    %v1597 = vpop.f32.mrb[0].mxu0
    %1598 = vmatprep.mubr.f32.mxu0 0.0
    %v1599 = vand.u32 %v883, 4294901760
    %v1600 = vsub.f32 %v883, %v1599
    %v1601 = vand.u32 %v1600, 4294901760
    %1602 = vmatmul.mubr.f32.gmra.mrb[0].mxu0 %v1601
    %v1603 = vpop.f32.mrb[0].mxu0
    %v1604 = vadd.f32 %v1421, %v1603
    %v1605 = vpop.f32.mrb[0].mxu0
    %1606 = vmatprep.mubr.f32.mxu0 0.0
    %v1607 = vand.u32 %v886, 4294901760
    %v1608 = vsub.f32 %v886, %v1607
    %v1609 = vand.u32 %v1608, 4294901760
    %1610 = vmatmul.mubr.f32.gmra.mrb[0].mxu0 %v1609
    %v1611 = vpop.f32.mrb[0].mxu0
    %v1612 = vadd.f32 %v1428, %v1611
    %v1613 = vpop.f32.mrb[0].mxu0
    %1614 = vmatprep.mubr.f32.mxu0 0.0
    %v1615 = vand.u32 %v889, 4294901760
    %v1616 = vsub.f32 %v889, %v1615
    %v1617 = vand.u32 %v1616, 4294901760
    %1618 = vmatmul.mubr.f32.gmra.mrb[0].mxu0 %v1617
    %v1619 = vpop.f32.mrb[0].mxu0
    %v1620 = vadd.f32 %v1435, %v1619
    %v1621 = vpop.f32.mrb[0].mxu0
    %1622 = vmatprep.mubr.f32.mxu0 0.0
    %v1623 = vand.u32 %v892, 4294901760
    %v1624 = vsub.f32 %v892, %v1623
    %v1625 = vand.u32 %v1624, 4294901760
    %1626 = vmatmul.mubr.f32.gmra.mrb[0].mxu0 %v1625
    %v1627 = vpop.f32.mrb[0].mxu0
    %v1628 = vadd.f32 %v1442, %v1627
    %v1629 = vpop.f32.mrb[0].mxu0
    %1630 = vmatprep.mubr.f32.mxu0 0.0
    %v1631 = vand.u32 %v895, 4294901760
    %v1632 = vsub.f32 %v895, %v1631
    %v1633 = vand.u32 %v1632, 4294901760
    %1634 = vmatmul.mubr.f32.gmra.mrb[0].mxu0 %v1633
    %v1635 = vpop.f32.mrb[0].mxu0
    %v1636 = vadd.f32 %v1449, %v1635
    %v1637 = vpop.f32.mrb[0].mxu0
    %1638 = vmatprep.mubr.f32.mxu0 0.0
    %v1639 = vand.u32 %v898, 4294901760
    %v1640 = vsub.f32 %v898, %v1639
    %v1641 = vand.u32 %v1640, 4294901760
    %1642 = vmatmul.mubr.f32.gmra.mrb[0].mxu0 %v1641
    %v1643 = vpop.f32.mrb[0].mxu0
    %v1644 = vadd.f32 %v1456, %v1643
    %v1645 = vpop.f32.mrb[0].mxu0
    %1646 = vmatprep.mubr.f32.mxu0 0.0
    %v1647 = vand.u32 %v901, 4294901760
    %v1648 = vsub.f32 %v901, %v1647
    %v1649 = vand.u32 %v1648, 4294901760
    %1650 = vmatmul.mubr.f32.gmra.mrb[0].mxu0 %v1649
    %v1651 = vpop.f32.mrb[0].mxu0
    %v1652 = vadd.f32 %v1463, %v1651
    %v1653 = vpop.f32.mrb[0].mxu0
    %1654 = vmatprep.mubr.f32.mxu0 0.0
    %v1655 = vand.u32 %v904, 4294901760
    %v1656 = vsub.f32 %v904, %v1655
    %v1657 = vand.u32 %v1656, 4294901760
    %1658 = vmatmul.mubr.f32.gmra.mrb[0].mxu0 %v1657
    %v1659 = vpop.f32.mrb[0].mxu0
    %v1660 = vadd.f32 %v1470, %v1659
    %v1661 = vpop.f32.mrb[0].mxu0
    %1662 = vmatprep.mubr.f32.mxu0 0.0
    %v1663 = vand.u32 %v907, 4294901760
    %v1664 = vsub.f32 %v907, %v1663
    %v1665 = vand.u32 %v1664, 4294901760
    %1666 = vmatmul.mubr.f32.gmra.mrb[0].mxu0 %v1665
    %v1667 = vpop.f32.mrb[0].mxu0
    %v1668 = vadd.f32 %v1477, %v1667
    %v1669 = vpop.f32.mrb[0].mxu0
    %1670 = vmatprep.mubr.f32.mxu0 0.0
    %v1671 = vand.u32 %v910, 4294901760
    %v1672 = vsub.f32 %v910, %v1671
    %v1673 = vand.u32 %v1672, 4294901760
    %1674 = vmatmul.mubr.f32.gmra.mrb[0].mxu0 %v1673
    %v1675 = vpop.f32.mrb[0].mxu0
    %v1676 = vadd.f32 %v1484, %v1675
    %v1677 = vpop.f32.mrb[0].mxu0
    %1678 = vmatprep.mubr.f32.mxu0 0.0
    %v1679 = vand.u32 %v913, 4294901760
    %v1680 = vsub.f32 %v913, %v1679
    %v1681 = vand.u32 %v1680, 4294901760
    %1682 = vmatmul.mubr.f32.gmra.mrb[0].mxu0 %v1681
    %v1683 = vpop.f32.mrb[0].mxu0
    %v1684 = vadd.f32 %v1491, %v1683
    %v1685 = vpop.f32.mrb[0].mxu0
    %1686 = vmatprep.mubr.f32.mxu0 0.0
    %v1687 = vand.u32 %v916, 4294901760
    %v1688 = vsub.f32 %v916, %v1687
    %v1689 = vand.u32 %v1688, 4294901760
    %1690 = vmatmul.mubr.f32.gmra.mrb[0].mxu0 %v1689
    %v1691 = vpop.f32.mrb[0].mxu0
    %v1692 = vadd.f32 %v1498, %v1691
    %v1693 = vpop.f32.mrb[0].mxu0
    %1694 = vmatprep.mubr.f32.mxu0 0.0
    %v1695 = vand.u32 %v919, 4294901760
    %v1696 = vsub.f32 %v919, %v1695
    %v1697 = vand.u32 %v1696, 4294901760
    %1698 = vmatmul.mubr.f32.gmra.mrb[0].mxu0 %v1697
    %v1699 = vpop.f32.mrb[0].mxu0
    %v1700 = vadd.f32 %v1505, %v1699
    %v1701 = vpop.f32.mrb[0].mxu0
    %1702 = vmatprep.mubr.f32.mxu0 0.0
    %v1703 = vand.u32 %v922, 4294901760
    %v1704 = vsub.f32 %v922, %v1703
    %v1705 = vand.u32 %v1704, 4294901760
    %1706 = vmatmul.mubr.f32.gmra.mrb[0].mxu0 %v1705
    %v1707 = vpop.f32.mrb[0].mxu0
    %v1708 = vadd.f32 %v1512, %v1707
    %v1709 = vpop.f32.mrb[0].mxu0
    %1710 = vmatprep.mubr.f32.mxu0 0.0
    %v1711 = vand.u32 %v925, 4294901760
    %v1712 = vsub.f32 %v925, %v1711
    %v1713 = vand.u32 %v1712, 4294901760
    %1714 = vmatmul.mubr.f32.gmra.mrb[0].mxu0 %v1713
    %v1715 = vpop.f32.mrb[0].mxu0
    %v1716 = vadd.f32 %v1519, %v1715
    %v1717 = vpop.f32.mrb[0].mxu0
    %1718 = vdwg.mxu0
    %1719 = vmatprep.subr.mxu0 0.0
    %v1720 = vand.u32 %v841, 4294901760
    %v1721 = vsub.f32 %v841, %v1720
    %v1722 = vand.u32 %v1721, 4294901760
    %1723 = vmatpush1.msra.mxu0 %v1722
    %1724 = vmatprep.subr.mxu0 0.0
    %v1725 = vand.u32 %v847, 4294901760
    %v1726 = vsub.f32 %v847, %v1725
    %v1727 = vand.u32 %v1726, 4294901760
    %1728 = vmatpush1.msra.mxu0 %v1727
    %1729 = vmatprep.subr.mxu0 0.0
    %v1730 = vand.u32 %v853, 4294901760
    %v1731 = vsub.f32 %v853, %v1730
    %v1732 = vand.u32 %v1731, 4294901760
    %1733 = vmatpush1.msra.mxu0 %v1732
    %1734 = vmatprep.subr.mxu0 0.0
    %v1735 = vand.u32 %v859, 4294901760
    %v1736 = vsub.f32 %v859, %v1735
    %v1737 = vand.u32 %v1736, 4294901760
    %1738 = vmatpush1.msra.mxu0 %v1737
    %1739 = vmatprep.subr.mxu0 0.0
    %1740 = vmatpush1.msra.mxu0 0.0
    %1741 = vmatprep.subr.mxu0 0.0
    %1742 = vmatpush1.msra.mxu0 0.0
    %1743 = vmatprep.subr.mxu0 0.0
    %1744 = vmatpush1.msra.mxu0 0.0
    %1745 = vmatprep.subr.mxu0 0.0
    %1746 = vmatpush1.msra.mxu0 0.0
    %1747 = vmatprep.subr.mxu0 0.0
    %1748 = vmatpush1.msra.mxu0 0.0
    %1749 = vmatprep.subr.mxu0 0.0
    %1750 = vmatpush1.msra.mxu0 0.0
    %1751 = vmatprep.subr.mxu0 0.0
    %1752 = vmatpush1.msra.mxu0 0.0
    %1753 = vmatprep.subr.mxu0 0.0
    %1754 = vmatpush1.msra.mxu0 0.0
    %1755 = vmatprep.subr.mxu0 0.0
    %1756 = vmatpush1.msra.mxu0 0.0
    %1757 = vmatprep.subr.mxu0 0.0
    %1758 = vmatpush1.msra.mxu0 0.0
    %1759 = vmatprep.subr.mxu0 0.0
    %1760 = vmatpush1.msra.mxu0 0.0
    %1761 = vmatprep.subr.mxu0 0.0
    %1762 = vmatpush1.msra.mxu0 0.0
    %1763 = vmatprep.subr.mxu0 0.0
    %1764 = vmatpush1.msra.mxu0 0.0
    %1765 = vmatprep.subr.mxu0 0.0
    %1766 = vmatpush1.msra.mxu0 0.0
    %1767 = vmatprep.subr.mxu0 0.0
    %1768 = vmatpush1.msra.mxu0 0.0
    %1769 = vmatprep.subr.mxu0 0.0
    %1770 = vmatpush1.msra.mxu0 0.0
    %1771 = vmatprep.subr.mxu0 0.0
    %1772 = vmatpush1.msra.mxu0 0.0
    %1773 = vmatprep.subr.mxu0 0.0
    %1774 = vmatpush1.msra.mxu0 0.0
    %1775 = vmatprep.subr.mxu0 0.0
    %1776 = vmatpush1.msra.mxu0 0.0
    %1777 = vmatprep.subr.mxu0 0.0
    %1778 = vmatpush1.msra.mxu0 0.0
    %1779 = vmatprep.subr.mxu0 0.0
    %1780 = vmatpush1.msra.mxu0 0.0
    %1781 = vmatprep.subr.mxu0 0.0
    %1782 = vmatpush1.msra.mxu0 0.0
    %1783 = vmatprep.subr.mxu0 0.0
    %1784 = vmatpush1.msra.mxu0 0.0
    %1785 = vmatprep.subr.mxu0 0.0
    %1786 = vmatpush1.msra.mxu0 0.0
    %1787 = vmatprep.subr.mxu0 0.0
    %1788 = vmatpush1.msra.mxu0 0.0
    %1789 = vmatprep.subr.mxu0 0.0
    %1790 = vmatpush1.msra.mxu0 0.0
    %1791 = vmatprep.subr.mxu0 0.0
    %1792 = vmatpush1.msra.mxu0 0.0
    %1793 = vmatprep.subr.mxu0 0.0
    %1794 = vmatpush1.msra.mxu0 0.0
    %1795 = vmatprep.mubr.f32.mxu0 0.0
    %v1796 = vand.u32 %v880, 4294901760
    %1797 = vmatmul.mubr.f32.gmra.mrb[0].mxu0 %v1796
    %v1798 = vpop.f32.mrb[0].mxu0
    %v1799 = vadd.f32 %v1596, %v1798
    %v1800 = vpop.f32.mrb[0].mxu0
    %1801 = vmatprep.mubr.f32.mxu0 0.0
    %v1802 = vand.u32 %v883, 4294901760
    %1803 = vmatmul.mubr.f32.gmra.mrb[0].mxu0 %v1802
    %v1804 = vpop.f32.mrb[0].mxu0
    %v1805 = vadd.f32 %v1604, %v1804
    %v1806 = vpop.f32.mrb[0].mxu0
    %1807 = vmatprep.mubr.f32.mxu0 0.0
    %v1808 = vand.u32 %v886, 4294901760
    %1809 = vmatmul.mubr.f32.gmra.mrb[0].mxu0 %v1808
    %v1810 = vpop.f32.mrb[0].mxu0
    %v1811 = vadd.f32 %v1612, %v1810
    %v1812 = vpop.f32.mrb[0].mxu0
    %1813 = vmatprep.mubr.f32.mxu0 0.0
    %v1814 = vand.u32 %v889, 4294901760
    %1815 = vmatmul.mubr.f32.gmra.mrb[0].mxu0 %v1814
    %v1816 = vpop.f32.mrb[0].mxu0
    %v1817 = vadd.f32 %v1620, %v1816
    %v1818 = vpop.f32.mrb[0].mxu0
    %1819 = vmatprep.mubr.f32.mxu0 0.0
    %v1820 = vand.u32 %v892, 4294901760
    %1821 = vmatmul.mubr.f32.gmra.mrb[0].mxu0 %v1820
    %v1822 = vpop.f32.mrb[0].mxu0
    %v1823 = vadd.f32 %v1628, %v1822
    %v1824 = vpop.f32.mrb[0].mxu0
    %1825 = vmatprep.mubr.f32.mxu0 0.0
    %v1826 = vand.u32 %v895, 4294901760
    %1827 = vmatmul.mubr.f32.gmra.mrb[0].mxu0 %v1826
    %v1828 = vpop.f32.mrb[0].mxu0
    %v1829 = vadd.f32 %v1636, %v1828
    %v1830 = vpop.f32.mrb[0].mxu0
    %1831 = vmatprep.mubr.f32.mxu0 0.0
    %v1832 = vand.u32 %v898, 4294901760
    %1833 = vmatmul.mubr.f32.gmra.mrb[0].mxu0 %v1832
    %v1834 = vpop.f32.mrb[0].mxu0
    %v1835 = vadd.f32 %v1644, %v1834
    %v1836 = vpop.f32.mrb[0].mxu0
    %1837 = vmatprep.mubr.f32.mxu0 0.0
    %v1838 = vand.u32 %v901, 4294901760
    %1839 = vmatmul.mubr.f32.gmra.mrb[0].mxu0 %v1838
    %v1840 = vpop.f32.mrb[0].mxu0
    %v1841 = vadd.f32 %v1652, %v1840
    %v1842 = vpop.f32.mrb[0].mxu0
    %1843 = vmatprep.mubr.f32.mxu0 0.0
    %v1844 = vand.u32 %v904, 4294901760
    %1845 = vmatmul.mubr.f32.gmra.mrb[0].mxu0 %v1844
    %v1846 = vpop.f32.mrb[0].mxu0
    %v1847 = vadd.f32 %v1660, %v1846
    %v1848 = vpop.f32.mrb[0].mxu0
    %1849 = vmatprep.mubr.f32.mxu0 0.0
    %v1850 = vand.u32 %v907, 4294901760
    %1851 = vmatmul.mubr.f32.gmra.mrb[0].mxu0 %v1850
    %v1852 = vpop.f32.mrb[0].mxu0
    %v1853 = vadd.f32 %v1668, %v1852
    %v1854 = vpop.f32.mrb[0].mxu0
    %1855 = vmatprep.mubr.f32.mxu0 0.0
    %v1856 = vand.u32 %v910, 4294901760
    %1857 = vmatmul.mubr.f32.gmra.mrb[0].mxu0 %v1856
    %v1858 = vpop.f32.mrb[0].mxu0
    %v1859 = vadd.f32 %v1676, %v1858
    %v1860 = vpop.f32.mrb[0].mxu0
    %1861 = vmatprep.mubr.f32.mxu0 0.0
    %v1862 = vand.u32 %v913, 4294901760
    %1863 = vmatmul.mubr.f32.gmra.mrb[0].mxu0 %v1862
    %v1864 = vpop.f32.mrb[0].mxu0
    %v1865 = vadd.f32 %v1684, %v1864
    %v1866 = vpop.f32.mrb[0].mxu0
    %1867 = vmatprep.mubr.f32.mxu0 0.0
    %v1868 = vand.u32 %v916, 4294901760
    %1869 = vmatmul.mubr.f32.gmra.mrb[0].mxu0 %v1868
    %v1870 = vpop.f32.mrb[0].mxu0
    %v1871 = vadd.f32 %v1692, %v1870
    %v1872 = vpop.f32.mrb[0].mxu0
    %1873 = vmatprep.mubr.f32.mxu0 0.0
    %v1874 = vand.u32 %v919, 4294901760
    %1875 = vmatmul.mubr.f32.gmra.mrb[0].mxu0 %v1874
    %v1876 = vpop.f32.mrb[0].mxu0
    %v1877 = vadd.f32 %v1700, %v1876
    %v1878 = vpop.f32.mrb[0].mxu0
    %1879 = vmatprep.mubr.f32.mxu0 0.0
    %v1880 = vand.u32 %v922, 4294901760
    %1881 = vmatmul.mubr.f32.gmra.mrb[0].mxu0 %v1880
    %v1882 = vpop.f32.mrb[0].mxu0
    %v1883 = vadd.f32 %v1708, %v1882
    %v1884 = vpop.f32.mrb[0].mxu0
    %1885 = vmatprep.mubr.f32.mxu0 0.0
    %v1886 = vand.u32 %v925, 4294901760
    %1887 = vmatmul.mubr.f32.gmra.mrb[0].mxu0 %v1886
    %v1888 = vpop.f32.mrb[0].mxu0
    %v1889 = vadd.f32 %v1716, %v1888
    %v1890 = vpop.f32.mrb[0].mxu0
    %1891 = vdwg.mxu0
    %1892 = vmatprep.subr.mxu0 0.0
    %v1893 = vand.u32 %v841, 4294901760
    %1894 = vmatpush1.msra.mxu0 %v1893
    %1895 = vmatprep.subr.mxu0 0.0
    %v1896 = vand.u32 %v847, 4294901760
    %1897 = vmatpush1.msra.mxu0 %v1896
    %1898 = vmatprep.subr.mxu0 0.0
    %v1899 = vand.u32 %v853, 4294901760
    %1900 = vmatpush1.msra.mxu0 %v1899
    %1901 = vmatprep.subr.mxu0 0.0
    %v1902 = vand.u32 %v859, 4294901760
    %1903 = vmatpush1.msra.mxu0 %v1902
    %1904 = vmatprep.subr.mxu0 0.0
    %1905 = vmatpush1.msra.mxu0 0.0
    %1906 = vmatprep.subr.mxu0 0.0
    %1907 = vmatpush1.msra.mxu0 0.0
    %1908 = vmatprep.subr.mxu0 0.0
    %1909 = vmatpush1.msra.mxu0 0.0
    %1910 = vmatprep.subr.mxu0 0.0
    %1911 = vmatpush1.msra.mxu0 0.0
    %1912 = vmatprep.subr.mxu0 0.0
    %1913 = vmatpush1.msra.mxu0 0.0
    %1914 = vmatprep.subr.mxu0 0.0
    %1915 = vmatpush1.msra.mxu0 0.0
    %1916 = vmatprep.subr.mxu0 0.0
    %1917 = vmatpush1.msra.mxu0 0.0
    %1918 = vmatprep.subr.mxu0 0.0
    %1919 = vmatpush1.msra.mxu0 0.0
    %1920 = vmatprep.subr.mxu0 0.0
    %1921 = vmatpush1.msra.mxu0 0.0
    %1922 = vmatprep.subr.mxu0 0.0
    %1923 = vmatpush1.msra.mxu0 0.0
    %1924 = vmatprep.subr.mxu0 0.0
    %1925 = vmatpush1.msra.mxu0 0.0
    %1926 = vmatprep.subr.mxu0 0.0
    %1927 = vmatpush1.msra.mxu0 0.0
    %1928 = vmatprep.subr.mxu0 0.0
    %1929 = vmatpush1.msra.mxu0 0.0
    %1930 = vmatprep.subr.mxu0 0.0
    %1931 = vmatpush1.msra.mxu0 0.0
    %1932 = vmatprep.subr.mxu0 0.0
    %1933 = vmatpush1.msra.mxu0 0.0
    %1934 = vmatprep.subr.mxu0 0.0
    %1935 = vmatpush1.msra.mxu0 0.0
    %1936 = vmatprep.subr.mxu0 0.0
    %1937 = vmatpush1.msra.mxu0 0.0
    %1938 = vmatprep.subr.mxu0 0.0
    %1939 = vmatpush1.msra.mxu0 0.0
    %1940 = vmatprep.subr.mxu0 0.0
    %1941 = vmatpush1.msra.mxu0 0.0
    %1942 = vmatprep.subr.mxu0 0.0
    %1943 = vmatpush1.msra.mxu0 0.0
    %1944 = vmatprep.subr.mxu0 0.0
    %1945 = vmatpush1.msra.mxu0 0.0
    %1946 = vmatprep.subr.mxu0 0.0
    %1947 = vmatpush1.msra.mxu0 0.0
    %1948 = vmatprep.subr.mxu0 0.0
    %1949 = vmatpush1.msra.mxu0 0.0
    %1950 = vmatprep.subr.mxu0 0.0
    %1951 = vmatpush1.msra.mxu0 0.0
    %1952 = vmatprep.subr.mxu0 0.0
    %1953 = vmatpush1.msra.mxu0 0.0
    %1954 = vmatprep.subr.mxu0 0.0
    %1955 = vmatpush1.msra.mxu0 0.0
    %1956 = vmatprep.subr.mxu0 0.0
    %1957 = vmatpush1.msra.mxu0 0.0
    %1958 = vmatprep.subr.mxu0 0.0
    %1959 = vmatpush1.msra.mxu0 0.0
    %1960 = vmatprep.mubr.f32.mxu0 0.0
    %v1961 = vand.u32 %v880, 4294901760
    %1962 = vmatmul.mubr.f32.gmra.mrb[0].mxu0 %v1961
    %v1963 = vpop.f32.mrb[0].mxu0
    %v1964 = vadd.f32 %v1799, %v1963
    %v1965 = vpop.f32.mrb[0].mxu0
    %1966 = vmatprep.mubr.f32.mxu0 0.0
    %v1967 = vand.u32 %v883, 4294901760
    %1968 = vmatmul.mubr.f32.gmra.mrb[0].mxu0 %v1967
    %v1969 = vpop.f32.mrb[0].mxu0
    %v1970 = vadd.f32 %v1805, %v1969
    %v1971 = vpop.f32.mrb[0].mxu0
    %1972 = vmatprep.mubr.f32.mxu0 0.0
    %v1973 = vand.u32 %v886, 4294901760
    %1974 = vmatmul.mubr.f32.gmra.mrb[0].mxu0 %v1973
    %v1975 = vpop.f32.mrb[0].mxu0
    %v1976 = vadd.f32 %v1811, %v1975
    %v1977 = vpop.f32.mrb[0].mxu0
    %1978 = vmatprep.mubr.f32.mxu0 0.0
    %v1979 = vand.u32 %v889, 4294901760
    %1980 = vmatmul.mubr.f32.gmra.mrb[0].mxu0 %v1979
    %v1981 = vpop.f32.mrb[0].mxu0
    %v1982 = vadd.f32 %v1817, %v1981
    %v1983 = vpop.f32.mrb[0].mxu0
    %1984 = vmatprep.mubr.f32.mxu0 0.0
    %v1985 = vand.u32 %v892, 4294901760
    %1986 = vmatmul.mubr.f32.gmra.mrb[0].mxu0 %v1985
    %v1987 = vpop.f32.mrb[0].mxu0
    %v1988 = vadd.f32 %v1823, %v1987
    %v1989 = vpop.f32.mrb[0].mxu0
    %1990 = vmatprep.mubr.f32.mxu0 0.0
    %v1991 = vand.u32 %v895, 4294901760
    %1992 = vmatmul.mubr.f32.gmra.mrb[0].mxu0 %v1991
    %v1993 = vpop.f32.mrb[0].mxu0
    %v1994 = vadd.f32 %v1829, %v1993
    %v1995 = vpop.f32.mrb[0].mxu0
    %1996 = vmatprep.mubr.f32.mxu0 0.0
    %v1997 = vand.u32 %v898, 4294901760
    %1998 = vmatmul.mubr.f32.gmra.mrb[0].mxu0 %v1997
    %v1999 = vpop.f32.mrb[0].mxu0
    %v2000 = vadd.f32 %v1835, %v1999
    %v2001 = vpop.f32.mrb[0].mxu0
    %2002 = vmatprep.mubr.f32.mxu0 0.0
    %v2003 = vand.u32 %v901, 4294901760
    %2004 = vmatmul.mubr.f32.gmra.mrb[0].mxu0 %v2003
    %v2005 = vpop.f32.mrb[0].mxu0
    %v2006 = vadd.f32 %v1841, %v2005
    %v2007 = vpop.f32.mrb[0].mxu0
    %2008 = vmatprep.mubr.f32.mxu0 0.0
    %v2009 = vand.u32 %v904, 4294901760
    %2010 = vmatmul.mubr.f32.gmra.mrb[0].mxu0 %v2009
    %v2011 = vpop.f32.mrb[0].mxu0
    %v2012 = vadd.f32 %v1847, %v2011
    %v2013 = vpop.f32.mrb[0].mxu0
    %2014 = vmatprep.mubr.f32.mxu0 0.0
    %v2015 = vand.u32 %v907, 4294901760
    %2016 = vmatmul.mubr.f32.gmra.mrb[0].mxu0 %v2015
    %v2017 = vpop.f32.mrb[0].mxu0
    %v2018 = vadd.f32 %v1853, %v2017
    %v2019 = vpop.f32.mrb[0].mxu0
    %2020 = vmatprep.mubr.f32.mxu0 0.0
    %v2021 = vand.u32 %v910, 4294901760
    %2022 = vmatmul.mubr.f32.gmra.mrb[0].mxu0 %v2021
    %v2023 = vpop.f32.mrb[0].mxu0
    %v2024 = vadd.f32 %v1859, %v2023
    %v2025 = vpop.f32.mrb[0].mxu0
    %2026 = vmatprep.mubr.f32.mxu0 0.0
    %v2027 = vand.u32 %v913, 4294901760
    %2028 = vmatmul.mubr.f32.gmra.mrb[0].mxu0 %v2027
    %v2029 = vpop.f32.mrb[0].mxu0
    %v2030 = vadd.f32 %v1865, %v2029
    %v2031 = vpop.f32.mrb[0].mxu0
    %2032 = vmatprep.mubr.f32.mxu0 0.0
    %v2033 = vand.u32 %v916, 4294901760
    %2034 = vmatmul.mubr.f32.gmra.mrb[0].mxu0 %v2033
    %v2035 = vpop.f32.mrb[0].mxu0
    %v2036 = vadd.f32 %v1871, %v2035
    %v2037 = vpop.f32.mrb[0].mxu0
    %2038 = vmatprep.mubr.f32.mxu0 0.0
    %v2039 = vand.u32 %v919, 4294901760
    %2040 = vmatmul.mubr.f32.gmra.mrb[0].mxu0 %v2039
    %v2041 = vpop.f32.mrb[0].mxu0
    %v2042 = vadd.f32 %v1877, %v2041
    %v2043 = vpop.f32.mrb[0].mxu0
    %2044 = vmatprep.mubr.f32.mxu0 0.0
    %v2045 = vand.u32 %v922, 4294901760
    %2046 = vmatmul.mubr.f32.gmra.mrb[0].mxu0 %v2045
    %v2047 = vpop.f32.mrb[0].mxu0
    %v2048 = vadd.f32 %v1883, %v2047
    %v2049 = vpop.f32.mrb[0].mxu0
    %2050 = vmatprep.mubr.f32.mxu0 0.0
    %v2051 = vand.u32 %v925, 4294901760
    %2052 = vmatmul.mubr.f32.gmra.mrb[0].mxu0 %v2051
    %v2053 = vpop.f32.mrb[0].mxu0
    %v2054 = vadd.f32 %v1889, %v2053
    %v2055 = vpop.f32.mrb[0].mxu0
    %2056 = vdwg.mxu0
    %v2057 = vld [vmem:[%s3] sm:$0xff]
    %v2058 = vld [vmem:[%s3 + $0x8] sm:$0xff]
    %v2059 = vld [vmem:[%s3 + $0x10] sm:$0xff]
    %v2060 = vlaneseq
    %v2061 = vshrl.u32 %v2060, 7
    %v2062 = vsub.s32 0, %v2061
    %v2063 = vrot.slane %v2057, %v2062
    %vm2064 = vcmp.eq.s32.totalorder %v19, %v2063
    %vm2065 = vcmp.eq.s32.totalorder %v20, %v2063
    %vm2066 = vcmp.eq.s32.totalorder %v21, %v2063
    %vm2067 = vcmp.eq.s32.totalorder %v22, %v2063
    %vm2068 = vcmp.eq.s32.totalorder %v23, %v2063
    %vm2069 = vcmp.eq.s32.totalorder %v24, %v2063
    %vm2070 = vcmp.eq.s32.totalorder %v25, %v2063
    %vm2071 = vcmp.eq.s32.totalorder %v26, %v2063
    %vm2072 = vcmp.eq.s32.totalorder %v27, %v2063
    %vm2073 = vcmp.eq.s32.totalorder %v28, %v2063
    %vm2074 = vcmp.eq.s32.totalorder %v29, %v2063
    %vm2075 = vcmp.eq.s32.totalorder %v30, %v2063
    %vm2076 = vcmp.eq.s32.totalorder %v31, %v2063
    %vm2077 = vcmp.eq.s32.totalorder %v32, %v2063
    %vm2078 = vcmp.eq.s32.totalorder %v33, %v2063
    %vm2079 = vcmp.eq.s32.totalorder %v34, %v2063
    %v2080 = vsel %vm2064, %v1964, 0.0
    %v2081 = vsel %vm2065, %v1970, 0.0
    %v2082 = vsel %vm2066, %v1976, 0.0
    %v2083 = vsel %vm2067, %v1982, 0.0
    %v2084 = vsel %vm2068, %v1988, 0.0
    %v2085 = vsel %vm2069, %v1994, 0.0
    %v2086 = vsel %vm2070, %v2000, 0.0
    %v2087 = vsel %vm2071, %v2006, 0.0
    %v2088 = vsel %vm2072, %v2012, 0.0
    %v2089 = vsel %vm2073, %v2018, 0.0
    %v2090 = vsel %vm2074, %v2024, 0.0
    %v2091 = vsel %vm2075, %v2030, 0.0
    %v2092 = vsel %vm2076, %v2036, 0.0
    %v2093 = vsel %vm2077, %v2042, 0.0
    %v2094 = vsel %vm2078, %v2048, 0.0
    %v2095 = vsel %vm2079, %v2054, 0.0
    %v2096 = vadd.f32 %v2080, %v2081
    %v2097 = vadd.f32 %v2096, %v2082
    %v2098 = vadd.f32 %v2097, %v2083
    %v2099 = vadd.f32 %v2098, %v2084
    %v2100 = vadd.f32 %v2099, %v2085
    %v2101 = vadd.f32 %v2100, %v2086
    %v2102 = vadd.f32 %v2101, %v2087
    %v2103 = vadd.f32 %v2102, %v2088
    %v2104 = vadd.f32 %v2103, %v2089
    %v2105 = vadd.f32 %v2104, %v2090
    %v2106 = vadd.f32 %v2105, %v2091
    %v2107 = vadd.f32 %v2106, %v2092
    %v2108 = vadd.f32 %v2107, %v2093
    %v2109 = vadd.f32 %v2108, %v2094
    %v2110 = vadd.f32 %v2109, %v2095
    %v2111 = vrot.slane %v2110, 4
    %v2112 = vadd.f32 %v2110, %v2111
    %v2113 = vrot.slane %v2112, 2
    %v2114 = vadd.f32 %v2112, %v2113
    %v2115 = vrot.slane %v2114, 1
    %v2116 = vadd.f32 %v2114, %v2115
    %v2117 = vmin.f32 %v2116, 0.0
    %v2118 = vand.u32 2147483647, %v2116
    %v2119 = vsub.f32 0.0, %v2118
    %v2120 = vmul.f32 %v2119, 1.442695
    %v2121 = vpow.pop %v2120
    %v2122 = vadd.f32 %v2121, 1.0
    %v2123 = vlog2.pop %v2122
    %v2124 = vmul.f32 %v2123, 0.6931472
    %v2125 = vsub.f32 %v2117, %v2124
    %v2126 = vadd.f32 %v2125, 0.0
    %v2127 = vlaneseq
    %v2128 = vshrl.u32 %v2127, 7
    %v2129 = vsub.s32 1, %v2128
    %v2130 = vrot.slane %v2057, %v2129
    %vm2131 = vcmp.eq.s32.totalorder %v19, %v2130
    %vm2132 = vcmp.eq.s32.totalorder %v20, %v2130
    %vm2133 = vcmp.eq.s32.totalorder %v21, %v2130
    %vm2134 = vcmp.eq.s32.totalorder %v22, %v2130
    %vm2135 = vcmp.eq.s32.totalorder %v23, %v2130
    %vm2136 = vcmp.eq.s32.totalorder %v24, %v2130
    %vm2137 = vcmp.eq.s32.totalorder %v25, %v2130
    %vm2138 = vcmp.eq.s32.totalorder %v26, %v2130
    %vm2139 = vcmp.eq.s32.totalorder %v27, %v2130
    %vm2140 = vcmp.eq.s32.totalorder %v28, %v2130
    %vm2141 = vcmp.eq.s32.totalorder %v29, %v2130
    %vm2142 = vcmp.eq.s32.totalorder %v30, %v2130
    %vm2143 = vcmp.eq.s32.totalorder %v31, %v2130
    %vm2144 = vcmp.eq.s32.totalorder %v32, %v2130
    %vm2145 = vcmp.eq.s32.totalorder %v33, %v2130
    %vm2146 = vcmp.eq.s32.totalorder %v34, %v2130
    %v2147 = vsel %vm2131, %v1964, 0.0
    %v2148 = vsel %vm2132, %v1970, 0.0
    %v2149 = vsel %vm2133, %v1976, 0.0
    %v2150 = vsel %vm2134, %v1982, 0.0
    %v2151 = vsel %vm2135, %v1988, 0.0
    %v2152 = vsel %vm2136, %v1994, 0.0
    %v2153 = vsel %vm2137, %v2000, 0.0
    %v2154 = vsel %vm2138, %v2006, 0.0
    %v2155 = vsel %vm2139, %v2012, 0.0
    %v2156 = vsel %vm2140, %v2018, 0.0
    %v2157 = vsel %vm2141, %v2024, 0.0
    %v2158 = vsel %vm2142, %v2030, 0.0
    %v2159 = vsel %vm2143, %v2036, 0.0
    %v2160 = vsel %vm2144, %v2042, 0.0
    %v2161 = vsel %vm2145, %v2048, 0.0
    %v2162 = vsel %vm2146, %v2054, 0.0
    %v2163 = vadd.f32 %v2147, %v2148
    %v2164 = vadd.f32 %v2163, %v2149
    %v2165 = vadd.f32 %v2164, %v2150
    %v2166 = vadd.f32 %v2165, %v2151
    %v2167 = vadd.f32 %v2166, %v2152
    %v2168 = vadd.f32 %v2167, %v2153
    %v2169 = vadd.f32 %v2168, %v2154
    %v2170 = vadd.f32 %v2169, %v2155
    %v2171 = vadd.f32 %v2170, %v2156
    %v2172 = vadd.f32 %v2171, %v2157
    %v2173 = vadd.f32 %v2172, %v2158
    %v2174 = vadd.f32 %v2173, %v2159
    %v2175 = vadd.f32 %v2174, %v2160
    %v2176 = vadd.f32 %v2175, %v2161
    %v2177 = vadd.f32 %v2176, %v2162
    %v2178 = vrot.slane %v2177, 4
    %v2179 = vadd.f32 %v2177, %v2178
    %v2180 = vrot.slane %v2179, 2
    %v2181 = vadd.f32 %v2179, %v2180
    %v2182 = vrot.slane %v2181, 1
    %v2183 = vadd.f32 %v2181, %v2182
    %v2184 = vmin.f32 %v2183, 0.0
    %v2185 = vand.u32 2147483647, %v2183
    %v2186 = vsub.f32 0.0, %v2185
    %v2187 = vmul.f32 %v2186, 1.442695
    %v2188 = vpow.pop %v2187
    %v2189 = vadd.f32 %v2188, 1.0
    %v2190 = vlog2.pop %v2189
    %v2191 = vmul.f32 %v2190, 0.6931472
    %v2192 = vsub.f32 %v2184, %v2191
    %v2193 = vadd.f32 %v2126, %v2192
    %v2194 = vlaneseq
    %v2195 = vshrl.u32 %v2194, 7
    %v2196 = vsub.s32 2, %v2195
    %v2197 = vrot.slane %v2057, %v2196
    %vm2198 = vcmp.eq.s32.totalorder %v19, %v2197
    %vm2199 = vcmp.eq.s32.totalorder %v20, %v2197
    %vm2200 = vcmp.eq.s32.totalorder %v21, %v2197
    %vm2201 = vcmp.eq.s32.totalorder %v22, %v2197
    %vm2202 = vcmp.eq.s32.totalorder %v23, %v2197
    %vm2203 = vcmp.eq.s32.totalorder %v24, %v2197
    %vm2204 = vcmp.eq.s32.totalorder %v25, %v2197
    %vm2205 = vcmp.eq.s32.totalorder %v26, %v2197
    %vm2206 = vcmp.eq.s32.totalorder %v27, %v2197
    %vm2207 = vcmp.eq.s32.totalorder %v28, %v2197
    %vm2208 = vcmp.eq.s32.totalorder %v29, %v2197
    %vm2209 = vcmp.eq.s32.totalorder %v30, %v2197
    %vm2210 = vcmp.eq.s32.totalorder %v31, %v2197
    %vm2211 = vcmp.eq.s32.totalorder %v32, %v2197
    %vm2212 = vcmp.eq.s32.totalorder %v33, %v2197
    %vm2213 = vcmp.eq.s32.totalorder %v34, %v2197
    %v2214 = vsel %vm2198, %v1964, 0.0
    %v2215 = vsel %vm2199, %v1970, 0.0
    %v2216 = vsel %vm2200, %v1976, 0.0
    %v2217 = vsel %vm2201, %v1982, 0.0
    %v2218 = vsel %vm2202, %v1988, 0.0
    %v2219 = vsel %vm2203, %v1994, 0.0
    %v2220 = vsel %vm2204, %v2000, 0.0
    %v2221 = vsel %vm2205, %v2006, 0.0
    %v2222 = vsel %vm2206, %v2012, 0.0
    %v2223 = vsel %vm2207, %v2018, 0.0
    %v2224 = vsel %vm2208, %v2024, 0.0
    %v2225 = vsel %vm2209, %v2030, 0.0
    %v2226 = vsel %vm2210, %v2036, 0.0
    %v2227 = vsel %vm2211, %v2042, 0.0
    %v2228 = vsel %vm2212, %v2048, 0.0
    %v2229 = vsel %vm2213, %v2054, 0.0
    %v2230 = vadd.f32 %v2214, %v2215
    %v2231 = vadd.f32 %v2230, %v2216
    %v2232 = vadd.f32 %v2231, %v2217
    %v2233 = vadd.f32 %v2232, %v2218
    %v2234 = vadd.f32 %v2233, %v2219
    %v2235 = vadd.f32 %v2234, %v2220
    %v2236 = vadd.f32 %v2235, %v2221
    %v2237 = vadd.f32 %v2236, %v2222
    %v2238 = vadd.f32 %v2237, %v2223
    %v2239 = vadd.f32 %v2238, %v2224
    %v2240 = vadd.f32 %v2239, %v2225
    %v2241 = vadd.f32 %v2240, %v2226
    %v2242 = vadd.f32 %v2241, %v2227
    %v2243 = vadd.f32 %v2242, %v2228
    %v2244 = vadd.f32 %v2243, %v2229
    %v2245 = vrot.slane %v2244, 4
    %v2246 = vadd.f32 %v2244, %v2245
    %v2247 = vrot.slane %v2246, 2
    %v2248 = vadd.f32 %v2246, %v2247
    %v2249 = vrot.slane %v2248, 1
    %v2250 = vadd.f32 %v2248, %v2249
    %v2251 = vmin.f32 %v2250, 0.0
    %v2252 = vand.u32 2147483647, %v2250
    %v2253 = vsub.f32 0.0, %v2252
    %v2254 = vmul.f32 %v2253, 1.442695
    %v2255 = vpow.pop %v2254
    %v2256 = vadd.f32 %v2255, 1.0
    %v2257 = vlog2.pop %v2256
    %v2258 = vmul.f32 %v2257, 0.6931472
    %v2259 = vsub.f32 %v2251, %v2258
    %v2260 = vadd.f32 %v2193, %v2259
    %v2261 = vlaneseq
    %v2262 = vshrl.u32 %v2261, 7
    %v2263 = vsub.s32 3, %v2262
    %v2264 = vrot.slane %v2057, %v2263
    %vm2265 = vcmp.eq.s32.totalorder %v19, %v2264
    %vm2266 = vcmp.eq.s32.totalorder %v20, %v2264
    %vm2267 = vcmp.eq.s32.totalorder %v21, %v2264
    %vm2268 = vcmp.eq.s32.totalorder %v22, %v2264
    %vm2269 = vcmp.eq.s32.totalorder %v23, %v2264
    %vm2270 = vcmp.eq.s32.totalorder %v24, %v2264
    %vm2271 = vcmp.eq.s32.totalorder %v25, %v2264
    %vm2272 = vcmp.eq.s32.totalorder %v26, %v2264
    %vm2273 = vcmp.eq.s32.totalorder %v27, %v2264
    %vm2274 = vcmp.eq.s32.totalorder %v28, %v2264
    %vm2275 = vcmp.eq.s32.totalorder %v29, %v2264
    %vm2276 = vcmp.eq.s32.totalorder %v30, %v2264
    %vm2277 = vcmp.eq.s32.totalorder %v31, %v2264
    %vm2278 = vcmp.eq.s32.totalorder %v32, %v2264
    %vm2279 = vcmp.eq.s32.totalorder %v33, %v2264
    %vm2280 = vcmp.eq.s32.totalorder %v34, %v2264
    %v2281 = vsel %vm2265, %v1964, 0.0
    %v2282 = vsel %vm2266, %v1970, 0.0
    %v2283 = vsel %vm2267, %v1976, 0.0
    %v2284 = vsel %vm2268, %v1982, 0.0
    %v2285 = vsel %vm2269, %v1988, 0.0
    %v2286 = vsel %vm2270, %v1994, 0.0
    %v2287 = vsel %vm2271, %v2000, 0.0
    %v2288 = vsel %vm2272, %v2006, 0.0
    %v2289 = vsel %vm2273, %v2012, 0.0
    %v2290 = vsel %vm2274, %v2018, 0.0
    %v2291 = vsel %vm2275, %v2024, 0.0
    %v2292 = vsel %vm2276, %v2030, 0.0
    %v2293 = vsel %vm2277, %v2036, 0.0
    %v2294 = vsel %vm2278, %v2042, 0.0
    %v2295 = vsel %vm2279, %v2048, 0.0
    %v2296 = vsel %vm2280, %v2054, 0.0
    %v2297 = vadd.f32 %v2281, %v2282
    %v2298 = vadd.f32 %v2297, %v2283
    %v2299 = vadd.f32 %v2298, %v2284
    %v2300 = vadd.f32 %v2299, %v2285
    %v2301 = vadd.f32 %v2300, %v2286
    %v2302 = vadd.f32 %v2301, %v2287
    %v2303 = vadd.f32 %v2302, %v2288
    %v2304 = vadd.f32 %v2303, %v2289
    %v2305 = vadd.f32 %v2304, %v2290
    %v2306 = vadd.f32 %v2305, %v2291
    %v2307 = vadd.f32 %v2306, %v2292
    %v2308 = vadd.f32 %v2307, %v2293
    %v2309 = vadd.f32 %v2308, %v2294
    %v2310 = vadd.f32 %v2309, %v2295
    %v2311 = vadd.f32 %v2310, %v2296
    %v2312 = vrot.slane %v2311, 4
    %v2313 = vadd.f32 %v2311, %v2312
    %v2314 = vrot.slane %v2313, 2
    %v2315 = vadd.f32 %v2313, %v2314
    %v2316 = vrot.slane %v2315, 1
    %v2317 = vadd.f32 %v2315, %v2316
    %v2318 = vmin.f32 %v2317, 0.0
    %v2319 = vand.u32 2147483647, %v2317
    %v2320 = vsub.f32 0.0, %v2319
    %v2321 = vmul.f32 %v2320, 1.442695
    %v2322 = vpow.pop %v2321
    %v2323 = vadd.f32 %v2322, 1.0
    %v2324 = vlog2.pop %v2323
    %v2325 = vmul.f32 %v2324, 0.6931472
    %v2326 = vsub.f32 %v2318, %v2325
    %v2327 = vadd.f32 %v2260, %v2326
    %v2328 = vlaneseq
    %v2329 = vshrl.u32 %v2328, 7
    %v2330 = vsub.s32 4, %v2329
    %v2331 = vrot.slane %v2057, %v2330
    %vm2332 = vcmp.eq.s32.totalorder %v19, %v2331
    %vm2333 = vcmp.eq.s32.totalorder %v20, %v2331
    %vm2334 = vcmp.eq.s32.totalorder %v21, %v2331
    %vm2335 = vcmp.eq.s32.totalorder %v22, %v2331
    %vm2336 = vcmp.eq.s32.totalorder %v23, %v2331
    %vm2337 = vcmp.eq.s32.totalorder %v24, %v2331
    %vm2338 = vcmp.eq.s32.totalorder %v25, %v2331
    %vm2339 = vcmp.eq.s32.totalorder %v26, %v2331
    %vm2340 = vcmp.eq.s32.totalorder %v27, %v2331
    %vm2341 = vcmp.eq.s32.totalorder %v28, %v2331
    %vm2342 = vcmp.eq.s32.totalorder %v29, %v2331
    %vm2343 = vcmp.eq.s32.totalorder %v30, %v2331
    %vm2344 = vcmp.eq.s32.totalorder %v31, %v2331
    %vm2345 = vcmp.eq.s32.totalorder %v32, %v2331
    %vm2346 = vcmp.eq.s32.totalorder %v33, %v2331
    %vm2347 = vcmp.eq.s32.totalorder %v34, %v2331
    %v2348 = vsel %vm2332, %v1964, 0.0
    %v2349 = vsel %vm2333, %v1970, 0.0
    %v2350 = vsel %vm2334, %v1976, 0.0
    %v2351 = vsel %vm2335, %v1982, 0.0
    %v2352 = vsel %vm2336, %v1988, 0.0
    %v2353 = vsel %vm2337, %v1994, 0.0
    %v2354 = vsel %vm2338, %v2000, 0.0
    %v2355 = vsel %vm2339, %v2006, 0.0
    %v2356 = vsel %vm2340, %v2012, 0.0
    %v2357 = vsel %vm2341, %v2018, 0.0
    %v2358 = vsel %vm2342, %v2024, 0.0
    %v2359 = vsel %vm2343, %v2030, 0.0
    %v2360 = vsel %vm2344, %v2036, 0.0
    %v2361 = vsel %vm2345, %v2042, 0.0
    %v2362 = vsel %vm2346, %v2048, 0.0
    %v2363 = vsel %vm2347, %v2054, 0.0
    %v2364 = vadd.f32 %v2348, %v2349
    %v2365 = vadd.f32 %v2364, %v2350
    %v2366 = vadd.f32 %v2365, %v2351
    %v2367 = vadd.f32 %v2366, %v2352
    %v2368 = vadd.f32 %v2367, %v2353
    %v2369 = vadd.f32 %v2368, %v2354
    %v2370 = vadd.f32 %v2369, %v2355
    %v2371 = vadd.f32 %v2370, %v2356
    %v2372 = vadd.f32 %v2371, %v2357
    %v2373 = vadd.f32 %v2372, %v2358
    %v2374 = vadd.f32 %v2373, %v2359
    %v2375 = vadd.f32 %v2374, %v2360
    %v2376 = vadd.f32 %v2375, %v2361
    %v2377 = vadd.f32 %v2376, %v2362
    %v2378 = vadd.f32 %v2377, %v2363
    %v2379 = vrot.slane %v2378, 4
    %v2380 = vadd.f32 %v2378, %v2379
    %v2381 = vrot.slane %v2380, 2
    %v2382 = vadd.f32 %v2380, %v2381
    %v2383 = vrot.slane %v2382, 1
    %v2384 = vadd.f32 %v2382, %v2383
    %v2385 = vsub.f32 0.0, %v2384
    %v2386 = vmin.f32 %v2385, 0.0
    %v2387 = vand.u32 2147483647, %v2385
    %v2388 = vsub.f32 0.0, %v2387
    %v2389 = vmul.f32 %v2388, 1.442695
    %v2390 = vpow.pop %v2389
    %v2391 = vadd.f32 %v2390, 1.0
    %v2392 = vlog2.pop %v2391
    %v2393 = vmul.f32 %v2392, 0.6931472
    %v2394 = vsub.f32 %v2386, %v2393
    %v2395 = vadd.f32 %v2327, %v2394
    %v2396 = vlaneseq
    %v2397 = vshrl.u32 %v2396, 7
    %v2398 = vsub.s32 5, %v2397
    %v2399 = vrot.slane %v2057, %v2398
    %vm2400 = vcmp.eq.s32.totalorder %v19, %v2399
    %vm2401 = vcmp.eq.s32.totalorder %v20, %v2399
    %vm2402 = vcmp.eq.s32.totalorder %v21, %v2399
    %vm2403 = vcmp.eq.s32.totalorder %v22, %v2399
    %vm2404 = vcmp.eq.s32.totalorder %v23, %v2399
    %vm2405 = vcmp.eq.s32.totalorder %v24, %v2399
    %vm2406 = vcmp.eq.s32.totalorder %v25, %v2399
    %vm2407 = vcmp.eq.s32.totalorder %v26, %v2399
    %vm2408 = vcmp.eq.s32.totalorder %v27, %v2399
    %vm2409 = vcmp.eq.s32.totalorder %v28, %v2399
    %vm2410 = vcmp.eq.s32.totalorder %v29, %v2399
    %vm2411 = vcmp.eq.s32.totalorder %v30, %v2399
    %vm2412 = vcmp.eq.s32.totalorder %v31, %v2399
    %vm2413 = vcmp.eq.s32.totalorder %v32, %v2399
    %vm2414 = vcmp.eq.s32.totalorder %v33, %v2399
    %vm2415 = vcmp.eq.s32.totalorder %v34, %v2399
    %v2416 = vsel %vm2400, %v1964, 0.0
    %v2417 = vsel %vm2401, %v1970, 0.0
    %v2418 = vsel %vm2402, %v1976, 0.0
    %v2419 = vsel %vm2403, %v1982, 0.0
    %v2420 = vsel %vm2404, %v1988, 0.0
    %v2421 = vsel %vm2405, %v1994, 0.0
    %v2422 = vsel %vm2406, %v2000, 0.0
    %v2423 = vsel %vm2407, %v2006, 0.0
    %v2424 = vsel %vm2408, %v2012, 0.0
    %v2425 = vsel %vm2409, %v2018, 0.0
    %v2426 = vsel %vm2410, %v2024, 0.0
    %v2427 = vsel %vm2411, %v2030, 0.0
    %v2428 = vsel %vm2412, %v2036, 0.0
    %v2429 = vsel %vm2413, %v2042, 0.0
    %v2430 = vsel %vm2414, %v2048, 0.0
    %v2431 = vsel %vm2415, %v2054, 0.0
    %v2432 = vadd.f32 %v2416, %v2417
    %v2433 = vadd.f32 %v2432, %v2418
    %v2434 = vadd.f32 %v2433, %v2419
    %v2435 = vadd.f32 %v2434, %v2420
    %v2436 = vadd.f32 %v2435, %v2421
    %v2437 = vadd.f32 %v2436, %v2422
    %v2438 = vadd.f32 %v2437, %v2423
    %v2439 = vadd.f32 %v2438, %v2424
    %v2440 = vadd.f32 %v2439, %v2425
    %v2441 = vadd.f32 %v2440, %v2426
    %v2442 = vadd.f32 %v2441, %v2427
    %v2443 = vadd.f32 %v2442, %v2428
    %v2444 = vadd.f32 %v2443, %v2429
    %v2445 = vadd.f32 %v2444, %v2430
    %v2446 = vadd.f32 %v2445, %v2431
    %v2447 = vrot.slane %v2446, 4
    %v2448 = vadd.f32 %v2446, %v2447
    %v2449 = vrot.slane %v2448, 2
    %v2450 = vadd.f32 %v2448, %v2449
    %v2451 = vrot.slane %v2450, 1
    %v2452 = vadd.f32 %v2450, %v2451
    %v2453 = vsub.f32 0.0, %v2452
    %v2454 = vmin.f32 %v2453, 0.0
    %v2455 = vand.u32 2147483647, %v2453
    %v2456 = vsub.f32 0.0, %v2455
    %v2457 = vmul.f32 %v2456, 1.442695
    %v2458 = vpow.pop %v2457
    %v2459 = vadd.f32 %v2458, 1.0
    %v2460 = vlog2.pop %v2459
    %v2461 = vmul.f32 %v2460, 0.6931472
    %v2462 = vsub.f32 %v2454, %v2461
    %v2463 = vadd.f32 %v2395, %v2462
    %v2464 = vlaneseq
    %v2465 = vshrl.u32 %v2464, 7
    %v2466 = vsub.s32 6, %v2465
    %v2467 = vrot.slane %v2057, %v2466
    %vm2468 = vcmp.eq.s32.totalorder %v19, %v2467
    %vm2469 = vcmp.eq.s32.totalorder %v20, %v2467
    %vm2470 = vcmp.eq.s32.totalorder %v21, %v2467
    %vm2471 = vcmp.eq.s32.totalorder %v22, %v2467
    %vm2472 = vcmp.eq.s32.totalorder %v23, %v2467
    %vm2473 = vcmp.eq.s32.totalorder %v24, %v2467
    %vm2474 = vcmp.eq.s32.totalorder %v25, %v2467
    %vm2475 = vcmp.eq.s32.totalorder %v26, %v2467
    %vm2476 = vcmp.eq.s32.totalorder %v27, %v2467
    %vm2477 = vcmp.eq.s32.totalorder %v28, %v2467
    %vm2478 = vcmp.eq.s32.totalorder %v29, %v2467
    %vm2479 = vcmp.eq.s32.totalorder %v30, %v2467
    %vm2480 = vcmp.eq.s32.totalorder %v31, %v2467
    %vm2481 = vcmp.eq.s32.totalorder %v32, %v2467
    %vm2482 = vcmp.eq.s32.totalorder %v33, %v2467
    %vm2483 = vcmp.eq.s32.totalorder %v34, %v2467
    %v2484 = vsel %vm2468, %v1964, 0.0
    %v2485 = vsel %vm2469, %v1970, 0.0
    %v2486 = vsel %vm2470, %v1976, 0.0
    %v2487 = vsel %vm2471, %v1982, 0.0
    %v2488 = vsel %vm2472, %v1988, 0.0
    %v2489 = vsel %vm2473, %v1994, 0.0
    %v2490 = vsel %vm2474, %v2000, 0.0
    %v2491 = vsel %vm2475, %v2006, 0.0
    %v2492 = vsel %vm2476, %v2012, 0.0
    %v2493 = vsel %vm2477, %v2018, 0.0
    %v2494 = vsel %vm2478, %v2024, 0.0
    %v2495 = vsel %vm2479, %v2030, 0.0
    %v2496 = vsel %vm2480, %v2036, 0.0
    %v2497 = vsel %vm2481, %v2042, 0.0
    %v2498 = vsel %vm2482, %v2048, 0.0
    %v2499 = vsel %vm2483, %v2054, 0.0
    %v2500 = vadd.f32 %v2484, %v2485
    %v2501 = vadd.f32 %v2500, %v2486
    %v2502 = vadd.f32 %v2501, %v2487
    %v2503 = vadd.f32 %v2502, %v2488
    %v2504 = vadd.f32 %v2503, %v2489
    %v2505 = vadd.f32 %v2504, %v2490
    %v2506 = vadd.f32 %v2505, %v2491
    %v2507 = vadd.f32 %v2506, %v2492
    %v2508 = vadd.f32 %v2507, %v2493
    %v2509 = vadd.f32 %v2508, %v2494
    %v2510 = vadd.f32 %v2509, %v2495
    %v2511 = vadd.f32 %v2510, %v2496
    %v2512 = vadd.f32 %v2511, %v2497
    %v2513 = vadd.f32 %v2512, %v2498
    %v2514 = vadd.f32 %v2513, %v2499
    %v2515 = vrot.slane %v2514, 4
    %v2516 = vadd.f32 %v2514, %v2515
    %v2517 = vrot.slane %v2516, 2
    %v2518 = vadd.f32 %v2516, %v2517
    %v2519 = vrot.slane %v2518, 1
    %v2520 = vadd.f32 %v2518, %v2519
    %v2521 = vsub.f32 0.0, %v2520
    %v2522 = vmin.f32 %v2521, 0.0
    %v2523 = vand.u32 2147483647, %v2521
    %v2524 = vsub.f32 0.0, %v2523
    %v2525 = vmul.f32 %v2524, 1.442695
    %v2526 = vpow.pop %v2525
    %v2527 = vadd.f32 %v2526, 1.0
    %v2528 = vlog2.pop %v2527
    %v2529 = vmul.f32 %v2528, 0.6931472
    %v2530 = vsub.f32 %v2522, %v2529
    %v2531 = vadd.f32 %v2463, %v2530
    %v2532 = vlaneseq
    %v2533 = vshrl.u32 %v2532, 7
    %v2534 = vsub.s32 7, %v2533
    %v2535 = vrot.slane %v2057, %v2534
    %vm2536 = vcmp.eq.s32.totalorder %v19, %v2535
    %vm2537 = vcmp.eq.s32.totalorder %v20, %v2535
    %vm2538 = vcmp.eq.s32.totalorder %v21, %v2535
    %vm2539 = vcmp.eq.s32.totalorder %v22, %v2535
    %vm2540 = vcmp.eq.s32.totalorder %v23, %v2535
    %vm2541 = vcmp.eq.s32.totalorder %v24, %v2535
    %vm2542 = vcmp.eq.s32.totalorder %v25, %v2535
    %vm2543 = vcmp.eq.s32.totalorder %v26, %v2535
    %vm2544 = vcmp.eq.s32.totalorder %v27, %v2535
    %vm2545 = vcmp.eq.s32.totalorder %v28, %v2535
    %vm2546 = vcmp.eq.s32.totalorder %v29, %v2535
    %vm2547 = vcmp.eq.s32.totalorder %v30, %v2535
    %vm2548 = vcmp.eq.s32.totalorder %v31, %v2535
    %vm2549 = vcmp.eq.s32.totalorder %v32, %v2535
    %vm2550 = vcmp.eq.s32.totalorder %v33, %v2535
    %vm2551 = vcmp.eq.s32.totalorder %v34, %v2535
    %v2552 = vsel %vm2536, %v1964, 0.0
    %v2553 = vsel %vm2537, %v1970, 0.0
    %v2554 = vsel %vm2538, %v1976, 0.0
    %v2555 = vsel %vm2539, %v1982, 0.0
    %v2556 = vsel %vm2540, %v1988, 0.0
    %v2557 = vsel %vm2541, %v1994, 0.0
    %v2558 = vsel %vm2542, %v2000, 0.0
    %v2559 = vsel %vm2543, %v2006, 0.0
    %v2560 = vsel %vm2544, %v2012, 0.0
    %v2561 = vsel %vm2545, %v2018, 0.0
    %v2562 = vsel %vm2546, %v2024, 0.0
    %v2563 = vsel %vm2547, %v2030, 0.0
    %v2564 = vsel %vm2548, %v2036, 0.0
    %v2565 = vsel %vm2549, %v2042, 0.0
    %v2566 = vsel %vm2550, %v2048, 0.0
    %v2567 = vsel %vm2551, %v2054, 0.0
    %v2568 = vadd.f32 %v2552, %v2553
    %v2569 = vadd.f32 %v2568, %v2554
    %v2570 = vadd.f32 %v2569, %v2555
    %v2571 = vadd.f32 %v2570, %v2556
    %v2572 = vadd.f32 %v2571, %v2557
    %v2573 = vadd.f32 %v2572, %v2558
    %v2574 = vadd.f32 %v2573, %v2559
    %v2575 = vadd.f32 %v2574, %v2560
    %v2576 = vadd.f32 %v2575, %v2561
    %v2577 = vadd.f32 %v2576, %v2562
    %v2578 = vadd.f32 %v2577, %v2563
    %v2579 = vadd.f32 %v2578, %v2564
    %v2580 = vadd.f32 %v2579, %v2565
    %v2581 = vadd.f32 %v2580, %v2566
    %v2582 = vadd.f32 %v2581, %v2567
    %v2583 = vrot.slane %v2582, 4
    %v2584 = vadd.f32 %v2582, %v2583
    %v2585 = vrot.slane %v2584, 2
    %v2586 = vadd.f32 %v2584, %v2585
    %v2587 = vrot.slane %v2586, 1
    %v2588 = vadd.f32 %v2586, %v2587
    %v2589 = vsub.f32 0.0, %v2588
    %v2590 = vmin.f32 %v2589, 0.0
    %v2591 = vand.u32 2147483647, %v2589
    %v2592 = vsub.f32 0.0, %v2591
    %v2593 = vmul.f32 %v2592, 1.442695
    %v2594 = vpow.pop %v2593
    %v2595 = vadd.f32 %v2594, 1.0
    %v2596 = vlog2.pop %v2595
    %v2597 = vmul.f32 %v2596, 0.6931472
    %v2598 = vsub.f32 %v2590, %v2597
    %v2599 = vadd.f32 %v2531, %v2598
    %v2600 = vlaneseq
    %v2601 = vshrl.u32 %v2600, 7
    %v2602 = vsub.s32 0, %v2601
    %v2603 = vrot.slane %v2058, %v2602
    %vm2604 = vcmp.eq.s32.totalorder %v19, %v2603
    %vm2605 = vcmp.eq.s32.totalorder %v20, %v2603
    %vm2606 = vcmp.eq.s32.totalorder %v21, %v2603
    %vm2607 = vcmp.eq.s32.totalorder %v22, %v2603
    %vm2608 = vcmp.eq.s32.totalorder %v23, %v2603
    %vm2609 = vcmp.eq.s32.totalorder %v24, %v2603
    %vm2610 = vcmp.eq.s32.totalorder %v25, %v2603
    %vm2611 = vcmp.eq.s32.totalorder %v26, %v2603
    %vm2612 = vcmp.eq.s32.totalorder %v27, %v2603
    %vm2613 = vcmp.eq.s32.totalorder %v28, %v2603
    %vm2614 = vcmp.eq.s32.totalorder %v29, %v2603
    %vm2615 = vcmp.eq.s32.totalorder %v30, %v2603
    %vm2616 = vcmp.eq.s32.totalorder %v31, %v2603
    %vm2617 = vcmp.eq.s32.totalorder %v32, %v2603
    %vm2618 = vcmp.eq.s32.totalorder %v33, %v2603
    %vm2619 = vcmp.eq.s32.totalorder %v34, %v2603
    %v2620 = vsel %vm2604, %v1964, 0.0
    %v2621 = vsel %vm2605, %v1970, 0.0
    %v2622 = vsel %vm2606, %v1976, 0.0
    %v2623 = vsel %vm2607, %v1982, 0.0
    %v2624 = vsel %vm2608, %v1988, 0.0
    %v2625 = vsel %vm2609, %v1994, 0.0
    %v2626 = vsel %vm2610, %v2000, 0.0
    %v2627 = vsel %vm2611, %v2006, 0.0
    %v2628 = vsel %vm2612, %v2012, 0.0
    %v2629 = vsel %vm2613, %v2018, 0.0
    %v2630 = vsel %vm2614, %v2024, 0.0
    %v2631 = vsel %vm2615, %v2030, 0.0
    %v2632 = vsel %vm2616, %v2036, 0.0
    %v2633 = vsel %vm2617, %v2042, 0.0
    %v2634 = vsel %vm2618, %v2048, 0.0
    %v2635 = vsel %vm2619, %v2054, 0.0
    %v2636 = vadd.f32 %v2620, %v2621
    %v2637 = vadd.f32 %v2636, %v2622
    %v2638 = vadd.f32 %v2637, %v2623
    %v2639 = vadd.f32 %v2638, %v2624
    %v2640 = vadd.f32 %v2639, %v2625
    %v2641 = vadd.f32 %v2640, %v2626
    %v2642 = vadd.f32 %v2641, %v2627
    %v2643 = vadd.f32 %v2642, %v2628
    %v2644 = vadd.f32 %v2643, %v2629
    %v2645 = vadd.f32 %v2644, %v2630
    %v2646 = vadd.f32 %v2645, %v2631
    %v2647 = vadd.f32 %v2646, %v2632
    %v2648 = vadd.f32 %v2647, %v2633
    %v2649 = vadd.f32 %v2648, %v2634
    %v2650 = vadd.f32 %v2649, %v2635
    %v2651 = vrot.slane %v2650, 4
    %v2652 = vadd.f32 %v2650, %v2651
    %v2653 = vrot.slane %v2652, 2
    %v2654 = vadd.f32 %v2652, %v2653
    %v2655 = vrot.slane %v2654, 1
    %v2656 = vadd.f32 %v2654, %v2655
    %v2657 = vsub.f32 0.0, %v2656
    %v2658 = vmin.f32 %v2657, 0.0
    %v2659 = vand.u32 2147483647, %v2657
    %v2660 = vsub.f32 0.0, %v2659
    %v2661 = vmul.f32 %v2660, 1.442695
    %v2662 = vpow.pop %v2661
    %v2663 = vadd.f32 %v2662, 1.0
    %v2664 = vlog2.pop %v2663
    %v2665 = vmul.f32 %v2664, 0.6931472
    %v2666 = vsub.f32 %v2658, %v2665
    %v2667 = vadd.f32 %v2599, %v2666
    %v2668 = vlaneseq
    %v2669 = vshrl.u32 %v2668, 7
    %v2670 = vsub.s32 1, %v2669
    %v2671 = vrot.slane %v2058, %v2670
    %vm2672 = vcmp.eq.s32.totalorder %v19, %v2671
    %vm2673 = vcmp.eq.s32.totalorder %v20, %v2671
    %vm2674 = vcmp.eq.s32.totalorder %v21, %v2671
    %vm2675 = vcmp.eq.s32.totalorder %v22, %v2671
    %vm2676 = vcmp.eq.s32.totalorder %v23, %v2671
    %vm2677 = vcmp.eq.s32.totalorder %v24, %v2671
    %vm2678 = vcmp.eq.s32.totalorder %v25, %v2671
    %vm2679 = vcmp.eq.s32.totalorder %v26, %v2671
    %vm2680 = vcmp.eq.s32.totalorder %v27, %v2671
    %vm2681 = vcmp.eq.s32.totalorder %v28, %v2671
    %vm2682 = vcmp.eq.s32.totalorder %v29, %v2671
    %vm2683 = vcmp.eq.s32.totalorder %v30, %v2671
    %vm2684 = vcmp.eq.s32.totalorder %v31, %v2671
    %vm2685 = vcmp.eq.s32.totalorder %v32, %v2671
    %vm2686 = vcmp.eq.s32.totalorder %v33, %v2671
    %vm2687 = vcmp.eq.s32.totalorder %v34, %v2671
    %v2688 = vsel %vm2672, %v1964, 0.0
    %v2689 = vsel %vm2673, %v1970, 0.0
    %v2690 = vsel %vm2674, %v1976, 0.0
    %v2691 = vsel %vm2675, %v1982, 0.0
    %v2692 = vsel %vm2676, %v1988, 0.0
    %v2693 = vsel %vm2677, %v1994, 0.0
    %v2694 = vsel %vm2678, %v2000, 0.0
    %v2695 = vsel %vm2679, %v2006, 0.0
    %v2696 = vsel %vm2680, %v2012, 0.0
    %v2697 = vsel %vm2681, %v2018, 0.0
    %v2698 = vsel %vm2682, %v2024, 0.0
    %v2699 = vsel %vm2683, %v2030, 0.0
    %v2700 = vsel %vm2684, %v2036, 0.0
    %v2701 = vsel %vm2685, %v2042, 0.0
    %v2702 = vsel %vm2686, %v2048, 0.0
    %v2703 = vsel %vm2687, %v2054, 0.0
    %v2704 = vadd.f32 %v2688, %v2689
    %v2705 = vadd.f32 %v2704, %v2690
    %v2706 = vadd.f32 %v2705, %v2691
    %v2707 = vadd.f32 %v2706, %v2692
    %v2708 = vadd.f32 %v2707, %v2693
    %v2709 = vadd.f32 %v2708, %v2694
    %v2710 = vadd.f32 %v2709, %v2695
    %v2711 = vadd.f32 %v2710, %v2696
    %v2712 = vadd.f32 %v2711, %v2697
    %v2713 = vadd.f32 %v2712, %v2698
    %v2714 = vadd.f32 %v2713, %v2699
    %v2715 = vadd.f32 %v2714, %v2700
    %v2716 = vadd.f32 %v2715, %v2701
    %v2717 = vadd.f32 %v2716, %v2702
    %v2718 = vadd.f32 %v2717, %v2703
    %v2719 = vrot.slane %v2718, 4
    %v2720 = vadd.f32 %v2718, %v2719
    %v2721 = vrot.slane %v2720, 2
    %v2722 = vadd.f32 %v2720, %v2721
    %v2723 = vrot.slane %v2722, 1
    %v2724 = vadd.f32 %v2722, %v2723
    %v2725 = vsub.f32 0.0, %v2724
    %v2726 = vmin.f32 %v2725, 0.0
    %v2727 = vand.u32 2147483647, %v2725
    %v2728 = vsub.f32 0.0, %v2727
    %v2729 = vmul.f32 %v2728, 1.442695
    %v2730 = vpow.pop %v2729
    %v2731 = vadd.f32 %v2730, 1.0
    %v2732 = vlog2.pop %v2731
    %v2733 = vmul.f32 %v2732, 0.6931472
    %v2734 = vsub.f32 %v2726, %v2733
    %v2735 = vadd.f32 %v2667, %v2734
    %v2736 = vlaneseq
    %v2737 = vshrl.u32 %v2736, 7
    %v2738 = vsub.s32 2, %v2737
    %v2739 = vrot.slane %v2058, %v2738
    %vm2740 = vcmp.eq.s32.totalorder %v19, %v2739
    %vm2741 = vcmp.eq.s32.totalorder %v20, %v2739
    %vm2742 = vcmp.eq.s32.totalorder %v21, %v2739
    %vm2743 = vcmp.eq.s32.totalorder %v22, %v2739
    %vm2744 = vcmp.eq.s32.totalorder %v23, %v2739
    %vm2745 = vcmp.eq.s32.totalorder %v24, %v2739
    %vm2746 = vcmp.eq.s32.totalorder %v25, %v2739
    %vm2747 = vcmp.eq.s32.totalorder %v26, %v2739
    %vm2748 = vcmp.eq.s32.totalorder %v27, %v2739
    %vm2749 = vcmp.eq.s32.totalorder %v28, %v2739
    %vm2750 = vcmp.eq.s32.totalorder %v29, %v2739
    %vm2751 = vcmp.eq.s32.totalorder %v30, %v2739
    %vm2752 = vcmp.eq.s32.totalorder %v31, %v2739
    %vm2753 = vcmp.eq.s32.totalorder %v32, %v2739
    %vm2754 = vcmp.eq.s32.totalorder %v33, %v2739
    %vm2755 = vcmp.eq.s32.totalorder %v34, %v2739
    %v2756 = vsel %vm2740, %v1964, 0.0
    %v2757 = vsel %vm2741, %v1970, 0.0
    %v2758 = vsel %vm2742, %v1976, 0.0
    %v2759 = vsel %vm2743, %v1982, 0.0
    %v2760 = vsel %vm2744, %v1988, 0.0
    %v2761 = vsel %vm2745, %v1994, 0.0
    %v2762 = vsel %vm2746, %v2000, 0.0
    %v2763 = vsel %vm2747, %v2006, 0.0
    %v2764 = vsel %vm2748, %v2012, 0.0
    %v2765 = vsel %vm2749, %v2018, 0.0
    %v2766 = vsel %vm2750, %v2024, 0.0
    %v2767 = vsel %vm2751, %v2030, 0.0
    %v2768 = vsel %vm2752, %v2036, 0.0
    %v2769 = vsel %vm2753, %v2042, 0.0
    %v2770 = vsel %vm2754, %v2048, 0.0
    %v2771 = vsel %vm2755, %v2054, 0.0
    %v2772 = vadd.f32 %v2756, %v2757
    %v2773 = vadd.f32 %v2772, %v2758
    %v2774 = vadd.f32 %v2773, %v2759
    %v2775 = vadd.f32 %v2774, %v2760
    %v2776 = vadd.f32 %v2775, %v2761
    %v2777 = vadd.f32 %v2776, %v2762
    %v2778 = vadd.f32 %v2777, %v2763
    %v2779 = vadd.f32 %v2778, %v2764
    %v2780 = vadd.f32 %v2779, %v2765
    %v2781 = vadd.f32 %v2780, %v2766
    %v2782 = vadd.f32 %v2781, %v2767
    %v2783 = vadd.f32 %v2782, %v2768
    %v2784 = vadd.f32 %v2783, %v2769
    %v2785 = vadd.f32 %v2784, %v2770
    %v2786 = vadd.f32 %v2785, %v2771
    %v2787 = vrot.slane %v2786, 4
    %v2788 = vadd.f32 %v2786, %v2787
    %v2789 = vrot.slane %v2788, 2
    %v2790 = vadd.f32 %v2788, %v2789
    %v2791 = vrot.slane %v2790, 1
    %v2792 = vadd.f32 %v2790, %v2791
    %v2793 = vsub.f32 0.0, %v2792
    %v2794 = vmin.f32 %v2793, 0.0
    %v2795 = vand.u32 2147483647, %v2793
    %v2796 = vsub.f32 0.0, %v2795
    %v2797 = vmul.f32 %v2796, 1.442695
    %v2798 = vpow.pop %v2797
    %v2799 = vadd.f32 %v2798, 1.0
    %v2800 = vlog2.pop %v2799
    %v2801 = vmul.f32 %v2800, 0.6931472
    %v2802 = vsub.f32 %v2794, %v2801
    %v2803 = vadd.f32 %v2735, %v2802
    %v2804 = vlaneseq
    %v2805 = vshrl.u32 %v2804, 7
    %v2806 = vsub.s32 3, %v2805
    %v2807 = vrot.slane %v2058, %v2806
    %vm2808 = vcmp.eq.s32.totalorder %v19, %v2807
    %vm2809 = vcmp.eq.s32.totalorder %v20, %v2807
    %vm2810 = vcmp.eq.s32.totalorder %v21, %v2807
    %vm2811 = vcmp.eq.s32.totalorder %v22, %v2807
    %vm2812 = vcmp.eq.s32.totalorder %v23, %v2807
    %vm2813 = vcmp.eq.s32.totalorder %v24, %v2807
    %vm2814 = vcmp.eq.s32.totalorder %v25, %v2807
    %vm2815 = vcmp.eq.s32.totalorder %v26, %v2807
    %vm2816 = vcmp.eq.s32.totalorder %v27, %v2807
    %vm2817 = vcmp.eq.s32.totalorder %v28, %v2807
    %vm2818 = vcmp.eq.s32.totalorder %v29, %v2807
    %vm2819 = vcmp.eq.s32.totalorder %v30, %v2807
    %vm2820 = vcmp.eq.s32.totalorder %v31, %v2807
    %vm2821 = vcmp.eq.s32.totalorder %v32, %v2807
    %vm2822 = vcmp.eq.s32.totalorder %v33, %v2807
    %vm2823 = vcmp.eq.s32.totalorder %v34, %v2807
    %v2824 = vsel %vm2808, %v1964, 0.0
    %v2825 = vsel %vm2809, %v1970, 0.0
    %v2826 = vsel %vm2810, %v1976, 0.0
    %v2827 = vsel %vm2811, %v1982, 0.0
    %v2828 = vsel %vm2812, %v1988, 0.0
    %v2829 = vsel %vm2813, %v1994, 0.0
    %v2830 = vsel %vm2814, %v2000, 0.0
    %v2831 = vsel %vm2815, %v2006, 0.0
    %v2832 = vsel %vm2816, %v2012, 0.0
    %v2833 = vsel %vm2817, %v2018, 0.0
    %v2834 = vsel %vm2818, %v2024, 0.0
    %v2835 = vsel %vm2819, %v2030, 0.0
    %v2836 = vsel %vm2820, %v2036, 0.0
    %v2837 = vsel %vm2821, %v2042, 0.0
    %v2838 = vsel %vm2822, %v2048, 0.0
    %v2839 = vsel %vm2823, %v2054, 0.0
    %v2840 = vadd.f32 %v2824, %v2825
    %v2841 = vadd.f32 %v2840, %v2826
    %v2842 = vadd.f32 %v2841, %v2827
    %v2843 = vadd.f32 %v2842, %v2828
    %v2844 = vadd.f32 %v2843, %v2829
    %v2845 = vadd.f32 %v2844, %v2830
    %v2846 = vadd.f32 %v2845, %v2831
    %v2847 = vadd.f32 %v2846, %v2832
    %v2848 = vadd.f32 %v2847, %v2833
    %v2849 = vadd.f32 %v2848, %v2834
    %v2850 = vadd.f32 %v2849, %v2835
    %v2851 = vadd.f32 %v2850, %v2836
    %v2852 = vadd.f32 %v2851, %v2837
    %v2853 = vadd.f32 %v2852, %v2838
    %v2854 = vadd.f32 %v2853, %v2839
    %v2855 = vrot.slane %v2854, 4
    %v2856 = vadd.f32 %v2854, %v2855
    %v2857 = vrot.slane %v2856, 2
    %v2858 = vadd.f32 %v2856, %v2857
    %v2859 = vrot.slane %v2858, 1
    %v2860 = vadd.f32 %v2858, %v2859
    %v2861 = vsub.f32 0.0, %v2860
    %v2862 = vmin.f32 %v2861, 0.0
    %v2863 = vand.u32 2147483647, %v2861
    %v2864 = vsub.f32 0.0, %v2863
    %v2865 = vmul.f32 %v2864, 1.442695
    %v2866 = vpow.pop %v2865
    %v2867 = vadd.f32 %v2866, 1.0
    %v2868 = vlog2.pop %v2867
    %v2869 = vmul.f32 %v2868, 0.6931472
    %v2870 = vsub.f32 %v2862, %v2869
    %v2871 = vadd.f32 %v2803, %v2870
    %v2872 = vlaneseq
    %v2873 = vshrl.u32 %v2872, 7
    %v2874 = vsub.s32 4, %v2873
    %v2875 = vrot.slane %v2058, %v2874
    %vm2876 = vcmp.eq.s32.totalorder %v19, %v2875
    %vm2877 = vcmp.eq.s32.totalorder %v20, %v2875
    %vm2878 = vcmp.eq.s32.totalorder %v21, %v2875
    %vm2879 = vcmp.eq.s32.totalorder %v22, %v2875
    %vm2880 = vcmp.eq.s32.totalorder %v23, %v2875
    %vm2881 = vcmp.eq.s32.totalorder %v24, %v2875
    %vm2882 = vcmp.eq.s32.totalorder %v25, %v2875
    %vm2883 = vcmp.eq.s32.totalorder %v26, %v2875
    %vm2884 = vcmp.eq.s32.totalorder %v27, %v2875
    %vm2885 = vcmp.eq.s32.totalorder %v28, %v2875
    %vm2886 = vcmp.eq.s32.totalorder %v29, %v2875
    %vm2887 = vcmp.eq.s32.totalorder %v30, %v2875
    %vm2888 = vcmp.eq.s32.totalorder %v31, %v2875
    %vm2889 = vcmp.eq.s32.totalorder %v32, %v2875
    %vm2890 = vcmp.eq.s32.totalorder %v33, %v2875
    %vm2891 = vcmp.eq.s32.totalorder %v34, %v2875
    %v2892 = vsel %vm2876, %v1964, 0.0
    %v2893 = vsel %vm2877, %v1970, 0.0
    %v2894 = vsel %vm2878, %v1976, 0.0
    %v2895 = vsel %vm2879, %v1982, 0.0
    %v2896 = vsel %vm2880, %v1988, 0.0
    %v2897 = vsel %vm2881, %v1994, 0.0
    %v2898 = vsel %vm2882, %v2000, 0.0
    %v2899 = vsel %vm2883, %v2006, 0.0
    %v2900 = vsel %vm2884, %v2012, 0.0
    %v2901 = vsel %vm2885, %v2018, 0.0
    %v2902 = vsel %vm2886, %v2024, 0.0
    %v2903 = vsel %vm2887, %v2030, 0.0
    %v2904 = vsel %vm2888, %v2036, 0.0
    %v2905 = vsel %vm2889, %v2042, 0.0
    %v2906 = vsel %vm2890, %v2048, 0.0
    %v2907 = vsel %vm2891, %v2054, 0.0
    %v2908 = vadd.f32 %v2892, %v2893
    %v2909 = vadd.f32 %v2908, %v2894
    %v2910 = vadd.f32 %v2909, %v2895
    %v2911 = vadd.f32 %v2910, %v2896
    %v2912 = vadd.f32 %v2911, %v2897
    %v2913 = vadd.f32 %v2912, %v2898
    %v2914 = vadd.f32 %v2913, %v2899
    %v2915 = vadd.f32 %v2914, %v2900
    %v2916 = vadd.f32 %v2915, %v2901
    %v2917 = vadd.f32 %v2916, %v2902
    %v2918 = vadd.f32 %v2917, %v2903
    %v2919 = vadd.f32 %v2918, %v2904
    %v2920 = vadd.f32 %v2919, %v2905
    %v2921 = vadd.f32 %v2920, %v2906
    %v2922 = vadd.f32 %v2921, %v2907
    %v2923 = vrot.slane %v2922, 4
    %v2924 = vadd.f32 %v2922, %v2923
    %v2925 = vrot.slane %v2924, 2
    %v2926 = vadd.f32 %v2924, %v2925
    %v2927 = vrot.slane %v2926, 1
    %v2928 = vadd.f32 %v2926, %v2927
    %v2929 = vsub.f32 0.0, %v2928
    %v2930 = vmin.f32 %v2929, 0.0
    %v2931 = vand.u32 2147483647, %v2929
    %v2932 = vsub.f32 0.0, %v2931
    %v2933 = vmul.f32 %v2932, 1.442695
    %v2934 = vpow.pop %v2933
    %v2935 = vadd.f32 %v2934, 1.0
    %v2936 = vlog2.pop %v2935
    %v2937 = vmul.f32 %v2936, 0.6931472
    %v2938 = vsub.f32 %v2930, %v2937
    %v2939 = vadd.f32 %v2871, %v2938
    %v2940 = vlaneseq
    %v2941 = vshrl.u32 %v2940, 7
    %v2942 = vsub.s32 5, %v2941
    %v2943 = vrot.slane %v2058, %v2942
    %vm2944 = vcmp.eq.s32.totalorder %v19, %v2943
    %vm2945 = vcmp.eq.s32.totalorder %v20, %v2943
    %vm2946 = vcmp.eq.s32.totalorder %v21, %v2943
    %vm2947 = vcmp.eq.s32.totalorder %v22, %v2943
    %vm2948 = vcmp.eq.s32.totalorder %v23, %v2943
    %vm2949 = vcmp.eq.s32.totalorder %v24, %v2943
    %vm2950 = vcmp.eq.s32.totalorder %v25, %v2943
    %vm2951 = vcmp.eq.s32.totalorder %v26, %v2943
    %vm2952 = vcmp.eq.s32.totalorder %v27, %v2943
    %vm2953 = vcmp.eq.s32.totalorder %v28, %v2943
    %vm2954 = vcmp.eq.s32.totalorder %v29, %v2943
    %vm2955 = vcmp.eq.s32.totalorder %v30, %v2943
    %vm2956 = vcmp.eq.s32.totalorder %v31, %v2943
    %vm2957 = vcmp.eq.s32.totalorder %v32, %v2943
    %vm2958 = vcmp.eq.s32.totalorder %v33, %v2943
    %vm2959 = vcmp.eq.s32.totalorder %v34, %v2943
    %v2960 = vsel %vm2944, %v1964, 0.0
    %v2961 = vsel %vm2945, %v1970, 0.0
    %v2962 = vsel %vm2946, %v1976, 0.0
    %v2963 = vsel %vm2947, %v1982, 0.0
    %v2964 = vsel %vm2948, %v1988, 0.0
    %v2965 = vsel %vm2949, %v1994, 0.0
    %v2966 = vsel %vm2950, %v2000, 0.0
    %v2967 = vsel %vm2951, %v2006, 0.0
    %v2968 = vsel %vm2952, %v2012, 0.0
    %v2969 = vsel %vm2953, %v2018, 0.0
    %v2970 = vsel %vm2954, %v2024, 0.0
    %v2971 = vsel %vm2955, %v2030, 0.0
    %v2972 = vsel %vm2956, %v2036, 0.0
    %v2973 = vsel %vm2957, %v2042, 0.0
    %v2974 = vsel %vm2958, %v2048, 0.0
    %v2975 = vsel %vm2959, %v2054, 0.0
    %v2976 = vadd.f32 %v2960, %v2961
    %v2977 = vadd.f32 %v2976, %v2962
    %v2978 = vadd.f32 %v2977, %v2963
    %v2979 = vadd.f32 %v2978, %v2964
    %v2980 = vadd.f32 %v2979, %v2965
    %v2981 = vadd.f32 %v2980, %v2966
    %v2982 = vadd.f32 %v2981, %v2967
    %v2983 = vadd.f32 %v2982, %v2968
    %v2984 = vadd.f32 %v2983, %v2969
    %v2985 = vadd.f32 %v2984, %v2970
    %v2986 = vadd.f32 %v2985, %v2971
    %v2987 = vadd.f32 %v2986, %v2972
    %v2988 = vadd.f32 %v2987, %v2973
    %v2989 = vadd.f32 %v2988, %v2974
    %v2990 = vadd.f32 %v2989, %v2975
    %v2991 = vrot.slane %v2990, 4
    %v2992 = vadd.f32 %v2990, %v2991
    %v2993 = vrot.slane %v2992, 2
    %v2994 = vadd.f32 %v2992, %v2993
    %v2995 = vrot.slane %v2994, 1
    %v2996 = vadd.f32 %v2994, %v2995
    %v2997 = vsub.f32 0.0, %v2996
    %v2998 = vmin.f32 %v2997, 0.0
    %v2999 = vand.u32 2147483647, %v2997
    %v3000 = vsub.f32 0.0, %v2999
    %v3001 = vmul.f32 %v3000, 1.442695
    %v3002 = vpow.pop %v3001
    %v3003 = vadd.f32 %v3002, 1.0
    %v3004 = vlog2.pop %v3003
    %v3005 = vmul.f32 %v3004, 0.6931472
    %v3006 = vsub.f32 %v2998, %v3005
    %v3007 = vadd.f32 %v2939, %v3006
    %v3008 = vlaneseq
    %v3009 = vshrl.u32 %v3008, 7
    %v3010 = vsub.s32 6, %v3009
    %v3011 = vrot.slane %v2058, %v3010
    %vm3012 = vcmp.eq.s32.totalorder %v19, %v3011
    %vm3013 = vcmp.eq.s32.totalorder %v20, %v3011
    %vm3014 = vcmp.eq.s32.totalorder %v21, %v3011
    %vm3015 = vcmp.eq.s32.totalorder %v22, %v3011
    %vm3016 = vcmp.eq.s32.totalorder %v23, %v3011
    %vm3017 = vcmp.eq.s32.totalorder %v24, %v3011
    %vm3018 = vcmp.eq.s32.totalorder %v25, %v3011
    %vm3019 = vcmp.eq.s32.totalorder %v26, %v3011
    %vm3020 = vcmp.eq.s32.totalorder %v27, %v3011
    %vm3021 = vcmp.eq.s32.totalorder %v28, %v3011
    %vm3022 = vcmp.eq.s32.totalorder %v29, %v3011
    %vm3023 = vcmp.eq.s32.totalorder %v30, %v3011
    %vm3024 = vcmp.eq.s32.totalorder %v31, %v3011
    %vm3025 = vcmp.eq.s32.totalorder %v32, %v3011
    %vm3026 = vcmp.eq.s32.totalorder %v33, %v3011
    %vm3027 = vcmp.eq.s32.totalorder %v34, %v3011
    %v3028 = vsel %vm3012, %v1964, 0.0
    %v3029 = vsel %vm3013, %v1970, 0.0
    %v3030 = vsel %vm3014, %v1976, 0.0
    %v3031 = vsel %vm3015, %v1982, 0.0
    %v3032 = vsel %vm3016, %v1988, 0.0
    %v3033 = vsel %vm3017, %v1994, 0.0
    %v3034 = vsel %vm3018, %v2000, 0.0
    %v3035 = vsel %vm3019, %v2006, 0.0
    %v3036 = vsel %vm3020, %v2012, 0.0
    %v3037 = vsel %vm3021, %v2018, 0.0
    %v3038 = vsel %vm3022, %v2024, 0.0
    %v3039 = vsel %vm3023, %v2030, 0.0
    %v3040 = vsel %vm3024, %v2036, 0.0
    %v3041 = vsel %vm3025, %v2042, 0.0
    %v3042 = vsel %vm3026, %v2048, 0.0
    %v3043 = vsel %vm3027, %v2054, 0.0
    %v3044 = vadd.f32 %v3028, %v3029
    %v3045 = vadd.f32 %v3044, %v3030
    %v3046 = vadd.f32 %v3045, %v3031
    %v3047 = vadd.f32 %v3046, %v3032
    %v3048 = vadd.f32 %v3047, %v3033
    %v3049 = vadd.f32 %v3048, %v3034
    %v3050 = vadd.f32 %v3049, %v3035
    %v3051 = vadd.f32 %v3050, %v3036
    %v3052 = vadd.f32 %v3051, %v3037
    %v3053 = vadd.f32 %v3052, %v3038
    %v3054 = vadd.f32 %v3053, %v3039
    %v3055 = vadd.f32 %v3054, %v3040
    %v3056 = vadd.f32 %v3055, %v3041
    %v3057 = vadd.f32 %v3056, %v3042
    %v3058 = vadd.f32 %v3057, %v3043
    %v3059 = vrot.slane %v3058, 4
    %v3060 = vadd.f32 %v3058, %v3059
    %v3061 = vrot.slane %v3060, 2
    %v3062 = vadd.f32 %v3060, %v3061
    %v3063 = vrot.slane %v3062, 1
    %v3064 = vadd.f32 %v3062, %v3063
    %v3065 = vsub.f32 0.0, %v3064
    %v3066 = vmin.f32 %v3065, 0.0
    %v3067 = vand.u32 2147483647, %v3065
    %v3068 = vsub.f32 0.0, %v3067
    %v3069 = vmul.f32 %v3068, 1.442695
    %v3070 = vpow.pop %v3069
    %v3071 = vadd.f32 %v3070, 1.0
    %v3072 = vlog2.pop %v3071
    %v3073 = vmul.f32 %v3072, 0.6931472
    %v3074 = vsub.f32 %v3066, %v3073
    %v3075 = vadd.f32 %v3007, %v3074
    %v3076 = vlaneseq
    %v3077 = vshrl.u32 %v3076, 7
    %v3078 = vsub.s32 7, %v3077
    %v3079 = vrot.slane %v2058, %v3078
    %vm3080 = vcmp.eq.s32.totalorder %v19, %v3079
    %vm3081 = vcmp.eq.s32.totalorder %v20, %v3079
    %vm3082 = vcmp.eq.s32.totalorder %v21, %v3079
    %vm3083 = vcmp.eq.s32.totalorder %v22, %v3079
    %vm3084 = vcmp.eq.s32.totalorder %v23, %v3079
    %vm3085 = vcmp.eq.s32.totalorder %v24, %v3079
    %vm3086 = vcmp.eq.s32.totalorder %v25, %v3079
    %vm3087 = vcmp.eq.s32.totalorder %v26, %v3079
    %vm3088 = vcmp.eq.s32.totalorder %v27, %v3079
    %vm3089 = vcmp.eq.s32.totalorder %v28, %v3079
    %vm3090 = vcmp.eq.s32.totalorder %v29, %v3079
    %vm3091 = vcmp.eq.s32.totalorder %v30, %v3079
    %vm3092 = vcmp.eq.s32.totalorder %v31, %v3079
    %vm3093 = vcmp.eq.s32.totalorder %v32, %v3079
    %vm3094 = vcmp.eq.s32.totalorder %v33, %v3079
    %vm3095 = vcmp.eq.s32.totalorder %v34, %v3079
    %v3096 = vsel %vm3080, %v1964, 0.0
    %v3097 = vsel %vm3081, %v1970, 0.0
    %v3098 = vsel %vm3082, %v1976, 0.0
    %v3099 = vsel %vm3083, %v1982, 0.0
    %v3100 = vsel %vm3084, %v1988, 0.0
    %v3101 = vsel %vm3085, %v1994, 0.0
    %v3102 = vsel %vm3086, %v2000, 0.0
    %v3103 = vsel %vm3087, %v2006, 0.0
    %v3104 = vsel %vm3088, %v2012, 0.0
    %v3105 = vsel %vm3089, %v2018, 0.0
    %v3106 = vsel %vm3090, %v2024, 0.0
    %v3107 = vsel %vm3091, %v2030, 0.0
    %v3108 = vsel %vm3092, %v2036, 0.0
    %v3109 = vsel %vm3093, %v2042, 0.0
    %v3110 = vsel %vm3094, %v2048, 0.0
    %v3111 = vsel %vm3095, %v2054, 0.0
    %v3112 = vadd.f32 %v3096, %v3097
    %v3113 = vadd.f32 %v3112, %v3098
    %v3114 = vadd.f32 %v3113, %v3099
    %v3115 = vadd.f32 %v3114, %v3100
    %v3116 = vadd.f32 %v3115, %v3101
    %v3117 = vadd.f32 %v3116, %v3102
    %v3118 = vadd.f32 %v3117, %v3103
    %v3119 = vadd.f32 %v3118, %v3104
    %v3120 = vadd.f32 %v3119, %v3105
    %v3121 = vadd.f32 %v3120, %v3106
    %v3122 = vadd.f32 %v3121, %v3107
    %v3123 = vadd.f32 %v3122, %v3108
    %v3124 = vadd.f32 %v3123, %v3109
    %v3125 = vadd.f32 %v3124, %v3110
    %v3126 = vadd.f32 %v3125, %v3111
    %v3127 = vrot.slane %v3126, 4
    %v3128 = vadd.f32 %v3126, %v3127
    %v3129 = vrot.slane %v3128, 2
    %v3130 = vadd.f32 %v3128, %v3129
    %v3131 = vrot.slane %v3130, 1
    %v3132 = vadd.f32 %v3130, %v3131
    %v3133 = vsub.f32 0.0, %v3132
    %v3134 = vmin.f32 %v3133, 0.0
    %v3135 = vand.u32 2147483647, %v3133
    %v3136 = vsub.f32 0.0, %v3135
    %v3137 = vmul.f32 %v3136, 1.442695
    %v3138 = vpow.pop %v3137
    %v3139 = vadd.f32 %v3138, 1.0
    %v3140 = vlog2.pop %v3139
    %v3141 = vmul.f32 %v3140, 0.6931472
    %v3142 = vsub.f32 %v3134, %v3141
    %v3143 = vadd.f32 %v3075, %v3142
    %v3144 = vlaneseq
    %v3145 = vshrl.u32 %v3144, 7
    %v3146 = vsub.s32 0, %v3145
    %v3147 = vrot.slane %v2059, %v3146
    %vm3148 = vcmp.eq.s32.totalorder %v19, %v3147
    %vm3149 = vcmp.eq.s32.totalorder %v20, %v3147
    %vm3150 = vcmp.eq.s32.totalorder %v21, %v3147
    %vm3151 = vcmp.eq.s32.totalorder %v22, %v3147
    %vm3152 = vcmp.eq.s32.totalorder %v23, %v3147
    %vm3153 = vcmp.eq.s32.totalorder %v24, %v3147
    %vm3154 = vcmp.eq.s32.totalorder %v25, %v3147
    %vm3155 = vcmp.eq.s32.totalorder %v26, %v3147
    %vm3156 = vcmp.eq.s32.totalorder %v27, %v3147
    %vm3157 = vcmp.eq.s32.totalorder %v28, %v3147
    %vm3158 = vcmp.eq.s32.totalorder %v29, %v3147
    %vm3159 = vcmp.eq.s32.totalorder %v30, %v3147
    %vm3160 = vcmp.eq.s32.totalorder %v31, %v3147
    %vm3161 = vcmp.eq.s32.totalorder %v32, %v3147
    %vm3162 = vcmp.eq.s32.totalorder %v33, %v3147
    %vm3163 = vcmp.eq.s32.totalorder %v34, %v3147
    %v3164 = vsel %vm3148, %v1964, 0.0
    %v3165 = vsel %vm3149, %v1970, 0.0
    %v3166 = vsel %vm3150, %v1976, 0.0
    %v3167 = vsel %vm3151, %v1982, 0.0
    %v3168 = vsel %vm3152, %v1988, 0.0
    %v3169 = vsel %vm3153, %v1994, 0.0
    %v3170 = vsel %vm3154, %v2000, 0.0
    %v3171 = vsel %vm3155, %v2006, 0.0
    %v3172 = vsel %vm3156, %v2012, 0.0
    %v3173 = vsel %vm3157, %v2018, 0.0
    %v3174 = vsel %vm3158, %v2024, 0.0
    %v3175 = vsel %vm3159, %v2030, 0.0
    %v3176 = vsel %vm3160, %v2036, 0.0
    %v3177 = vsel %vm3161, %v2042, 0.0
    %v3178 = vsel %vm3162, %v2048, 0.0
    %v3179 = vsel %vm3163, %v2054, 0.0
    %v3180 = vadd.f32 %v3164, %v3165
    %v3181 = vadd.f32 %v3180, %v3166
    %v3182 = vadd.f32 %v3181, %v3167
    %v3183 = vadd.f32 %v3182, %v3168
    %v3184 = vadd.f32 %v3183, %v3169
    %v3185 = vadd.f32 %v3184, %v3170
    %v3186 = vadd.f32 %v3185, %v3171
    %v3187 = vadd.f32 %v3186, %v3172
    %v3188 = vadd.f32 %v3187, %v3173
    %v3189 = vadd.f32 %v3188, %v3174
    %v3190 = vadd.f32 %v3189, %v3175
    %v3191 = vadd.f32 %v3190, %v3176
    %v3192 = vadd.f32 %v3191, %v3177
    %v3193 = vadd.f32 %v3192, %v3178
    %v3194 = vadd.f32 %v3193, %v3179
    %v3195 = vrot.slane %v3194, 4
    %v3196 = vadd.f32 %v3194, %v3195
    %v3197 = vrot.slane %v3196, 2
    %v3198 = vadd.f32 %v3196, %v3197
    %v3199 = vrot.slane %v3198, 1
    %v3200 = vadd.f32 %v3198, %v3199
    %v3201 = vsub.f32 0.0, %v3200
    %v3202 = vmin.f32 %v3201, 0.0
    %v3203 = vand.u32 2147483647, %v3201
    %v3204 = vsub.f32 0.0, %v3203
    %v3205 = vmul.f32 %v3204, 1.442695
    %v3206 = vpow.pop %v3205
    %v3207 = vadd.f32 %v3206, 1.0
    %v3208 = vlog2.pop %v3207
    %v3209 = vmul.f32 %v3208, 0.6931472
    %v3210 = vsub.f32 %v3202, %v3209
    %v3211 = vadd.f32 %v3143, %v3210
    %v3212 = vlaneseq
    %v3213 = vshrl.u32 %v3212, 7
    %v3214 = vsub.s32 1, %v3213
    %v3215 = vrot.slane %v2059, %v3214
    %vm3216 = vcmp.eq.s32.totalorder %v19, %v3215
    %vm3217 = vcmp.eq.s32.totalorder %v20, %v3215
    %vm3218 = vcmp.eq.s32.totalorder %v21, %v3215
    %vm3219 = vcmp.eq.s32.totalorder %v22, %v3215
    %vm3220 = vcmp.eq.s32.totalorder %v23, %v3215
    %vm3221 = vcmp.eq.s32.totalorder %v24, %v3215
    %vm3222 = vcmp.eq.s32.totalorder %v25, %v3215
    %vm3223 = vcmp.eq.s32.totalorder %v26, %v3215
    %vm3224 = vcmp.eq.s32.totalorder %v27, %v3215
    %vm3225 = vcmp.eq.s32.totalorder %v28, %v3215
    %vm3226 = vcmp.eq.s32.totalorder %v29, %v3215
    %vm3227 = vcmp.eq.s32.totalorder %v30, %v3215
    %vm3228 = vcmp.eq.s32.totalorder %v31, %v3215
    %vm3229 = vcmp.eq.s32.totalorder %v32, %v3215
    %vm3230 = vcmp.eq.s32.totalorder %v33, %v3215
    %vm3231 = vcmp.eq.s32.totalorder %v34, %v3215
    %v3232 = vsel %vm3216, %v1964, 0.0
    %v3233 = vsel %vm3217, %v1970, 0.0
    %v3234 = vsel %vm3218, %v1976, 0.0
    %v3235 = vsel %vm3219, %v1982, 0.0
    %v3236 = vsel %vm3220, %v1988, 0.0
    %v3237 = vsel %vm3221, %v1994, 0.0
    %v3238 = vsel %vm3222, %v2000, 0.0
    %v3239 = vsel %vm3223, %v2006, 0.0
    %v3240 = vsel %vm3224, %v2012, 0.0
    %v3241 = vsel %vm3225, %v2018, 0.0
    %v3242 = vsel %vm3226, %v2024, 0.0
    %v3243 = vsel %vm3227, %v2030, 0.0
    %v3244 = vsel %vm3228, %v2036, 0.0
    %v3245 = vsel %vm3229, %v2042, 0.0
    %v3246 = vsel %vm3230, %v2048, 0.0
    %v3247 = vsel %vm3231, %v2054, 0.0
    %v3248 = vadd.f32 %v3232, %v3233
    %v3249 = vadd.f32 %v3248, %v3234
    %v3250 = vadd.f32 %v3249, %v3235
    %v3251 = vadd.f32 %v3250, %v3236
    %v3252 = vadd.f32 %v3251, %v3237
    %v3253 = vadd.f32 %v3252, %v3238
    %v3254 = vadd.f32 %v3253, %v3239
    %v3255 = vadd.f32 %v3254, %v3240
    %v3256 = vadd.f32 %v3255, %v3241
    %v3257 = vadd.f32 %v3256, %v3242
    %v3258 = vadd.f32 %v3257, %v3243
    %v3259 = vadd.f32 %v3258, %v3244
    %v3260 = vadd.f32 %v3259, %v3245
    %v3261 = vadd.f32 %v3260, %v3246
    %v3262 = vadd.f32 %v3261, %v3247
    %v3263 = vrot.slane %v3262, 4
    %v3264 = vadd.f32 %v3262, %v3263
    %v3265 = vrot.slane %v3264, 2
    %v3266 = vadd.f32 %v3264, %v3265
    %v3267 = vrot.slane %v3266, 1
    %v3268 = vadd.f32 %v3266, %v3267
    %v3269 = vsub.f32 0.0, %v3268
    %v3270 = vmin.f32 %v3269, 0.0
    %v3271 = vand.u32 2147483647, %v3269
    %v3272 = vsub.f32 0.0, %v3271
    %v3273 = vmul.f32 %v3272, 1.442695
    %v3274 = vpow.pop %v3273
    %v3275 = vadd.f32 %v3274, 1.0
    %v3276 = vlog2.pop %v3275
    %v3277 = vmul.f32 %v3276, 0.6931472
    %v3278 = vsub.f32 %v3270, %v3277
    %v3279 = vadd.f32 %v3211, %v3278
    %v3280 = vlaneseq
    %v3281 = vshrl.u32 %v3280, 7
    %v3282 = vsub.s32 2, %v3281
    %v3283 = vrot.slane %v2059, %v3282
    %vm3284 = vcmp.eq.s32.totalorder %v19, %v3283
    %vm3285 = vcmp.eq.s32.totalorder %v20, %v3283
    %vm3286 = vcmp.eq.s32.totalorder %v21, %v3283
    %vm3287 = vcmp.eq.s32.totalorder %v22, %v3283
    %vm3288 = vcmp.eq.s32.totalorder %v23, %v3283
    %vm3289 = vcmp.eq.s32.totalorder %v24, %v3283
    %vm3290 = vcmp.eq.s32.totalorder %v25, %v3283
    %vm3291 = vcmp.eq.s32.totalorder %v26, %v3283
    %vm3292 = vcmp.eq.s32.totalorder %v27, %v3283
    %vm3293 = vcmp.eq.s32.totalorder %v28, %v3283
    %vm3294 = vcmp.eq.s32.totalorder %v29, %v3283
    %vm3295 = vcmp.eq.s32.totalorder %v30, %v3283
    %vm3296 = vcmp.eq.s32.totalorder %v31, %v3283
    %vm3297 = vcmp.eq.s32.totalorder %v32, %v3283
    %vm3298 = vcmp.eq.s32.totalorder %v33, %v3283
    %vm3299 = vcmp.eq.s32.totalorder %v34, %v3283
    %v3300 = vsel %vm3284, %v1964, 0.0
    %v3301 = vsel %vm3285, %v1970, 0.0
    %v3302 = vsel %vm3286, %v1976, 0.0
    %v3303 = vsel %vm3287, %v1982, 0.0
    %v3304 = vsel %vm3288, %v1988, 0.0
    %v3305 = vsel %vm3289, %v1994, 0.0
    %v3306 = vsel %vm3290, %v2000, 0.0
    %v3307 = vsel %vm3291, %v2006, 0.0
    %v3308 = vsel %vm3292, %v2012, 0.0
    %v3309 = vsel %vm3293, %v2018, 0.0
    %v3310 = vsel %vm3294, %v2024, 0.0
    %v3311 = vsel %vm3295, %v2030, 0.0
    %v3312 = vsel %vm3296, %v2036, 0.0
    %v3313 = vsel %vm3297, %v2042, 0.0
    %v3314 = vsel %vm3298, %v2048, 0.0
    %v3315 = vsel %vm3299, %v2054, 0.0
    %v3316 = vadd.f32 %v3300, %v3301
    %v3317 = vadd.f32 %v3316, %v3302
    %v3318 = vadd.f32 %v3317, %v3303
    %v3319 = vadd.f32 %v3318, %v3304
    %v3320 = vadd.f32 %v3319, %v3305
    %v3321 = vadd.f32 %v3320, %v3306
    %v3322 = vadd.f32 %v3321, %v3307
    %v3323 = vadd.f32 %v3322, %v3308
    %v3324 = vadd.f32 %v3323, %v3309
    %v3325 = vadd.f32 %v3324, %v3310
    %v3326 = vadd.f32 %v3325, %v3311
    %v3327 = vadd.f32 %v3326, %v3312
    %v3328 = vadd.f32 %v3327, %v3313
    %v3329 = vadd.f32 %v3328, %v3314
    %v3330 = vadd.f32 %v3329, %v3315
    %v3331 = vrot.slane %v3330, 4
    %v3332 = vadd.f32 %v3330, %v3331
    %v3333 = vrot.slane %v3332, 2
    %v3334 = vadd.f32 %v3332, %v3333
    %v3335 = vrot.slane %v3334, 1
    %v3336 = vadd.f32 %v3334, %v3335
    %v3337 = vsub.f32 0.0, %v3336
    %v3338 = vmin.f32 %v3337, 0.0
    %v3339 = vand.u32 2147483647, %v3337
    %v3340 = vsub.f32 0.0, %v3339
    %v3341 = vmul.f32 %v3340, 1.442695
    %v3342 = vpow.pop %v3341
    %v3343 = vadd.f32 %v3342, 1.0
    %v3344 = vlog2.pop %v3343
    %v3345 = vmul.f32 %v3344, 0.6931472
    %v3346 = vsub.f32 %v3338, %v3345
    %v3347 = vadd.f32 %v3279, %v3346
    %v3348 = vlaneseq
    %v3349 = vshrl.u32 %v3348, 7
    %v3350 = vsub.s32 3, %v3349
    %v3351 = vrot.slane %v2059, %v3350
    %vm3352 = vcmp.eq.s32.totalorder %v19, %v3351
    %vm3353 = vcmp.eq.s32.totalorder %v20, %v3351
    %vm3354 = vcmp.eq.s32.totalorder %v21, %v3351
    %vm3355 = vcmp.eq.s32.totalorder %v22, %v3351
    %vm3356 = vcmp.eq.s32.totalorder %v23, %v3351
    %vm3357 = vcmp.eq.s32.totalorder %v24, %v3351
    %vm3358 = vcmp.eq.s32.totalorder %v25, %v3351
    %vm3359 = vcmp.eq.s32.totalorder %v26, %v3351
    %vm3360 = vcmp.eq.s32.totalorder %v27, %v3351
    %vm3361 = vcmp.eq.s32.totalorder %v28, %v3351
    %vm3362 = vcmp.eq.s32.totalorder %v29, %v3351
    %vm3363 = vcmp.eq.s32.totalorder %v30, %v3351
    %vm3364 = vcmp.eq.s32.totalorder %v31, %v3351
    %vm3365 = vcmp.eq.s32.totalorder %v32, %v3351
    %vm3366 = vcmp.eq.s32.totalorder %v33, %v3351
    %vm3367 = vcmp.eq.s32.totalorder %v34, %v3351
    %v3368 = vsel %vm3352, %v1964, 0.0
    %v3369 = vsel %vm3353, %v1970, 0.0
    %v3370 = vsel %vm3354, %v1976, 0.0
    %v3371 = vsel %vm3355, %v1982, 0.0
    %v3372 = vsel %vm3356, %v1988, 0.0
    %v3373 = vsel %vm3357, %v1994, 0.0
    %v3374 = vsel %vm3358, %v2000, 0.0
    %v3375 = vsel %vm3359, %v2006, 0.0
    %v3376 = vsel %vm3360, %v2012, 0.0
    %v3377 = vsel %vm3361, %v2018, 0.0
    %v3378 = vsel %vm3362, %v2024, 0.0
    %v3379 = vsel %vm3363, %v2030, 0.0
    %v3380 = vsel %vm3364, %v2036, 0.0
    %v3381 = vsel %vm3365, %v2042, 0.0
    %v3382 = vsel %vm3366, %v2048, 0.0
    %v3383 = vsel %vm3367, %v2054, 0.0
    %v3384 = vadd.f32 %v3368, %v3369
    %v3385 = vadd.f32 %v3384, %v3370
    %v3386 = vadd.f32 %v3385, %v3371
    %v3387 = vadd.f32 %v3386, %v3372
    %v3388 = vadd.f32 %v3387, %v3373
    %v3389 = vadd.f32 %v3388, %v3374
    %v3390 = vadd.f32 %v3389, %v3375
    %v3391 = vadd.f32 %v3390, %v3376
    %v3392 = vadd.f32 %v3391, %v3377
    %v3393 = vadd.f32 %v3392, %v3378
    %v3394 = vadd.f32 %v3393, %v3379
    %v3395 = vadd.f32 %v3394, %v3380
    %v3396 = vadd.f32 %v3395, %v3381
    %v3397 = vadd.f32 %v3396, %v3382
    %v3398 = vadd.f32 %v3397, %v3383
    %v3399 = vrot.slane %v3398, 4
    %v3400 = vadd.f32 %v3398, %v3399
    %v3401 = vrot.slane %v3400, 2
    %v3402 = vadd.f32 %v3400, %v3401
    %v3403 = vrot.slane %v3402, 1
    %v3404 = vadd.f32 %v3402, %v3403
    %v3405 = vsub.f32 0.0, %v3404
    %v3406 = vmin.f32 %v3405, 0.0
    %v3407 = vand.u32 2147483647, %v3405
    %v3408 = vsub.f32 0.0, %v3407
    %v3409 = vmul.f32 %v3408, 1.442695
    %v3410 = vpow.pop %v3409
    %v3411 = vadd.f32 %v3410, 1.0
    %v3412 = vlog2.pop %v3411
    %v3413 = vmul.f32 %v3412, 0.6931472
    %v3414 = vsub.f32 %v3406, %v3413
    %v3415 = vadd.f32 %v3347, %v3414
    %v3416 = vlaneseq
    %v3417 = vshrl.u32 %v3416, 7
    %v3418 = vsub.s32 4, %v3417
    %v3419 = vrot.slane %v2059, %v3418
    %vm3420 = vcmp.eq.s32.totalorder %v19, %v3419
    %vm3421 = vcmp.eq.s32.totalorder %v20, %v3419
    %vm3422 = vcmp.eq.s32.totalorder %v21, %v3419
    %vm3423 = vcmp.eq.s32.totalorder %v22, %v3419
    %vm3424 = vcmp.eq.s32.totalorder %v23, %v3419
    %vm3425 = vcmp.eq.s32.totalorder %v24, %v3419
    %vm3426 = vcmp.eq.s32.totalorder %v25, %v3419
    %vm3427 = vcmp.eq.s32.totalorder %v26, %v3419
    %vm3428 = vcmp.eq.s32.totalorder %v27, %v3419
    %vm3429 = vcmp.eq.s32.totalorder %v28, %v3419
    %vm3430 = vcmp.eq.s32.totalorder %v29, %v3419
    %vm3431 = vcmp.eq.s32.totalorder %v30, %v3419
    %vm3432 = vcmp.eq.s32.totalorder %v31, %v3419
    %vm3433 = vcmp.eq.s32.totalorder %v32, %v3419
    %vm3434 = vcmp.eq.s32.totalorder %v33, %v3419
    %vm3435 = vcmp.eq.s32.totalorder %v34, %v3419
    %v3436 = vsel %vm3420, %v1964, 0.0
    %v3437 = vsel %vm3421, %v1970, 0.0
    %v3438 = vsel %vm3422, %v1976, 0.0
    %v3439 = vsel %vm3423, %v1982, 0.0
    %v3440 = vsel %vm3424, %v1988, 0.0
    %v3441 = vsel %vm3425, %v1994, 0.0
    %v3442 = vsel %vm3426, %v2000, 0.0
    %v3443 = vsel %vm3427, %v2006, 0.0
    %v3444 = vsel %vm3428, %v2012, 0.0
    %v3445 = vsel %vm3429, %v2018, 0.0
    %v3446 = vsel %vm3430, %v2024, 0.0
    %v3447 = vsel %vm3431, %v2030, 0.0
    %v3448 = vsel %vm3432, %v2036, 0.0
    %v3449 = vsel %vm3433, %v2042, 0.0
    %v3450 = vsel %vm3434, %v2048, 0.0
    %v3451 = vsel %vm3435, %v2054, 0.0
    %v3452 = vadd.f32 %v3436, %v3437
    %v3453 = vadd.f32 %v3452, %v3438
    %v3454 = vadd.f32 %v3453, %v3439
    %v3455 = vadd.f32 %v3454, %v3440
    %v3456 = vadd.f32 %v3455, %v3441
    %v3457 = vadd.f32 %v3456, %v3442
    %v3458 = vadd.f32 %v3457, %v3443
    %v3459 = vadd.f32 %v3458, %v3444
    %v3460 = vadd.f32 %v3459, %v3445
    %v3461 = vadd.f32 %v3460, %v3446
    %v3462 = vadd.f32 %v3461, %v3447
    %v3463 = vadd.f32 %v3462, %v3448
    %v3464 = vadd.f32 %v3463, %v3449
    %v3465 = vadd.f32 %v3464, %v3450
    %v3466 = vadd.f32 %v3465, %v3451
    %v3467 = vrot.slane %v3466, 4
    %v3468 = vadd.f32 %v3466, %v3467
    %v3469 = vrot.slane %v3468, 2
    %v3470 = vadd.f32 %v3468, %v3469
    %v3471 = vrot.slane %v3470, 1
    %v3472 = vadd.f32 %v3470, %v3471
    %v3473 = vsub.f32 0.0, %v3472
    %v3474 = vmin.f32 %v3473, 0.0
    %v3475 = vand.u32 2147483647, %v3473
    %v3476 = vsub.f32 0.0, %v3475
    %v3477 = vmul.f32 %v3476, 1.442695
    %v3478 = vpow.pop %v3477
    %v3479 = vadd.f32 %v3478, 1.0
    %v3480 = vlog2.pop %v3479
    %v3481 = vmul.f32 %v3480, 0.6931472
    %v3482 = vsub.f32 %v3474, %v3481
    %v3483 = vadd.f32 %v3415, %v3482
    %v3484 = vlaneseq
    %v3485 = vshrl.u32 %v3484, 7
    %v3486 = vsub.s32 5, %v3485
    %v3487 = vrot.slane %v2059, %v3486
    %vm3488 = vcmp.eq.s32.totalorder %v19, %v3487
    %vm3489 = vcmp.eq.s32.totalorder %v20, %v3487
    %vm3490 = vcmp.eq.s32.totalorder %v21, %v3487
    %vm3491 = vcmp.eq.s32.totalorder %v22, %v3487
    %vm3492 = vcmp.eq.s32.totalorder %v23, %v3487
    %vm3493 = vcmp.eq.s32.totalorder %v24, %v3487
    %vm3494 = vcmp.eq.s32.totalorder %v25, %v3487
    %vm3495 = vcmp.eq.s32.totalorder %v26, %v3487
    %vm3496 = vcmp.eq.s32.totalorder %v27, %v3487
    %vm3497 = vcmp.eq.s32.totalorder %v28, %v3487
    %vm3498 = vcmp.eq.s32.totalorder %v29, %v3487
    %vm3499 = vcmp.eq.s32.totalorder %v30, %v3487
    %vm3500 = vcmp.eq.s32.totalorder %v31, %v3487
    %vm3501 = vcmp.eq.s32.totalorder %v32, %v3487
    %vm3502 = vcmp.eq.s32.totalorder %v33, %v3487
    %vm3503 = vcmp.eq.s32.totalorder %v34, %v3487
    %v3504 = vsel %vm3488, %v1964, 0.0
    %v3505 = vsel %vm3489, %v1970, 0.0
    %v3506 = vsel %vm3490, %v1976, 0.0
    %v3507 = vsel %vm3491, %v1982, 0.0
    %v3508 = vsel %vm3492, %v1988, 0.0
    %v3509 = vsel %vm3493, %v1994, 0.0
    %v3510 = vsel %vm3494, %v2000, 0.0
    %v3511 = vsel %vm3495, %v2006, 0.0
    %v3512 = vsel %vm3496, %v2012, 0.0
    %v3513 = vsel %vm3497, %v2018, 0.0
    %v3514 = vsel %vm3498, %v2024, 0.0
    %v3515 = vsel %vm3499, %v2030, 0.0
    %v3516 = vsel %vm3500, %v2036, 0.0
    %v3517 = vsel %vm3501, %v2042, 0.0
    %v3518 = vsel %vm3502, %v2048, 0.0
    %v3519 = vsel %vm3503, %v2054, 0.0
    %v3520 = vadd.f32 %v3504, %v3505
    %v3521 = vadd.f32 %v3520, %v3506
    %v3522 = vadd.f32 %v3521, %v3507
    %v3523 = vadd.f32 %v3522, %v3508
    %v3524 = vadd.f32 %v3523, %v3509
    %v3525 = vadd.f32 %v3524, %v3510
    %v3526 = vadd.f32 %v3525, %v3511
    %v3527 = vadd.f32 %v3526, %v3512
    %v3528 = vadd.f32 %v3527, %v3513
    %v3529 = vadd.f32 %v3528, %v3514
    %v3530 = vadd.f32 %v3529, %v3515
    %v3531 = vadd.f32 %v3530, %v3516
    %v3532 = vadd.f32 %v3531, %v3517
    %v3533 = vadd.f32 %v3532, %v3518
    %v3534 = vadd.f32 %v3533, %v3519
    %v3535 = vrot.slane %v3534, 4
    %v3536 = vadd.f32 %v3534, %v3535
    %v3537 = vrot.slane %v3536, 2
    %v3538 = vadd.f32 %v3536, %v3537
    %v3539 = vrot.slane %v3538, 1
    %v3540 = vadd.f32 %v3538, %v3539
    %v3541 = vsub.f32 0.0, %v3540
    %v3542 = vmin.f32 %v3541, 0.0
    %v3543 = vand.u32 2147483647, %v3541
    %v3544 = vsub.f32 0.0, %v3543
    %v3545 = vmul.f32 %v3544, 1.442695
    %v3546 = vpow.pop %v3545
    %v3547 = vadd.f32 %v3546, 1.0
    %v3548 = vlog2.pop %v3547
    %v3549 = vmul.f32 %v3548, 0.6931472
    %v3550 = vsub.f32 %v3542, %v3549
    %v3551 = vadd.f32 %v3483, %v3550
    %v3552 = vlaneseq
    %v3553 = vshrl.u32 %v3552, 7
    %v3554 = vsub.s32 6, %v3553
    %v3555 = vrot.slane %v2059, %v3554
    %vm3556 = vcmp.eq.s32.totalorder %v19, %v3555
    %vm3557 = vcmp.eq.s32.totalorder %v20, %v3555
    %vm3558 = vcmp.eq.s32.totalorder %v21, %v3555
    %vm3559 = vcmp.eq.s32.totalorder %v22, %v3555
    %vm3560 = vcmp.eq.s32.totalorder %v23, %v3555
    %vm3561 = vcmp.eq.s32.totalorder %v24, %v3555
    %vm3562 = vcmp.eq.s32.totalorder %v25, %v3555
    %vm3563 = vcmp.eq.s32.totalorder %v26, %v3555
    %vm3564 = vcmp.eq.s32.totalorder %v27, %v3555
    %vm3565 = vcmp.eq.s32.totalorder %v28, %v3555
    %vm3566 = vcmp.eq.s32.totalorder %v29, %v3555
    %vm3567 = vcmp.eq.s32.totalorder %v30, %v3555
    %vm3568 = vcmp.eq.s32.totalorder %v31, %v3555
    %vm3569 = vcmp.eq.s32.totalorder %v32, %v3555
    %vm3570 = vcmp.eq.s32.totalorder %v33, %v3555
    %vm3571 = vcmp.eq.s32.totalorder %v34, %v3555
    %v3572 = vsel %vm3556, %v1964, 0.0
    %v3573 = vsel %vm3557, %v1970, 0.0
    %v3574 = vsel %vm3558, %v1976, 0.0
    %v3575 = vsel %vm3559, %v1982, 0.0
    %v3576 = vsel %vm3560, %v1988, 0.0
    %v3577 = vsel %vm3561, %v1994, 0.0
    %v3578 = vsel %vm3562, %v2000, 0.0
    %v3579 = vsel %vm3563, %v2006, 0.0
    %v3580 = vsel %vm3564, %v2012, 0.0
    %v3581 = vsel %vm3565, %v2018, 0.0
    %v3582 = vsel %vm3566, %v2024, 0.0
    %v3583 = vsel %vm3567, %v2030, 0.0
    %v3584 = vsel %vm3568, %v2036, 0.0
    %v3585 = vsel %vm3569, %v2042, 0.0
    %v3586 = vsel %vm3570, %v2048, 0.0
    %v3587 = vsel %vm3571, %v2054, 0.0
    %v3588 = vadd.f32 %v3572, %v3573
    %v3589 = vadd.f32 %v3588, %v3574
    %v3590 = vadd.f32 %v3589, %v3575
    %v3591 = vadd.f32 %v3590, %v3576
    %v3592 = vadd.f32 %v3591, %v3577
    %v3593 = vadd.f32 %v3592, %v3578
    %v3594 = vadd.f32 %v3593, %v3579
    %v3595 = vadd.f32 %v3594, %v3580
    %v3596 = vadd.f32 %v3595, %v3581
    %v3597 = vadd.f32 %v3596, %v3582
    %v3598 = vadd.f32 %v3597, %v3583
    %v3599 = vadd.f32 %v3598, %v3584
    %v3600 = vadd.f32 %v3599, %v3585
    %v3601 = vadd.f32 %v3600, %v3586
    %v3602 = vadd.f32 %v3601, %v3587
    %v3603 = vrot.slane %v3602, 4
    %v3604 = vadd.f32 %v3602, %v3603
    %v3605 = vrot.slane %v3604, 2
    %v3606 = vadd.f32 %v3604, %v3605
    %v3607 = vrot.slane %v3606, 1
    %v3608 = vadd.f32 %v3606, %v3607
    %v3609 = vsub.f32 0.0, %v3608
    %v3610 = vmin.f32 %v3609, 0.0
    %v3611 = vand.u32 2147483647, %v3609
    %v3612 = vsub.f32 0.0, %v3611
    %v3613 = vmul.f32 %v3612, 1.442695
    %v3614 = vpow.pop %v3613
    %v3615 = vadd.f32 %v3614, 1.0
    %v3616 = vlog2.pop %v3615
    %v3617 = vmul.f32 %v3616, 0.6931472
    %v3618 = vsub.f32 %v3610, %v3617
    %v3619 = vadd.f32 %v3551, %v3618
    %v3620 = vlaneseq
    %v3621 = vshrl.u32 %v3620, 7
    %v3622 = vsub.s32 7, %v3621
    %v3623 = vrot.slane %v2059, %v3622
    %vm3624 = vcmp.eq.s32.totalorder %v19, %v3623
    %vm3625 = vcmp.eq.s32.totalorder %v20, %v3623
    %vm3626 = vcmp.eq.s32.totalorder %v21, %v3623
    %vm3627 = vcmp.eq.s32.totalorder %v22, %v3623
    %vm3628 = vcmp.eq.s32.totalorder %v23, %v3623
    %vm3629 = vcmp.eq.s32.totalorder %v24, %v3623
    %vm3630 = vcmp.eq.s32.totalorder %v25, %v3623
    %vm3631 = vcmp.eq.s32.totalorder %v26, %v3623
    %vm3632 = vcmp.eq.s32.totalorder %v27, %v3623
    %vm3633 = vcmp.eq.s32.totalorder %v28, %v3623
    %vm3634 = vcmp.eq.s32.totalorder %v29, %v3623
    %vm3635 = vcmp.eq.s32.totalorder %v30, %v3623
    %vm3636 = vcmp.eq.s32.totalorder %v31, %v3623
    %vm3637 = vcmp.eq.s32.totalorder %v32, %v3623
    %vm3638 = vcmp.eq.s32.totalorder %v33, %v3623
    %vm3639 = vcmp.eq.s32.totalorder %v34, %v3623
    %v3640 = vsel %vm3624, %v1964, 0.0
    %v3641 = vsel %vm3625, %v1970, 0.0
    %v3642 = vsel %vm3626, %v1976, 0.0
    %v3643 = vsel %vm3627, %v1982, 0.0
    %v3644 = vsel %vm3628, %v1988, 0.0
    %v3645 = vsel %vm3629, %v1994, 0.0
    %v3646 = vsel %vm3630, %v2000, 0.0
    %v3647 = vsel %vm3631, %v2006, 0.0
    %v3648 = vsel %vm3632, %v2012, 0.0
    %v3649 = vsel %vm3633, %v2018, 0.0
    %v3650 = vsel %vm3634, %v2024, 0.0
    %v3651 = vsel %vm3635, %v2030, 0.0
    %v3652 = vsel %vm3636, %v2036, 0.0
    %v3653 = vsel %vm3637, %v2042, 0.0
    %v3654 = vsel %vm3638, %v2048, 0.0
    %v3655 = vsel %vm3639, %v2054, 0.0
    %v3656 = vadd.f32 %v3640, %v3641
    %v3657 = vadd.f32 %v3656, %v3642
    %v3658 = vadd.f32 %v3657, %v3643
    %v3659 = vadd.f32 %v3658, %v3644
    %v3660 = vadd.f32 %v3659, %v3645
    %v3661 = vadd.f32 %v3660, %v3646
    %v3662 = vadd.f32 %v3661, %v3647
    %v3663 = vadd.f32 %v3662, %v3648
    %v3664 = vadd.f32 %v3663, %v3649
    %v3665 = vadd.f32 %v3664, %v3650
    %v3666 = vadd.f32 %v3665, %v3651
    %v3667 = vadd.f32 %v3666, %v3652
    %v3668 = vadd.f32 %v3667, %v3653
    %v3669 = vadd.f32 %v3668, %v3654
    %v3670 = vadd.f32 %v3669, %v3655
    %v3671 = vrot.slane %v3670, 4
    %v3672 = vadd.f32 %v3670, %v3671
    %v3673 = vrot.slane %v3672, 2
    %v3674 = vadd.f32 %v3672, %v3673
    %v3675 = vrot.slane %v3674, 1
    %v3676 = vadd.f32 %v3674, %v3675
    %v3677 = vsub.f32 0.0, %v3676
    %v3678 = vmin.f32 %v3677, 0.0
    %v3679 = vand.u32 2147483647, %v3677
    %v3680 = vsub.f32 0.0, %v3679
    %v3681 = vmul.f32 %v3680, 1.442695
    %v3682 = vpow.pop %v3681
    %v3683 = vadd.f32 %v3682, 1.0
    %v3684 = vlog2.pop %v3683
    %v3685 = vmul.f32 %v3684, 0.6931472
    %v3686 = vsub.f32 %v3678, %v3685
    %v3687 = vadd.f32 %v3619, %v3686
    %v3688 = vmul.f32 %v3687, 0.25
    %3689 = vst [vmem:[#allocation2] sm:$0x1] %v3688
    // Predicated region
    $region18: #{tpu_custom_call.1} parent=1 // pred_check
      _
    $region19: #{tpu_custom_call.1} parent=1 // pred_check_branch
      %3691 = sbr.rel (0) target = $region21
    $region20: #{tpu_custom_call.1} parent=1 // pred_region
      %s3693 = ssub.s32 16, 16
      %3694 = vsyncadd [#allocation3], %s3693
      %s3696 = sshll.u32 [#allocation2], 4
      %s3697 = int_to_ptr.vmem [resolvable:$true] %s3696
      %3699 = dma.vmem_to_hbm [thread:$0]  %s3697, 16, %s4, [#allocation3]
    $region21: #{tpu_custom_call.1} parent=1 // pred_fallthru
      _
    // Predicated region
    $region22: #{tpu_custom_call.1} parent=1 // pred_check
      _
    $region23: #{tpu_custom_call.1} parent=1 // pred_check_branch
      %3701 = sbr.rel (0) target = $region25
    $region24: #{tpu_custom_call.1} parent=1 // pred_region
      %3702 = dma.done [#allocation3], 16
    $region25: #{tpu_custom_call.1} parent=1 // pred_fallthru
      _
    %3703 = vsyncpa [#allocation3], 1

</llo_original>
